<compile_context>
chip_gen: v6e
topology: v6e:2x2x1
jax: 0.10.0
libtpu: 0.0.40
codegen_flags: <defaults>
</compile_context>

<pallas_src>
import functools
import math

import jax
import jax.numpy as jnp
from jax import lax
from jax.experimental import pallas as pl
from jax.experimental.pallas import tpu as pltpu

BT = 8  # batch tile per grid step (>= 8 keeps every staged tile sublane-aligned)


# ---------------------------------------------------------------------------
# Fused forward kernel (one grid step == one batch tile of BT images).
#
# p1 (per tile) : [32, 576*BT] de-replicated conv1 im2col.
#   row r = k1i*5+k1j (r<25), row 25 = ones (bias row), rows 26..31 = 0.
#   col     = q1*(144*BT) + y*(12*BT) + x*BT + b,  q1 = dy1*2+dx1 (pool-1 quadrant),
#             (y, x) in [0,12) pooled coords, b in [0,BT).
# ---------------------------------------------------------------------------
def _fused_kernel(p1_ref, w1_ref, w2_ref, b2_ref, w3_ref, b3_ref,
                  w4_ref, b4_ref, w5_ref, b5_ref, out_ref, patch_ref, *, bt):
    f32 = jnp.float32

    # ---- conv1 (+bias via the ones row): ONE MXU matmul --------------------
    z = jnp.dot(w1_ref[...], p1_ref[...], preferred_element_type=f32)  # [8, 576*bt]

    # ---- 2x2 max-pool #1 + ReLU: quadrant blocks are contiguous ------------
    q = 144 * bt
    pool1 = jnp.maximum(jnp.maximum(z[:, 0 * q:1 * q], z[:, 1 * q:2 * q]),
                        jnp.maximum(z[:, 2 * q:3 * q], z[:, 3 * q:4 * q]))
    pool1 = jnp.maximum(pool1, 0.0)                       # [8, 144*bt], cols (y, x, b)

    # ---- stage the conv2 im2col into a VMEM scratch -------------------------
    # Stage A: the 5 ki row-windows are contiguous column slices of pool1.
    #   s1[(ki, c), (oi, x, b)] = pool1[c, oi+ki, x, b]
    s1 = jnp.concatenate(
        [pool1[:, ki * 12 * bt:(ki + 8) * 12 * bt] for ki in range(5)],
        axis=0)                                           # [40, 96*bt]
    # Stage B: 5*8 contiguous block copies handle the kj column windows.
    #   patch[(kj, ki, c), (oi, oj, b)] = pool1[c, oi+ki, oj+kj, b]
    for kj in range(5):
        for oi in range(8):
            src = (oi * 12 + kj) * bt
            patch_ref[kj * 40:(kj + 1) * 40, oi * 8 * bt:(oi + 1) * 8 * bt] = \
                s1[:, src:src + 8 * bt]

    # ---- conv2 + bias + ReLU: ONE MXU matmul [16,200]@[200,64*bt] -----------
    y2 = jnp.dot(w2_ref[...], patch_ref[...],
                 preferred_element_type=f32) + b2_ref[...]
    y2 = jnp.maximum(y2, 0.0)                             # [16, 64*bt], cols (oi, oj, b)

    # ---- 2x2 max-pool #2, flattened straight into the fc1 activation -------
    # act rows ordered (s = ii*4+jj, c); fc1 weight is pre-packed to match.
    pieces = []
    for ii in range(4):
        for jj in range(4):
            a = (16 * ii + 2 * jj) * bt                   # col of (oi=2ii, oj=2jj, b=0)
            pieces.append(jnp.maximum(
                jnp.maximum(y2[:, a:a + bt], y2[:, a + bt:a + 2 * bt]),
                jnp.maximum(y2[:, a + 8 * bt:a + 9 * bt],
                            y2[:, a + 9 * bt:a + 10 * bt])))
    act = jnp.concatenate(pieces, axis=0)                 # [256, bt]

    # ---- fc1 (single matmul), fc2/fc3 batch-major (lane-dense) -------------
    h1 = jnp.maximum(jnp.dot(w3_ref[...], act, preferred_element_type=f32)
                     + b3_ref[...], 0.0)                  # [128, bt]
    h1t = h1.T                                            # [bt, 128]
    h2 = jnp.maximum(jnp.dot(h1t, w4_ref[...], preferred_element_type=f32)
                     + b4_ref[...], 0.0)                  # [bt, 128]
    out = jnp.dot(h2, w5_ref[...], preferred_element_type=f32) + b5_ref[...]
    out_ref[...] = out.astype(out_ref.dtype)              # [bt, 16]


def _fused_forward(p1, packed, n_tiles):
    bt = BT
    cols = 576 * bt

    def whole(shape):  # grid-invariant, whole-array VMEM block
        return pl.BlockSpec(shape, lambda *_: (0,) * len(shape))

    grid_spec = pltpu.PrefetchScalarGridSpec(
        num_scalar_prefetch=0,
        grid=(n_tiles,),
        in_specs=[
            pl.BlockSpec((32, cols), lambda t: (0, t)),   # per-tile patch slab (pipelined)
            whole((8, 32)),     # conv1 weight (+bias column)
            whole((16, 200)),   # conv2 weight, rows (kj, ki, c)
            whole((16, 1)),     # conv2 bias
            whole((128, 256)),  # fc1 weight, cols (s, c)
            whole((128, 1)),    # fc1 bias
            whole((128, 128)),  # fc2 weight (K, N)
            whole((1, 128)),    # fc2 bias
            whole((128, 16)),   # fc3 weight (K, N)
            whole((1, 16)),     # fc3 bias
        ],
        out_specs=pl.BlockSpec((bt, 16), lambda t: (t, 0)),
        scratch_shapes=[pltpu.VMEM((200, 64 * bt), jnp.float32)],
    )
    return pl.pallas_call(
        functools.partial(_fused_kernel, bt=bt),
        out_shape=jax.ShapeDtypeStruct((n_tiles * bt, 16), jnp.float32),
        grid_spec=grid_spec,
        compiler_params=pltpu.CompilerParams(
            dimension_semantics=("parallel",),            # megacore on v7x
            vmem_limit_bytes=32 * 1024 * 1024,            # safe on v5e/v6e/v7x
        ),
    )(p1, packed["w1"], packed["w2"], packed["b2"], packed["w3"], packed["b3"],
      packed["w4"], packed["b4"], packed["w5"], packed["b5"])


# ---------------------------------------------------------------------------
# Host-side glue: de-replicated conv1 im2col + one-time weight packing.
# ---------------------------------------------------------------------------
def _build_patches(x, n_tiles):
    """[B,1,28,28] -> [32, n_tiles*576*BT] conv1 im2col (no conv2 replication)."""
    B = x.shape[0]
    bp = n_tiles * BT
    img = x[:, 0].astype(jnp.float32)
    if bp > B:
        img = jnp.pad(img, ((0, bp - B), (0, 0), (0, 0)))
    # pat[r, b, h, w] = img[b, h+k1i, w+k1j], r = k1i*5+k1j, h,w in [0,24)
    pat = jnp.stack([img[:, i:i + 24, j:j + 24]
                     for i in range(5) for j in range(5)], axis=0)      # [25,bp,24,24]
    # split conv1-output coords into pool-1 position / quadrant: h=2y+dy, w=2x+dx
    pat = pat.reshape(25, n_tiles, BT, 12, 2, 12, 2)                    # r,t,b,y,dy,x,dx
    pat = jnp.transpose(pat, (0, 1, 4, 6, 3, 5, 2))                     # r,t,dy,dx,y,x,b
    pat = pat.reshape(25, n_tiles * 576 * BT)
    return jnp.concatenate(
        [pat,
         jnp.ones((1, pat.shape[1]), jnp.float32),                       # bias row (r=25)
         jnp.zeros((6, pat.shape[1]), jnp.float32)], axis=0)             # K pad 26..31


def pack_params(p):
    """One-time packing to MXU-friendly, zero-padded tiles (outside hot path)."""
    f32 = jnp.float32
    # conv1 -> [8, 32]: rows = out-ch (6->8), cols 0..24 = (k1i,k1j), col 25 = bias.
    w1 = jnp.zeros((8, 32), f32)
    w1 = w1.at[:6, :25].set(p["conv1_w"].reshape(6, 25).astype(f32))
    w1 = w1.at[:6, 25].set(p["conv1_b"].astype(f32))
    # conv2 -> [16, 200]: col = kj*40 + ki*8 + c (c padded 6 -> 8 with zeros).
    w2 = jnp.transpose(p["conv2_w"].astype(f32), (3, 2, 1, 0))          # [kj,ki,c,o]
    w2 = jnp.pad(w2, ((0, 0), (0, 0), (0, 2), (0, 0)))                  # [5,5,8,16]
    w2 = jnp.transpose(w2.reshape(200, 16), (1, 0))                     # [16,200]
    b2 = p["conv2_b"].reshape(16, 1).astype(f32)
    # fc1 -> [128, 256]: col = s*16 + c to match the kernel's (spatial, channel) rows.
    w3 = jnp.transpose(p["fc1_w"].astype(f32).reshape(120, 16, 16),
                       (0, 2, 1)).reshape(120, 256)
    w3 = jnp.pad(w3, ((0, 8), (0, 0)))                                  # [128,256]
    b3 = jnp.pad(p["fc1_b"].astype(f32), (0, 8)).reshape(128, 1)
    # fc2 -> [128(K), 128(N)] for the batch-major matmul.
    w4 = jnp.pad(p["fc2_w"].astype(f32), ((0, 44), (0, 8))).T           # [128,128]
    b4 = jnp.pad(p["fc2_b"].astype(f32), (0, 44)).reshape(1, 128)
    # fc3 -> [128(K), 16(N)].
    w5 = jnp.pad(p["fc3_w"].astype(f32), ((0, 6), (0, 44))).T           # [128,16]
    b5 = jnp.pad(p["fc3_b"].astype(f32), (0, 6)).reshape(1, 16)
    return dict(w1=w1, w2=w2, b2=b2, w3=w3, b3=b3, w4=w4, b4=b4, w5=w5, b5=b5)


def init_params(key):
    # PyTorch-default-style uniform(-1/sqrt(fan_in), 1/sqrt(fan_in)), deterministic.
    def uniform(k, shape, fan_in):
        bound = 1.0 / math.sqrt(fan_in)
        return jax.random.uniform(k, shape, jnp.float32, -bound, bound)

    ks = jax.random.split(key, 10)
    return {
        "conv1_w": uniform(ks[0], (6, 1, 5, 5), 1 * 5 * 5),
        "conv1_b": uniform(ks[1], (6,), 1 * 5 * 5),
        "conv2_w": uniform(ks[2], (16, 6, 5, 5), 6 * 5 * 5),
        "conv2_b": uniform(ks[3], (16,), 6 * 5 * 5),
        "fc1_w": uniform(ks[4], (120, 16 * 4 * 4), 16 * 4 * 4),
        "fc1_b": uniform(ks[5], (120,), 16 * 4 * 4),
        "fc2_w": uniform(ks[6], (84, 120), 120),
        "fc2_b": uniform(ks[7], (84,), 120),
        "fc3_w": uniform(ks[8], (10, 84), 84),
        "fc3_b": uniform(ks[9], (10,), 84),
    }


@jax.jit
def fashion_net_forward(packed, x):
    # x: [B, 1, 28, 28] (NCHW) -> logits [B, 10]
    B = x.shape[0]
    n_tiles = (B + BT - 1) // BT
    p1 = _build_patches(x, n_tiles)             # de-replicated im2col (~74 KB/image)
    out = _fused_forward(p1, packed, n_tiles)   # [n_tiles*BT, 16]
    return out[:B, :10]


@jax.jit
def reference_forward(params, x):
    # Pure-JAX reference of the PyTorch forward for correctness checking.
    y = lax.conv_general_dilated(x, params["conv1_w"], (1, 1), "VALID",
                                 dimension_numbers=("NCHW", "OIHW", "NCHW"))
    y = jnp.maximum(y + params["conv1_b"][None, :, None, None], 0.0)
    y = lax.reduce_window(y, -jnp.inf, lax.max, (1, 1, 2, 2), (1, 1, 2, 2), "VALID")
    y = lax.conv_general_dilated(y, params["conv2_w"], (1, 1), "VALID",
                                 dimension_numbers=("NCHW", "OIHW", "NCHW"))
    y = jnp.maximum(y + params["conv2_b"][None, :, None, None], 0.0)
    y = lax.reduce_window(y, -jnp.inf, lax.max, (1, 1, 2, 2), (1, 1, 2, 2), "VALID")
    y = y.reshape(y.shape[0], -1)
    y = jnp.maximum(y @ params["fc1_w"].T + params["fc1_b"], 0.0)
    y = jnp.maximum(y @ params["fc2_w"].T + params["fc2_b"], 0.0)
    return y @ params["fc3_w"].T + params["fc3_b"]


if __name__ == "__main__":
    key = jax.random.PRNGKey(0)
    pkey, xkey = jax.random.split(key)
    params = init_params(pkey)
    packed = pack_params(params)                # one-time packing, outside hot path

    # 28x28 single-channel input is required by the 16*4*4 flatten in the module.
    B = 2
    x = jax.random.normal(xkey, (B, 1, 28, 28), jnp.float32)

    out = jax.block_until_ready(fashion_net_forward(packed, x))
    assert out.shape == (B, 10) and out.dtype == jnp.float32

    ref = jax.block_until_ready(reference_forward(params, x))
    max_diff = float(jnp.max(jnp.abs(out - ref)))
    assert jnp.allclose(out, ref, atol=2e-3, rtol=2e-3), (
        f"mismatch vs reference, max|diff|={max_diff}")

    print("KERNEL_OK")
</pallas_src>

<mosaic_0001>
module attributes {stable_mosaic.version = 11 : i64} {
  func.func @_fused_kernel(%arg0: i32, %arg1: memref<32x4608xf32, #tpu.memory_space<vmem>>, %arg2: memref<8x32xf32, #tpu.memory_space<vmem>>, %arg3: memref<16x200xf32, #tpu.memory_space<vmem>>, %arg4: memref<16x1xf32, #tpu.memory_space<vmem>>, %arg5: memref<128x256xf32, #tpu.memory_space<vmem>>, %arg6: memref<128x1xf32, #tpu.memory_space<vmem>>, %arg7: memref<128x128xf32, #tpu.memory_space<vmem>>, %arg8: memref<1x128xf32, #tpu.memory_space<vmem>>, %arg9: memref<128x16xf32, #tpu.memory_space<vmem>>, %arg10: memref<1x16xf32, #tpu.memory_space<vmem>>, %arg11: memref<8x16xf32, #tpu.memory_space<vmem>>, %arg12: memref<200x512xf32, #tpu.memory_space<vmem>>) attributes {dimension_semantics = [#tpu.dimension_semantics<parallel>], iteration_bounds = array<i64: 1>, scalar_prefetch = 0 : i64, scratch_operands = 1 : i64, tpu.core_type = #tpu.core_type<tc>, window_params = [{transform_indices = @transform_0, window_bounds = array<i64: 32, 4608>}, {pipeline_mode = #tpu.pipeline_mode<synchronous>, transform_indices = @transform_1, window_bounds = array<i64: 8, 32>}, {pipeline_mode = #tpu.pipeline_mode<synchronous>, transform_indices = @transform_2, window_bounds = array<i64: 16, 200>}, {pipeline_mode = #tpu.pipeline_mode<synchronous>, transform_indices = @transform_3, window_bounds = array<i64: 16, 1>}, {pipeline_mode = #tpu.pipeline_mode<synchronous>, transform_indices = @transform_4, window_bounds = array<i64: 128, 256>}, {pipeline_mode = #tpu.pipeline_mode<synchronous>, transform_indices = @transform_5, window_bounds = array<i64: 128, 1>}, {pipeline_mode = #tpu.pipeline_mode<synchronous>, transform_indices = @transform_6, window_bounds = array<i64: 128, 128>}, {pipeline_mode = #tpu.pipeline_mode<synchronous>, transform_indices = @transform_7, window_bounds = array<i64: 1, 128>}, {pipeline_mode = #tpu.pipeline_mode<synchronous>, transform_indices = @transform_8, window_bounds = array<i64: 128, 16>}, {pipeline_mode = #tpu.pipeline_mode<synchronous>, transform_indices = @transform_9, window_bounds = array<i64: 1, 16>}, {transform_indices = @transform_10, window_bounds = array<i64: 8, 16>}]} {
    %c0 = arith.constant 0 : index
    %c0_0 = arith.constant 0 : index
    %0 = vector.load %arg2[%c0, %c0_0] : memref<8x32xf32, #tpu.memory_space<vmem>>, vector<8x32xf32>
    %c0_1 = arith.constant 0 : index
    %c0_2 = arith.constant 0 : index
    %1 = vector.load %arg1[%c0_1, %c0_2] : memref<32x4608xf32, #tpu.memory_space<vmem>>, vector<32x4608xf32>
    %cst = arith.constant dense<0.000000e+00> : vector<8x4608xf32>
    %2 = tpu.matmul %0, %1, %cst {dimension_numbers = #tpu.dot_dimension_numbers<[1], [0], [0], [1], [0, 0, 1, 1], [], []>} : vector<8x32xf32>, vector<32x4608xf32>, vector<8x4608xf32> -> vector<8x4608xf32>
    %3 = vector.extract_strided_slice %2 {offsets = [0, 0], sizes = [8, 1152], strides = [1, 1]} : vector<8x4608xf32> to vector<8x1152xf32>
    %4 = vector.extract_strided_slice %2 {offsets = [0, 1152], sizes = [8, 1152], strides = [1, 1]} : vector<8x4608xf32> to vector<8x1152xf32>
    %5 = arith.maximumf %3, %4 : vector<8x1152xf32>
    %6 = vector.extract_strided_slice %2 {offsets = [0, 2304], sizes = [8, 1152], strides = [1, 1]} : vector<8x4608xf32> to vector<8x1152xf32>
    %7 = vector.extract_strided_slice %2 {offsets = [0, 3456], sizes = [8, 1152], strides = [1, 1]} : vector<8x4608xf32> to vector<8x1152xf32>
    %8 = arith.maximumf %6, %7 : vector<8x1152xf32>
    %9 = arith.maximumf %5, %8 : vector<8x1152xf32>
    %cst_3 = arith.constant 0.000000e+00 : f32
    %10 = vector.broadcast %cst_3 : f32 to vector<8x1152xf32>
    %11 = arith.maximumf %9, %10 : vector<8x1152xf32>
    %12 = vector.extract_strided_slice %11 {offsets = [0, 0], sizes = [8, 768], strides = [1, 1]} : vector<8x1152xf32> to vector<8x768xf32>
    %13 = vector.extract_strided_slice %11 {offsets = [0, 96], sizes = [8, 768], strides = [1, 1]} : vector<8x1152xf32> to vector<8x768xf32>
    %14 = vector.extract_strided_slice %11 {offsets = [0, 192], sizes = [8, 768], strides = [1, 1]} : vector<8x1152xf32> to vector<8x768xf32>
    %15 = vector.extract_strided_slice %11 {offsets = [0, 288], sizes = [8, 768], strides = [1, 1]} : vector<8x1152xf32> to vector<8x768xf32>
    %16 = vector.extract_strided_slice %11 {offsets = [0, 384], sizes = [8, 768], strides = [1, 1]} : vector<8x1152xf32> to vector<8x768xf32>
    %17 = tpu.concatenate %12, %13, %14, %15, %16 in 0 : vector<8x768xf32>, vector<8x768xf32>, vector<8x768xf32>, vector<8x768xf32>, vector<8x768xf32> -> vector<40x768xf32>
    %18 = vector.extract_strided_slice %17 {offsets = [0, 0], sizes = [40, 64], strides = [1, 1]} : vector<40x768xf32> to vector<40x64xf32>
    %c0_4 = arith.constant 0 : index
    %c0_5 = arith.constant 0 : index
    %19 = vector.load %arg12[%c0_4, %c0_5] : memref<200x512xf32, #tpu.memory_space<vmem>>, vector<40x64xf32>
    tpu.vector_store %arg12[%c0_4, %c0_5], %18 {strides = array<i32>} : memref<200x512xf32, #tpu.memory_space<vmem>>, vector<40x64xf32>,
    %20 = vector.extract_strided_slice %17 {offsets = [0, 96], sizes = [40, 64], strides = [1, 1]} : vector<40x768xf32> to vector<40x64xf32>
    %c0_6 = arith.constant 0 : index
    %c64 = arith.constant 64 : index
    %21 = vector.load %arg12[%c0_6, %c64] : memref<200x512xf32, #tpu.memory_space<vmem>>, vector<40x64xf32>
    tpu.vector_store %arg12[%c0_6, %c64], %20 {strides = array<i32>} : memref<200x512xf32, #tpu.memory_space<vmem>>, vector<40x64xf32>,
    %22 = vector.extract_strided_slice %17 {offsets = [0, 192], sizes = [40, 64], strides = [1, 1]} : vector<40x768xf32> to vector<40x64xf32>
    %c0_7 = arith.constant 0 : index
    %c128 = arith.constant 128 : index
    %23 = vector.load %arg12[%c0_7, %c128] : memref<200x512xf32, #tpu.memory_space<vmem>>, vector<40x64xf32>
    tpu.vector_store %arg12[%c0_7, %c128], %22 {strides = array<i32>} : memref<200x512xf32, #tpu.memory_space<vmem>>, vector<40x64xf32>,
    %24 = vector.extract_strided_slice %17 {offsets = [0, 288], sizes = [40, 64], strides = [1, 1]} : vector<40x768xf32> to vector<40x64xf32>
    %c0_8 = arith.constant 0 : index
    %c192 = arith.constant 192 : index
    %25 = vector.load %arg12[%c0_8, %c192] : memref<200x512xf32, #tpu.memory_space<vmem>>, vector<40x64xf32>
    tpu.vector_store %arg12[%c0_8, %c192], %24 {strides = array<i32>} : memref<200x512xf32, #tpu.memory_space<vmem>>, vector<40x64xf32>,
    %26 = vector.extract_strided_slice %17 {offsets = [0, 384], sizes = [40, 64], strides = [1, 1]} : vector<40x768xf32> to vector<40x64xf32>
    %c0_9 = arith.constant 0 : index
    %c256 = arith.constant 256 : index
    %27 = vector.load %arg12[%c0_9, %c256] : memref<200x512xf32, #tpu.memory_space<vmem>>, vector<40x64xf32>
    tpu.vector_store %arg12[%c0_9, %c256], %26 {strides = array<i32>} : memref<200x512xf32, #tpu.memory_space<vmem>>, vector<40x64xf32>,
    %28 = vector.extract_strided_slice %17 {offsets = [0, 480], sizes = [40, 64], strides = [1, 1]} : vector<40x768xf32> to vector<40x64xf32>
    %c0_10 = arith.constant 0 : index
    %c320 = arith.constant 320 : index
    %29 = vector.load %arg12[%c0_10, %c320] : memref<200x512xf32, #tpu.memory_space<vmem>>, vector<40x64xf32>
    tpu.vector_store %arg12[%c0_10, %c320], %28 {strides = array<i32>} : memref<200x512xf32, #tpu.memory_space<vmem>>, vector<40x64xf32>,
    %30 = vector.extract_strided_slice %17 {offsets = [0, 576], sizes = [40, 64], strides = [1, 1]} : vector<40x768xf32> to vector<40x64xf32>
    %c0_11 = arith.constant 0 : index
    %c384 = arith.constant 384 : index
    %31 = vector.load %arg12[%c0_11, %c384] : memref<200x512xf32, #tpu.memory_space<vmem>>, vector<40x64xf32>
    tpu.vector_store %arg12[%c0_11, %c384], %30 {strides = array<i32>} : memref<200x512xf32, #tpu.memory_space<vmem>>, vector<40x64xf32>,
    %32 = vector.extract_strided_slice %17 {offsets = [0, 672], sizes = [40, 64], strides = [1, 1]} : vector<40x768xf32> to vector<40x64xf32>
    %c0_12 = arith.constant 0 : index
    %c448 = arith.constant 448 : index
    %33 = vector.load %arg12[%c0_12, %c448] : memref<200x512xf32, #tpu.memory_space<vmem>>, vector<40x64xf32>
    tpu.vector_store %arg12[%c0_12, %c448], %32 {strides = array<i32>} : memref<200x512xf32, #tpu.memory_space<vmem>>, vector<40x64xf32>,
    %34 = vector.extract_strided_slice %17 {offsets = [0, 8], sizes = [40, 64], strides = [1, 1]} : vector<40x768xf32> to vector<40x64xf32>
    %c40 = arith.constant 40 : index
    %c0_13 = arith.constant 0 : index
    %35 = vector.load %arg12[%c40, %c0_13] : memref<200x512xf32, #tpu.memory_space<vmem>>, vector<40x64xf32>
    tpu.vector_store %arg12[%c40, %c0_13], %34 {strides = array<i32>} : memref<200x512xf32, #tpu.memory_space<vmem>>, vector<40x64xf32>,
    %36 = vector.extract_strided_slice %17 {offsets = [0, 104], sizes = [40, 64], strides = [1, 1]} : vector<40x768xf32> to vector<40x64xf32>
    %c40_14 = arith.constant 40 : index
    %c64_15 = arith.constant 64 : index
    %37 = vector.load %arg12[%c40_14, %c64_15] : memref<200x512xf32, #tpu.memory_space<vmem>>, vector<40x64xf32>
    tpu.vector_store %arg12[%c40_14, %c64_15], %36 {strides = array<i32>} : memref<200x512xf32, #tpu.memory_space<vmem>>, vector<40x64xf32>,
    %38 = vector.extract_strided_slice %17 {offsets = [0, 200], sizes = [40, 64], strides = [1, 1]} : vector<40x768xf32> to vector<40x64xf32>
    %c40_16 = arith.constant 40 : index
    %c128_17 = arith.constant 128 : index
    %39 = vector.load %arg12[%c40_16, %c128_17] : memref<200x512xf32, #tpu.memory_space<vmem>>, vector<40x64xf32>
    tpu.vector_store %arg12[%c40_16, %c128_17], %38 {strides = array<i32>} : memref<200x512xf32, #tpu.memory_space<vmem>>, vector<40x64xf32>,
    %40 = vector.extract_strided_slice %17 {offsets = [0, 296], sizes = [40, 64], strides = [1, 1]} : vector<40x768xf32> to vector<40x64xf32>
    %c40_18 = arith.constant 40 : index
    %c192_19 = arith.constant 192 : index
    %41 = vector.load %arg12[%c40_18, %c192_19] : memref<200x512xf32, #tpu.memory_space<vmem>>, vector<40x64xf32>
    tpu.vector_store %arg12[%c40_18, %c192_19], %40 {strides = array<i32>} : memref<200x512xf32, #tpu.memory_space<vmem>>, vector<40x64xf32>,
    %42 = vector.extract_strided_slice %17 {offsets = [0, 392], sizes = [40, 64], strides = [1, 1]} : vector<40x768xf32> to vector<40x64xf32>
    %c40_20 = arith.constant 40 : index
    %c256_21 = arith.constant 256 : index
    %43 = vector.load %arg12[%c40_20, %c256_21] : memref<200x512xf32, #tpu.memory_space<vmem>>, vector<40x64xf32>
    tpu.vector_store %arg12[%c40_20, %c256_21], %42 {strides = array<i32>} : memref<200x512xf32, #tpu.memory_space<vmem>>, vector<40x64xf32>,
    %44 = vector.extract_strided_slice %17 {offsets = [0, 488], sizes = [40, 64], strides = [1, 1]} : vector<40x768xf32> to vector<40x64xf32>
    %c40_22 = arith.constant 40 : index
    %c320_23 = arith.constant 320 : index
    %45 = vector.load %arg12[%c40_22, %c320_23] : memref<200x512xf32, #tpu.memory_space<vmem>>, vector<40x64xf32>
    tpu.vector_store %arg12[%c40_22, %c320_23], %44 {strides = array<i32>} : memref<200x512xf32, #tpu.memory_space<vmem>>, vector<40x64xf32>,
    %46 = vector.extract_strided_slice %17 {offsets = [0, 584], sizes = [40, 64], strides = [1, 1]} : vector<40x768xf32> to vector<40x64xf32>
    %c40_24 = arith.constant 40 : index
    %c384_25 = arith.constant 384 : index
    %47 = vector.load %arg12[%c40_24, %c384_25] : memref<200x512xf32, #tpu.memory_space<vmem>>, vector<40x64xf32>
    tpu.vector_store %arg12[%c40_24, %c384_25], %46 {strides = array<i32>} : memref<200x512xf32, #tpu.memory_space<vmem>>, vector<40x64xf32>,
    %48 = vector.extract_strided_slice %17 {offsets = [0, 680], sizes = [40, 64], strides = [1, 1]} : vector<40x768xf32> to vector<40x64xf32>
    %c40_26 = arith.constant 40 : index
    %c448_27 = arith.constant 448 : index
    %49 = vector.load %arg12[%c40_26, %c448_27] : memref<200x512xf32, #tpu.memory_space<vmem>>, vector<40x64xf32>
    tpu.vector_store %arg12[%c40_26, %c448_27], %48 {strides = array<i32>} : memref<200x512xf32, #tpu.memory_space<vmem>>, vector<40x64xf32>,
    %50 = vector.extract_strided_slice %17 {offsets = [0, 16], sizes = [40, 64], strides = [1, 1]} : vector<40x768xf32> to vector<40x64xf32>
    %c80 = arith.constant 80 : index
    %c0_28 = arith.constant 0 : index
    %51 = vector.load %arg12[%c80, %c0_28] : memref<200x512xf32, #tpu.memory_space<vmem>>, vector<40x64xf32>
    tpu.vector_store %arg12[%c80, %c0_28], %50 {strides = array<i32>} : memref<200x512xf32, #tpu.memory_space<vmem>>, vector<40x64xf32>,
    %52 = vector.extract_strided_slice %17 {offsets = [0, 112], sizes = [40, 64], strides = [1, 1]} : vector<40x768xf32> to vector<40x64xf32>
    %c80_29 = arith.constant 80 : index
    %c64_30 = arith.constant 64 : index
    %53 = vector.load %arg12[%c80_29, %c64_30] : memref<200x512xf32, #tpu.memory_space<vmem>>, vector<40x64xf32>
    tpu.vector_store %arg12[%c80_29, %c64_30], %52 {strides = array<i32>} : memref<200x512xf32, #tpu.memory_space<vmem>>, vector<40x64xf32>,
    %54 = vector.extract_strided_slice %17 {offsets = [0, 208], sizes = [40, 64], strides = [1, 1]} : vector<40x768xf32> to vector<40x64xf32>
    %c80_31 = arith.constant 80 : index
    %c128_32 = arith.constant 128 : index
    %55 = vector.load %arg12[%c80_31, %c128_32] : memref<200x512xf32, #tpu.memory_space<vmem>>, vector<40x64xf32>
    tpu.vector_store %arg12[%c80_31, %c128_32], %54 {strides = array<i32>} : memref<200x512xf32, #tpu.memory_space<vmem>>, vector<40x64xf32>,
    %56 = vector.extract_strided_slice %17 {offsets = [0, 304], sizes = [40, 64], strides = [1, 1]} : vector<40x768xf32> to vector<40x64xf32>
    %c80_33 = arith.constant 80 : index
    %c192_34 = arith.constant 192 : index
    %57 = vector.load %arg12[%c80_33, %c192_34] : memref<200x512xf32, #tpu.memory_space<vmem>>, vector<40x64xf32>
    tpu.vector_store %arg12[%c80_33, %c192_34], %56 {strides = array<i32>} : memref<200x512xf32, #tpu.memory_space<vmem>>, vector<40x64xf32>,
    %58 = vector.extract_strided_slice %17 {offsets = [0, 400], sizes = [40, 64], strides = [1, 1]} : vector<40x768xf32> to vector<40x64xf32>
    %c80_35 = arith.constant 80 : index
    %c256_36 = arith.constant 256 : index
    %59 = vector.load %arg12[%c80_35, %c256_36] : memref<200x512xf32, #tpu.memory_space<vmem>>, vector<40x64xf32>
    tpu.vector_store %arg12[%c80_35, %c256_36], %58 {strides = array<i32>} : memref<200x512xf32, #tpu.memory_space<vmem>>, vector<40x64xf32>,
    %60 = vector.extract_strided_slice %17 {offsets = [0, 496], sizes = [40, 64], strides = [1, 1]} : vector<40x768xf32> to vector<40x64xf32>
    %c80_37 = arith.constant 80 : index
    %c320_38 = arith.constant 320 : index
    %61 = vector.load %arg12[%c80_37, %c320_38] : memref<200x512xf32, #tpu.memory_space<vmem>>, vector<40x64xf32>
    tpu.vector_store %arg12[%c80_37, %c320_38], %60 {strides = array<i32>} : memref<200x512xf32, #tpu.memory_space<vmem>>, vector<40x64xf32>,
    %62 = vector.extract_strided_slice %17 {offsets = [0, 592], sizes = [40, 64], strides = [1, 1]} : vector<40x768xf32> to vector<40x64xf32>
    %c80_39 = arith.constant 80 : index
    %c384_40 = arith.constant 384 : index
    %63 = vector.load %arg12[%c80_39, %c384_40] : memref<200x512xf32, #tpu.memory_space<vmem>>, vector<40x64xf32>
    tpu.vector_store %arg12[%c80_39, %c384_40], %62 {strides = array<i32>} : memref<200x512xf32, #tpu.memory_space<vmem>>, vector<40x64xf32>,
    %64 = vector.extract_strided_slice %17 {offsets = [0, 688], sizes = [40, 64], strides = [1, 1]} : vector<40x768xf32> to vector<40x64xf32>
    %c80_41 = arith.constant 80 : index
    %c448_42 = arith.constant 448 : index
    %65 = vector.load %arg12[%c80_41, %c448_42] : memref<200x512xf32, #tpu.memory_space<vmem>>, vector<40x64xf32>
    tpu.vector_store %arg12[%c80_41, %c448_42], %64 {strides = array<i32>} : memref<200x512xf32, #tpu.memory_space<vmem>>, vector<40x64xf32>,
    %66 = vector.extract_strided_slice %17 {offsets = [0, 24], sizes = [40, 64], strides = [1, 1]} : vector<40x768xf32> to vector<40x64xf32>
    %c120 = arith.constant 120 : index
    %c0_43 = arith.constant 0 : index
    %67 = vector.load %arg12[%c120, %c0_43] : memref<200x512xf32, #tpu.memory_space<vmem>>, vector<40x64xf32>
    tpu.vector_store %arg12[%c120, %c0_43], %66 {strides = array<i32>} : memref<200x512xf32, #tpu.memory_space<vmem>>, vector<40x64xf32>,
    %68 = vector.extract_strided_slice %17 {offsets = [0, 120], sizes = [40, 64], strides = [1, 1]} : vector<40x768xf32> to vector<40x64xf32>
    %c120_44 = arith.constant 120 : index
    %c64_45 = arith.constant 64 : index
    %69 = vector.load %arg12[%c120_44, %c64_45] : memref<200x512xf32, #tpu.memory_space<vmem>>, vector<40x64xf32>
    tpu.vector_store %arg12[%c120_44, %c64_45], %68 {strides = array<i32>} : memref<200x512xf32, #tpu.memory_space<vmem>>, vector<40x64xf32>,
    %70 = vector.extract_strided_slice %17 {offsets = [0, 216], sizes = [40, 64], strides = [1, 1]} : vector<40x768xf32> to vector<40x64xf32>
    %c120_46 = arith.constant 120 : index
    %c128_47 = arith.constant 128 : index
    %71 = vector.load %arg12[%c120_46, %c128_47] : memref<200x512xf32, #tpu.memory_space<vmem>>, vector<40x64xf32>
    tpu.vector_store %arg12[%c120_46, %c128_47], %70 {strides = array<i32>} : memref<200x512xf32, #tpu.memory_space<vmem>>, vector<40x64xf32>,
    %72 = vector.extract_strided_slice %17 {offsets = [0, 312], sizes = [40, 64], strides = [1, 1]} : vector<40x768xf32> to vector<40x64xf32>
    %c120_48 = arith.constant 120 : index
    %c192_49 = arith.constant 192 : index
    %73 = vector.load %arg12[%c120_48, %c192_49] : memref<200x512xf32, #tpu.memory_space<vmem>>, vector<40x64xf32>
    tpu.vector_store %arg12[%c120_48, %c192_49], %72 {strides = array<i32>} : memref<200x512xf32, #tpu.memory_space<vmem>>, vector<40x64xf32>,
    %74 = vector.extract_strided_slice %17 {offsets = [0, 408], sizes = [40, 64], strides = [1, 1]} : vector<40x768xf32> to vector<40x64xf32>
    %c120_50 = arith.constant 120 : index
    %c256_51 = arith.constant 256 : index
    %75 = vector.load %arg12[%c120_50, %c256_51] : memref<200x512xf32, #tpu.memory_space<vmem>>, vector<40x64xf32>
    tpu.vector_store %arg12[%c120_50, %c256_51], %74 {strides = array<i32>} : memref<200x512xf32, #tpu.memory_space<vmem>>, vector<40x64xf32>,
    %76 = vector.extract_strided_slice %17 {offsets = [0, 504], sizes = [40, 64], strides = [1, 1]} : vector<40x768xf32> to vector<40x64xf32>
    %c120_52 = arith.constant 120 : index
    %c320_53 = arith.constant 320 : index
    %77 = vector.load %arg12[%c120_52, %c320_53] : memref<200x512xf32, #tpu.memory_space<vmem>>, vector<40x64xf32>
    tpu.vector_store %arg12[%c120_52, %c320_53], %76 {strides = array<i32>} : memref<200x512xf32, #tpu.memory_space<vmem>>, vector<40x64xf32>,
    %78 = vector.extract_strided_slice %17 {offsets = [0, 600], sizes = [40, 64], strides = [1, 1]} : vector<40x768xf32> to vector<40x64xf32>
    %c120_54 = arith.constant 120 : index
    %c384_55 = arith.constant 384 : index
    %79 = vector.load %arg12[%c120_54, %c384_55] : memref<200x512xf32, #tpu.memory_space<vmem>>, vector<40x64xf32>
    tpu.vector_store %arg12[%c120_54, %c384_55], %78 {strides = array<i32>} : memref<200x512xf32, #tpu.memory_space<vmem>>, vector<40x64xf32>,
    %80 = vector.extract_strided_slice %17 {offsets = [0, 696], sizes = [40, 64], strides = [1, 1]} : vector<40x768xf32> to vector<40x64xf32>
    %c120_56 = arith.constant 120 : index
    %c448_57 = arith.constant 448 : index
    %81 = vector.load %arg12[%c120_56, %c448_57] : memref<200x512xf32, #tpu.memory_space<vmem>>, vector<40x64xf32>
    tpu.vector_store %arg12[%c120_56, %c448_57], %80 {strides = array<i32>} : memref<200x512xf32, #tpu.memory_space<vmem>>, vector<40x64xf32>,
    %82 = vector.extract_strided_slice %17 {offsets = [0, 32], sizes = [40, 64], strides = [1, 1]} : vector<40x768xf32> to vector<40x64xf32>
    %c160 = arith.constant 160 : index
    %c0_58 = arith.constant 0 : index
    %83 = vector.load %arg12[%c160, %c0_58] : memref<200x512xf32, #tpu.memory_space<vmem>>, vector<40x64xf32>
    tpu.vector_store %arg12[%c160, %c0_58], %82 {strides = array<i32>} : memref<200x512xf32, #tpu.memory_space<vmem>>, vector<40x64xf32>,
    %84 = vector.extract_strided_slice %17 {offsets = [0, 128], sizes = [40, 64], strides = [1, 1]} : vector<40x768xf32> to vector<40x64xf32>
    %c160_59 = arith.constant 160 : index
    %c64_60 = arith.constant 64 : index
    %85 = vector.load %arg12[%c160_59, %c64_60] : memref<200x512xf32, #tpu.memory_space<vmem>>, vector<40x64xf32>
    tpu.vector_store %arg12[%c160_59, %c64_60], %84 {strides = array<i32>} : memref<200x512xf32, #tpu.memory_space<vmem>>, vector<40x64xf32>,
    %86 = vector.extract_strided_slice %17 {offsets = [0, 224], sizes = [40, 64], strides = [1, 1]} : vector<40x768xf32> to vector<40x64xf32>
    %c160_61 = arith.constant 160 : index
    %c128_62 = arith.constant 128 : index
    %87 = vector.load %arg12[%c160_61, %c128_62] : memref<200x512xf32, #tpu.memory_space<vmem>>, vector<40x64xf32>
    tpu.vector_store %arg12[%c160_61, %c128_62], %86 {strides = array<i32>} : memref<200x512xf32, #tpu.memory_space<vmem>>, vector<40x64xf32>,
    %88 = vector.extract_strided_slice %17 {offsets = [0, 320], sizes = [40, 64], strides = [1, 1]} : vector<40x768xf32> to vector<40x64xf32>
    %c160_63 = arith.constant 160 : index
    %c192_64 = arith.constant 192 : index
    %89 = vector.load %arg12[%c160_63, %c192_64] : memref<200x512xf32, #tpu.memory_space<vmem>>, vector<40x64xf32>
    tpu.vector_store %arg12[%c160_63, %c192_64], %88 {strides = array<i32>} : memref<200x512xf32, #tpu.memory_space<vmem>>, vector<40x64xf32>,
    %90 = vector.extract_strided_slice %17 {offsets = [0, 416], sizes = [40, 64], strides = [1, 1]} : vector<40x768xf32> to vector<40x64xf32>
    %c160_65 = arith.constant 160 : index
    %c256_66 = arith.constant 256 : index
    %91 = vector.load %arg12[%c160_65, %c256_66] : memref<200x512xf32, #tpu.memory_space<vmem>>, vector<40x64xf32>
    tpu.vector_store %arg12[%c160_65, %c256_66], %90 {strides = array<i32>} : memref<200x512xf32, #tpu.memory_space<vmem>>, vector<40x64xf32>,
    %92 = vector.extract_strided_slice %17 {offsets = [0, 512], sizes = [40, 64], strides = [1, 1]} : vector<40x768xf32> to vector<40x64xf32>
    %c160_67 = arith.constant 160 : index
    %c320_68 = arith.constant 320 : index
    %93 = vector.load %arg12[%c160_67, %c320_68] : memref<200x512xf32, #tpu.memory_space<vmem>>, vector<40x64xf32>
    tpu.vector_store %arg12[%c160_67, %c320_68], %92 {strides = array<i32>} : memref<200x512xf32, #tpu.memory_space<vmem>>, vector<40x64xf32>,
    %94 = vector.extract_strided_slice %17 {offsets = [0, 608], sizes = [40, 64], strides = [1, 1]} : vector<40x768xf32> to vector<40x64xf32>
    %c160_69 = arith.constant 160 : index
    %c384_70 = arith.constant 384 : index
    %95 = vector.load %arg12[%c160_69, %c384_70] : memref<200x512xf32, #tpu.memory_space<vmem>>, vector<40x64xf32>
    tpu.vector_store %arg12[%c160_69, %c384_70], %94 {strides = array<i32>} : memref<200x512xf32, #tpu.memory_space<vmem>>, vector<40x64xf32>,
    %96 = vector.extract_strided_slice %17 {offsets = [0, 704], sizes = [40, 64], strides = [1, 1]} : vector<40x768xf32> to vector<40x64xf32>
    %c160_71 = arith.constant 160 : index
    %c448_72 = arith.constant 448 : index
    %97 = vector.load %arg12[%c160_71, %c448_72] : memref<200x512xf32, #tpu.memory_space<vmem>>, vector<40x64xf32>
    tpu.vector_store %arg12[%c160_71, %c448_72], %96 {strides = array<i32>} : memref<200x512xf32, #tpu.memory_space<vmem>>, vector<40x64xf32>,
    %c0_73 = arith.constant 0 : index
    %c0_74 = arith.constant 0 : index
    %98 = vector.load %arg3[%c0_73, %c0_74] : memref<16x200xf32, #tpu.memory_space<vmem>>, vector<16x200xf32>
    %c0_75 = arith.constant 0 : index
    %c0_76 = arith.constant 0 : index
    %99 = vector.load %arg12[%c0_75, %c0_76] : memref<200x512xf32, #tpu.memory_space<vmem>>, vector<200x512xf32>
    %cst_77 = arith.constant dense<0.000000e+00> : vector<16x512xf32>
    %100 = tpu.matmul %98, %99, %cst_77 {dimension_numbers = #tpu.dot_dimension_numbers<[1], [0], [0], [1], [0, 0, 1, 1], [], []>} : vector<16x200xf32>, vector<200x512xf32>, vector<16x512xf32> -> vector<16x512xf32>
    %c0_78 = arith.constant 0 : index
    %c0_79 = arith.constant 0 : index
    %101 = vector.load %arg4[%c0_78, %c0_79] : memref<16x1xf32, #tpu.memory_space<vmem>>, vector<16x1xf32>
    %102 = vector.broadcast %101 : vector<16x1xf32> to vector<16x512xf32>
    %103 = arith.addf %100, %102 : vector<16x512xf32>
    %cst_80 = arith.constant 0.000000e+00 : f32
    %104 = vector.broadcast %cst_80 : f32 to vector<16x512xf32>
    %105 = arith.maximumf %103, %104 : vector<16x512xf32>
    %106 = vector.extract_strided_slice %105 {offsets = [0, 0], sizes = [16, 8], strides = [1, 1]} : vector<16x512xf32> to vector<16x8xf32>
    %107 = vector.extract_strided_slice %105 {offsets = [0, 8], sizes = [16, 8], strides = [1, 1]} : vector<16x512xf32> to vector<16x8xf32>
    %108 = arith.maximumf %106, %107 : vector<16x8xf32>
    %109 = vector.extract_strided_slice %105 {offsets = [0, 64], sizes = [16, 8], strides = [1, 1]} : vector<16x512xf32> to vector<16x8xf32>
    %110 = vector.extract_strided_slice %105 {offsets = [0, 72], sizes = [16, 8], strides = [1, 1]} : vector<16x512xf32> to vector<16x8xf32>
    %111 = arith.maximumf %109, %110 : vector<16x8xf32>
    %112 = arith.maximumf %108, %111 : vector<16x8xf32>
    %113 = vector.extract_strided_slice %105 {offsets = [0, 16], sizes = [16, 8], strides = [1, 1]} : vector<16x512xf32> to vector<16x8xf32>
    %114 = vector.extract_strided_slice %105 {offsets = [0, 24], sizes = [16, 8], strides = [1, 1]} : vector<16x512xf32> to vector<16x8xf32>
    %115 = arith.maximumf %113, %114 : vector<16x8xf32>
    %116 = vector.extract_strided_slice %105 {offsets = [0, 80], sizes = [16, 8], strides = [1, 1]} : vector<16x512xf32> to vector<16x8xf32>
    %117 = vector.extract_strided_slice %105 {offsets = [0, 88], sizes = [16, 8], strides = [1, 1]} : vector<16x512xf32> to vector<16x8xf32>
    %118 = arith.maximumf %116, %117 : vector<16x8xf32>
    %119 = arith.maximumf %115, %118 : vector<16x8xf32>
    %120 = vector.extract_strided_slice %105 {offsets = [0, 32], sizes = [16, 8], strides = [1, 1]} : vector<16x512xf32> to vector<16x8xf32>
    %121 = vector.extract_strided_slice %105 {offsets = [0, 40], sizes = [16, 8], strides = [1, 1]} : vector<16x512xf32> to vector<16x8xf32>
    %122 = arith.maximumf %120, %121 : vector<16x8xf32>
    %123 = vector.extract_strided_slice %105 {offsets = [0, 96], sizes = [16, 8], strides = [1, 1]} : vector<16x512xf32> to vector<16x8xf32>
    %124 = vector.extract_strided_slice %105 {offsets = [0, 104], sizes = [16, 8], strides = [1, 1]} : vector<16x512xf32> to vector<16x8xf32>
    %125 = arith.maximumf %123, %124 : vector<16x8xf32>
    %126 = arith.maximumf %122, %125 : vector<16x8xf32>
    %127 = vector.extract_strided_slice %105 {offsets = [0, 48], sizes = [16, 8], strides = [1, 1]} : vector<16x512xf32> to vector<16x8xf32>
    %128 = vector.extract_strided_slice %105 {offsets = [0, 56], sizes = [16, 8], strides = [1, 1]} : vector<16x512xf32> to vector<16x8xf32>
    %129 = arith.maximumf %127, %128 : vector<16x8xf32>
    %130 = vector.extract_strided_slice %105 {offsets = [0, 112], sizes = [16, 8], strides = [1, 1]} : vector<16x512xf32> to vector<16x8xf32>
    %131 = vector.extract_strided_slice %105 {offsets = [0, 120], sizes = [16, 8], strides = [1, 1]} : vector<16x512xf32> to vector<16x8xf32>
    %132 = arith.maximumf %130, %131 : vector<16x8xf32>
    %133 = arith.maximumf %129, %132 : vector<16x8xf32>
    %134 = vector.extract_strided_slice %105 {offsets = [0, 128], sizes = [16, 8], strides = [1, 1]} : vector<16x512xf32> to vector<16x8xf32>
    %135 = vector.extract_strided_slice %105 {offsets = [0, 136], sizes = [16, 8], strides = [1, 1]} : vector<16x512xf32> to vector<16x8xf32>
    %136 = arith.maximumf %134, %135 : vector<16x8xf32>
    %137 = vector.extract_strided_slice %105 {offsets = [0, 192], sizes = [16, 8], strides = [1, 1]} : vector<16x512xf32> to vector<16x8xf32>
    %138 = vector.extract_strided_slice %105 {offsets = [0, 200], sizes = [16, 8], strides = [1, 1]} : vector<16x512xf32> to vector<16x8xf32>
    %139 = arith.maximumf %137, %138 : vector<16x8xf32>
    %140 = arith.maximumf %136, %139 : vector<16x8xf32>
    %141 = vector.extract_strided_slice %105 {offsets = [0, 144], sizes = [16, 8], strides = [1, 1]} : vector<16x512xf32> to vector<16x8xf32>
    %142 = vector.extract_strided_slice %105 {offsets = [0, 152], sizes = [16, 8], strides = [1, 1]} : vector<16x512xf32> to vector<16x8xf32>
    %143 = arith.maximumf %141, %142 : vector<16x8xf32>
    %144 = vector.extract_strided_slice %105 {offsets = [0, 208], sizes = [16, 8], strides = [1, 1]} : vector<16x512xf32> to vector<16x8xf32>
    %145 = vector.extract_strided_slice %105 {offsets = [0, 216], sizes = [16, 8], strides = [1, 1]} : vector<16x512xf32> to vector<16x8xf32>
    %146 = arith.maximumf %144, %145 : vector<16x8xf32>
    %147 = arith.maximumf %143, %146 : vector<16x8xf32>
    %148 = vector.extract_strided_slice %105 {offsets = [0, 160], sizes = [16, 8], strides = [1, 1]} : vector<16x512xf32> to vector<16x8xf32>
    %149 = vector.extract_strided_slice %105 {offsets = [0, 168], sizes = [16, 8], strides = [1, 1]} : vector<16x512xf32> to vector<16x8xf32>
    %150 = arith.maximumf %148, %149 : vector<16x8xf32>
    %151 = vector.extract_strided_slice %105 {offsets = [0, 224], sizes = [16, 8], strides = [1, 1]} : vector<16x512xf32> to vector<16x8xf32>
    %152 = vector.extract_strided_slice %105 {offsets = [0, 232], sizes = [16, 8], strides = [1, 1]} : vector<16x512xf32> to vector<16x8xf32>
    %153 = arith.maximumf %151, %152 : vector<16x8xf32>
    %154 = arith.maximumf %150, %153 : vector<16x8xf32>
    %155 = vector.extract_strided_slice %105 {offsets = [0, 176], sizes = [16, 8], strides = [1, 1]} : vector<16x512xf32> to vector<16x8xf32>
    %156 = vector.extract_strided_slice %105 {offsets = [0, 184], sizes = [16, 8], strides = [1, 1]} : vector<16x512xf32> to vector<16x8xf32>
    %157 = arith.maximumf %155, %156 : vector<16x8xf32>
    %158 = vector.extract_strided_slice %105 {offsets = [0, 240], sizes = [16, 8], strides = [1, 1]} : vector<16x512xf32> to vector<16x8xf32>
    %159 = vector.extract_strided_slice %105 {offsets = [0, 248], sizes = [16, 8], strides = [1, 1]} : vector<16x512xf32> to vector<16x8xf32>
    %160 = arith.maximumf %158, %159 : vector<16x8xf32>
    %161 = arith.maximumf %157, %160 : vector<16x8xf32>
    %162 = vector.extract_strided_slice %105 {offsets = [0, 256], sizes = [16, 8], strides = [1, 1]} : vector<16x512xf32> to vector<16x8xf32>
    %163 = vector.extract_strided_slice %105 {offsets = [0, 264], sizes = [16, 8], strides = [1, 1]} : vector<16x512xf32> to vector<16x8xf32>
    %164 = arith.maximumf %162, %163 : vector<16x8xf32>
    %165 = vector.extract_strided_slice %105 {offsets = [0, 320], sizes = [16, 8], strides = [1, 1]} : vector<16x512xf32> to vector<16x8xf32>
    %166 = vector.extract_strided_slice %105 {offsets = [0, 328], sizes = [16, 8], strides = [1, 1]} : vector<16x512xf32> to vector<16x8xf32>
    %167 = arith.maximumf %165, %166 : vector<16x8xf32>
    %168 = arith.maximumf %164, %167 : vector<16x8xf32>
    %169 = vector.extract_strided_slice %105 {offsets = [0, 272], sizes = [16, 8], strides = [1, 1]} : vector<16x512xf32> to vector<16x8xf32>
    %170 = vector.extract_strided_slice %105 {offsets = [0, 280], sizes = [16, 8], strides = [1, 1]} : vector<16x512xf32> to vector<16x8xf32>
    %171 = arith.maximumf %169, %170 : vector<16x8xf32>
    %172 = vector.extract_strided_slice %105 {offsets = [0, 336], sizes = [16, 8], strides = [1, 1]} : vector<16x512xf32> to vector<16x8xf32>
    %173 = vector.extract_strided_slice %105 {offsets = [0, 344], sizes = [16, 8], strides = [1, 1]} : vector<16x512xf32> to vector<16x8xf32>
    %174 = arith.maximumf %172, %173 : vector<16x8xf32>
    %175 = arith.maximumf %171, %174 : vector<16x8xf32>
    %176 = vector.extract_strided_slice %105 {offsets = [0, 288], sizes = [16, 8], strides = [1, 1]} : vector<16x512xf32> to vector<16x8xf32>
    %177 = vector.extract_strided_slice %105 {offsets = [0, 296], sizes = [16, 8], strides = [1, 1]} : vector<16x512xf32> to vector<16x8xf32>
    %178 = arith.maximumf %176, %177 : vector<16x8xf32>
    %179 = vector.extract_strided_slice %105 {offsets = [0, 352], sizes = [16, 8], strides = [1, 1]} : vector<16x512xf32> to vector<16x8xf32>
    %180 = vector.extract_strided_slice %105 {offsets = [0, 360], sizes = [16, 8], strides = [1, 1]} : vector<16x512xf32> to vector<16x8xf32>
    %181 = arith.maximumf %179, %180 : vector<16x8xf32>
    %182 = arith.maximumf %178, %181 : vector<16x8xf32>
    %183 = vector.extract_strided_slice %105 {offsets = [0, 304], sizes = [16, 8], strides = [1, 1]} : vector<16x512xf32> to vector<16x8xf32>
    %184 = vector.extract_strided_slice %105 {offsets = [0, 312], sizes = [16, 8], strides = [1, 1]} : vector<16x512xf32> to vector<16x8xf32>
    %185 = arith.maximumf %183, %184 : vector<16x8xf32>
    %186 = vector.extract_strided_slice %105 {offsets = [0, 368], sizes = [16, 8], strides = [1, 1]} : vector<16x512xf32> to vector<16x8xf32>
    %187 = vector.extract_strided_slice %105 {offsets = [0, 376], sizes = [16, 8], strides = [1, 1]} : vector<16x512xf32> to vector<16x8xf32>
    %188 = arith.maximumf %186, %187 : vector<16x8xf32>
    %189 = arith.maximumf %185, %188 : vector<16x8xf32>
    %190 = vector.extract_strided_slice %105 {offsets = [0, 384], sizes = [16, 8], strides = [1, 1]} : vector<16x512xf32> to vector<16x8xf32>
    %191 = vector.extract_strided_slice %105 {offsets = [0, 392], sizes = [16, 8], strides = [1, 1]} : vector<16x512xf32> to vector<16x8xf32>
    %192 = arith.maximumf %190, %191 : vector<16x8xf32>
    %193 = vector.extract_strided_slice %105 {offsets = [0, 448], sizes = [16, 8], strides = [1, 1]} : vector<16x512xf32> to vector<16x8xf32>
    %194 = vector.extract_strided_slice %105 {offsets = [0, 456], sizes = [16, 8], strides = [1, 1]} : vector<16x512xf32> to vector<16x8xf32>
    %195 = arith.maximumf %193, %194 : vector<16x8xf32>
    %196 = arith.maximumf %192, %195 : vector<16x8xf32>
    %197 = vector.extract_strided_slice %105 {offsets = [0, 400], sizes = [16, 8], strides = [1, 1]} : vector<16x512xf32> to vector<16x8xf32>
    %198 = vector.extract_strided_slice %105 {offsets = [0, 408], sizes = [16, 8], strides = [1, 1]} : vector<16x512xf32> to vector<16x8xf32>
    %199 = arith.maximumf %197, %198 : vector<16x8xf32>
    %200 = vector.extract_strided_slice %105 {offsets = [0, 464], sizes = [16, 8], strides = [1, 1]} : vector<16x512xf32> to vector<16x8xf32>
    %201 = vector.extract_strided_slice %105 {offsets = [0, 472], sizes = [16, 8], strides = [1, 1]} : vector<16x512xf32> to vector<16x8xf32>
    %202 = arith.maximumf %200, %201 : vector<16x8xf32>
    %203 = arith.maximumf %199, %202 : vector<16x8xf32>
    %204 = vector.extract_strided_slice %105 {offsets = [0, 416], sizes = [16, 8], strides = [1, 1]} : vector<16x512xf32> to vector<16x8xf32>
    %205 = vector.extract_strided_slice %105 {offsets = [0, 424], sizes = [16, 8], strides = [1, 1]} : vector<16x512xf32> to vector<16x8xf32>
    %206 = arith.maximumf %204, %205 : vector<16x8xf32>
    %207 = vector.extract_strided_slice %105 {offsets = [0, 480], sizes = [16, 8], strides = [1, 1]} : vector<16x512xf32> to vector<16x8xf32>
    %208 = vector.extract_strided_slice %105 {offsets = [0, 488], sizes = [16, 8], strides = [1, 1]} : vector<16x512xf32> to vector<16x8xf32>
    %209 = arith.maximumf %207, %208 : vector<16x8xf32>
    %210 = arith.maximumf %206, %209 : vector<16x8xf32>
    %211 = vector.extract_strided_slice %105 {offsets = [0, 432], sizes = [16, 8], strides = [1, 1]} : vector<16x512xf32> to vector<16x8xf32>
    %212 = vector.extract_strided_slice %105 {offsets = [0, 440], sizes = [16, 8], strides = [1, 1]} : vector<16x512xf32> to vector<16x8xf32>
    %213 = arith.maximumf %211, %212 : vector<16x8xf32>
    %214 = vector.extract_strided_slice %105 {offsets = [0, 496], sizes = [16, 8], strides = [1, 1]} : vector<16x512xf32> to vector<16x8xf32>
    %215 = vector.extract_strided_slice %105 {offsets = [0, 504], sizes = [16, 8], strides = [1, 1]} : vector<16x512xf32> to vector<16x8xf32>
    %216 = arith.maximumf %214, %215 : vector<16x8xf32>
    %217 = arith.maximumf %213, %216 : vector<16x8xf32>
    %218 = tpu.concatenate %112, %119, %126, %133, %140, %147, %154, %161, %168, %175, %182, %189, %196, %203, %210, %217 in 0 : vector<16x8xf32>, vector<16x8xf32>, vector<16x8xf32>, vector<16x8xf32>, vector<16x8xf32>, vector<16x8xf32>, vector<16x8xf32>, vector<16x8xf32>, vector<16x8xf32>, vector<16x8xf32>, vector<16x8xf32>, vector<16x8xf32>, vector<16x8xf32>, vector<16x8xf32>, vector<16x8xf32>, vector<16x8xf32> -> vector<256x8xf32>
    %c0_81 = arith.constant 0 : index
    %c0_82 = arith.constant 0 : index
    %219 = vector.load %arg5[%c0_81, %c0_82] : memref<128x256xf32, #tpu.memory_space<vmem>>, vector<128x256xf32>
    %cst_83 = arith.constant dense<0.000000e+00> : vector<128x8xf32>
    %220 = tpu.matmul %219, %218, %cst_83 {dimension_numbers = #tpu.dot_dimension_numbers<[1], [0], [0], [1], [0, 0, 1, 1], [], []>} : vector<128x256xf32>, vector<256x8xf32>, vector<128x8xf32> -> vector<128x8xf32>
    %c0_84 = arith.constant 0 : index
    %c0_85 = arith.constant 0 : index
    %221 = vector.load %arg6[%c0_84, %c0_85] : memref<128x1xf32, #tpu.memory_space<vmem>>, vector<128x1xf32>
    %222 = vector.broadcast %221 : vector<128x1xf32> to vector<128x8xf32>
    %223 = arith.addf %220, %222 : vector<128x8xf32>
    %cst_86 = arith.constant 0.000000e+00 : f32
    %224 = vector.broadcast %cst_86 : f32 to vector<128x8xf32>
    %225 = arith.maximumf %223, %224 : vector<128x8xf32>
    %226 = tpu.transpose %225, [1, 0] : vector<128x8xf32> -> vector<8x128xf32>
    %c0_87 = arith.constant 0 : index
    %c0_88 = arith.constant 0 : index
    %227 = vector.load %arg7[%c0_87, %c0_88] : memref<128x128xf32, #tpu.memory_space<vmem>>, vector<128x128xf32>
    %cst_89 = arith.constant dense<0.000000e+00> : vector<8x128xf32>
    %228 = tpu.matmul %226, %227, %cst_89 {dimension_numbers = #tpu.dot_dimension_numbers<[1], [0], [0], [1], [0, 0, 1, 1], [], []>} : vector<8x128xf32>, vector<128x128xf32>, vector<8x128xf32> -> vector<8x128xf32>
    %c0_90 = arith.constant 0 : index
    %c0_91 = arith.constant 0 : index
    %229 = vector.load %arg8[%c0_90, %c0_91] : memref<1x128xf32, #tpu.memory_space<vmem>>, vector<1x128xf32>
    %230 = vector.broadcast %229 : vector<1x128xf32> to vector<8x128xf32>
    %231 = arith.addf %228, %230 : vector<8x128xf32>
    %cst_92 = arith.constant 0.000000e+00 : f32
    %232 = vector.broadcast %cst_92 : f32 to vector<8x128xf32>
    %233 = arith.maximumf %231, %232 : vector<8x128xf32>
    %c0_93 = arith.constant 0 : index
    %c0_94 = arith.constant 0 : index
    %234 = vector.load %arg9[%c0_93, %c0_94] : memref<128x16xf32, #tpu.memory_space<vmem>>, vector<128x16xf32>
    %cst_95 = arith.constant dense<0.000000e+00> : vector<8x16xf32>
    %235 = tpu.matmul %233, %234, %cst_95 {dimension_numbers = #tpu.dot_dimension_numbers<[1], [0], [0], [1], [0, 0, 1, 1], [], []>} : vector<8x128xf32>, vector<128x16xf32>, vector<8x16xf32> -> vector<8x16xf32>
    %c0_96 = arith.constant 0 : index
    %c0_97 = arith.constant 0 : index
    %236 = vector.load %arg10[%c0_96, %c0_97] : memref<1x16xf32, #tpu.memory_space<vmem>>, vector<1x16xf32>
    %237 = vector.broadcast %236 : vector<1x16xf32> to vector<8x16xf32>
    %238 = arith.addf %235, %237 : vector<8x16xf32>
    %c0_98 = arith.constant 0 : index
    %c0_99 = arith.constant 0 : index
    %239 = vector.load %arg11[%c0_98, %c0_99] : memref<8x16xf32, #tpu.memory_space<vmem>>, vector<8x16xf32>
    tpu.vector_store %arg11[%c0_98, %c0_99], %238 {strides = array<i32>} : memref<8x16xf32, #tpu.memory_space<vmem>>, vector<8x16xf32>,
    return
  }
  func.func @transform_0(%arg0: i32) -> (i32, i32) {
    %c0_i32 = arith.constant 0 : i32
    %c0_i32_0 = arith.constant 0 : i32
    return %c0_i32, %arg0 : i32, i32
  }
  func.func @transform_1(%arg0: i32) -> (i32, i32) {
    %c0_i32 = arith.constant 0 : i32
    %c0_i32_0 = arith.constant 0 : i32
    %c0_i32_1 = arith.constant 0 : i32
    return %c0_i32, %c0_i32_0 : i32, i32
  }
  func.func @transform_2(%arg0: i32) -> (i32, i32) {
    %c0_i32 = arith.constant 0 : i32
    %c0_i32_0 = arith.constant 0 : i32
    %c0_i32_1 = arith.constant 0 : i32
    return %c0_i32, %c0_i32_0 : i32, i32
  }
  func.func @transform_3(%arg0: i32) -> (i32, i32) {
    %c0_i32 = arith.constant 0 : i32
    %c0_i32_0 = arith.constant 0 : i32
    %c0_i32_1 = arith.constant 0 : i32
    return %c0_i32, %c0_i32_0 : i32, i32
  }
  func.func @transform_4(%arg0: i32) -> (i32, i32) {
    %c0_i32 = arith.constant 0 : i32
    %c0_i32_0 = arith.constant 0 : i32
    %c0_i32_1 = arith.constant 0 : i32
    return %c0_i32, %c0_i32_0 : i32, i32
  }
  func.func @transform_5(%arg0: i32) -> (i32, i32) {
    %c0_i32 = arith.constant 0 : i32
    %c0_i32_0 = arith.constant 0 : i32
    %c0_i32_1 = arith.constant 0 : i32
    return %c0_i32, %c0_i32_0 : i32, i32
  }
  func.func @transform_6(%arg0: i32) -> (i32, i32) {
    %c0_i32 = arith.constant 0 : i32
    %c0_i32_0 = arith.constant 0 : i32
    %c0_i32_1 = arith.constant 0 : i32
    return %c0_i32, %c0_i32_0 : i32, i32
  }
  func.func @transform_7(%arg0: i32) -> (i32, i32) {
    %c0_i32 = arith.constant 0 : i32
    %c0_i32_0 = arith.constant 0 : i32
    %c0_i32_1 = arith.constant 0 : i32
    return %c0_i32, %c0_i32_0 : i32, i32
  }
  func.func @transform_8(%arg0: i32) -> (i32, i32) {
    %c0_i32 = arith.constant 0 : i32
    %c0_i32_0 = arith.constant 0 : i32
    %c0_i32_1 = arith.constant 0 : i32
    return %c0_i32, %c0_i32_0 : i32, i32
  }
  func.func @transform_9(%arg0: i32) -> (i32, i32) {
    %c0_i32 = arith.constant 0 : i32
    %c0_i32_0 = arith.constant 0 : i32
    %c0_i32_1 = arith.constant 0 : i32
    return %c0_i32, %c0_i32_0 : i32, i32
  }
  func.func @transform_10(%arg0: i32) -> (i32, i32) {
    %c0_i32 = arith.constant 0 : i32
    %c0_i32_0 = arith.constant 0 : i32
    return %arg0, %c0_i32 : i32, i32
  }
}

</mosaic_0001>

<llo_original>
// kernel: fashion_net_forward.1
$region0: #{fashion_net_forward.1}
  #allocation0 [shape = 'u32[]', space=smem, size = 0x4, offset = 0x4, fixed_abs, tag = 'smem constant byte address 0x4 - core index']
  #allocation1 [shape = 'u32[144,128]{1,0:T(1,128)}', space=vmem, size = 0x12000, scoped, tag = 'internal scratch']
  #allocation2 [shape = 'f32[200,512]{1,0:T(8,128)}', space=vmem, size = 0x64000, scoped, tag = 'scratch operand']
  %s0 = inlined_call_operand.vmem [shape: f32[32,4608], index: 0, kind: input, shape index: {}]
  %s1 = inlined_call_operand.vmem [shape: f32[8,32], index: 1, kind: input, shape index: {}]
  %s2 = inlined_call_operand.vmem [shape: f32[16,200], index: 2, kind: input, shape index: {}]
  %s3 = inlined_call_operand.vmem [shape: f32[16,1], index: 3, kind: input, shape index: {}]
  %s4 = inlined_call_operand.vmem [shape: f32[128,256], index: 4, kind: input, shape index: {}]
  %s5 = inlined_call_operand.vmem [shape: f32[128,1], index: 5, kind: input, shape index: {}]
  %s6 = inlined_call_operand.vmem [shape: f32[128,128], index: 6, kind: input, shape index: {}]
  %s7 = inlined_call_operand.vmem [shape: f32[1,128], index: 7, kind: input, shape index: {}]
  %s8 = inlined_call_operand.vmem [shape: f32[128,16], index: 8, kind: input, shape index: {}]
  %s9 = inlined_call_operand.vmem [shape: f32[1,16], index: 9, kind: input, shape index: {}]
  %s10 = inlined_call_operand.vmem [shape: f32[8,16], index: 10, kind: output, shape index: {}]
  %s11 = sld [smem:[#allocation0]]
  $region50: #{fashion_net_forward.1} parent=0
    _
  %s13 = ssub.s32 1, %s11
  %s14 = scalar_select 0, %s13, %s11
  // Predicated region
  $region2: #{fashion_net_forward.1} parent=0 // pred_check
    _
  $region3: #{fashion_net_forward.1} parent=0 // pred_check_branch
    %16 = sbr.rel (0) target = $region5
  $region4: #{fashion_net_forward.1} parent=0 // pred_region
    _
  $region5: #{fashion_net_forward.1} parent=0 // pred_fallthru
    _
  // Predicated region
  $region6: #{fashion_net_forward.1} parent=0 // pred_check
    _
  $region7: #{fashion_net_forward.1} parent=0 // pred_check_branch
    %18 = sbr.rel (0) target = $region9
  $region8: #{fashion_net_forward.1} parent=0 // pred_region
    _
  $region9: #{fashion_net_forward.1} parent=0 // pred_fallthru
    _
  // Predicated region
  $region10: #{fashion_net_forward.1} parent=0 // pred_check
    _
  $region11: #{fashion_net_forward.1} parent=0 // pred_check_branch
    %20 = sbr.rel (0) target = $region13
  $region12: #{fashion_net_forward.1} parent=0 // pred_region
    _
  $region13: #{fashion_net_forward.1} parent=0 // pred_fallthru
    _
  // Predicated region
  $region14: #{fashion_net_forward.1} parent=0 // pred_check
    _
  $region15: #{fashion_net_forward.1} parent=0 // pred_check_branch
    %22 = sbr.rel (0) target = $region17
  $region16: #{fashion_net_forward.1} parent=0 // pred_region
    _
  $region17: #{fashion_net_forward.1} parent=0 // pred_fallthru
    _
  // Predicated region
  $region18: #{fashion_net_forward.1} parent=0 // pred_check
    _
  $region19: #{fashion_net_forward.1} parent=0 // pred_check_branch
    %24 = sbr.rel (0) target = $region21
  $region20: #{fashion_net_forward.1} parent=0 // pred_region
    _
  $region21: #{fashion_net_forward.1} parent=0 // pred_fallthru
    _
  // Predicated region
  $region22: #{fashion_net_forward.1} parent=0 // pred_check
    _
  $region23: #{fashion_net_forward.1} parent=0 // pred_check_branch
    %26 = sbr.rel (0) target = $region25
  $region24: #{fashion_net_forward.1} parent=0 // pred_region
    _
  $region25: #{fashion_net_forward.1} parent=0 // pred_fallthru
    _
  // Predicated region
  $region26: #{fashion_net_forward.1} parent=0 // pred_check
    _
  $region27: #{fashion_net_forward.1} parent=0 // pred_check_branch
    %28 = sbr.rel (0) target = $region29
  $region28: #{fashion_net_forward.1} parent=0 // pred_region
    _
  $region29: #{fashion_net_forward.1} parent=0 // pred_fallthru
    _
  // Predicated region
  $region30: #{fashion_net_forward.1} parent=0 // pred_check
    _
  $region31: #{fashion_net_forward.1} parent=0 // pred_check_branch
    %30 = sbr.rel (0) target = $region33
  $region32: #{fashion_net_forward.1} parent=0 // pred_region
    _
  $region33: #{fashion_net_forward.1} parent=0 // pred_fallthru
    _
  // Predicated region
  $region34: #{fashion_net_forward.1} parent=0 // pred_check
    _
  $region35: #{fashion_net_forward.1} parent=0 // pred_check_branch
    %32 = sbr.rel (0) target = $region37
  $region36: #{fashion_net_forward.1} parent=0 // pred_region
    _
  $region37: #{fashion_net_forward.1} parent=0 // pred_fallthru
    _
  // Predicated region
  $region38: #{fashion_net_forward.1} parent=0 // pred_check
    _
  $region39: #{fashion_net_forward.1} parent=0 // pred_check_branch
    %34 = sbr.rel (0) target = $region41
  $region40: #{fashion_net_forward.1} parent=0 // pred_region
    _
  $region41: #{fashion_net_forward.1} parent=0 // pred_fallthru
    _
  %v35 = vld [vmem:[%s1] sm:$0xff]
  %v36 = vld [vmem:[%s0] sm:$0xff]
  %v37 = vld [vmem:[%s0 + $0x8] sm:$0xff]
  %v38 = vld [vmem:[%s0 + $0x10] sm:$0xff]
  %v39 = vld [vmem:[%s0 + $0x18] sm:$0xff]
  %v40 = vld [vmem:[%s0 + $0x20] sm:$0xff]
  %v41 = vld [vmem:[%s0 + $0x28] sm:$0xff]
  %v42 = vld [vmem:[%s0 + $0x30] sm:$0xff]
  %v43 = vld [vmem:[%s0 + $0x38] sm:$0xff]
  %v44 = vld [vmem:[%s0 + $0x40] sm:$0xff]
  %v45 = vld [vmem:[%s0 + $0x48] sm:$0xff]
  %v46 = vld [vmem:[%s0 + $0x50] sm:$0xff]
  %v47 = vld [vmem:[%s0 + $0x58] sm:$0xff]
  %v48 = vld [vmem:[%s0 + $0x60] sm:$0xff]
  %v49 = vld [vmem:[%s0 + $0x68] sm:$0xff]
  %v50 = vld [vmem:[%s0 + $0x70] sm:$0xff]
  %v51 = vld [vmem:[%s0 + $0x78] sm:$0xff]
  %v52 = vld [vmem:[%s0 + $0x80] sm:$0xff]
  %v53 = vld [vmem:[%s0 + $0x88] sm:$0xff]
  %v54 = vld [vmem:[%s0 + $0x90] sm:$0xff]
  %v55 = vld [vmem:[%s0 + $0x98] sm:$0xff]
  %v56 = vld [vmem:[%s0 + $0xa0] sm:$0xff]
  %v57 = vld [vmem:[%s0 + $0xa8] sm:$0xff]
  %v58 = vld [vmem:[%s0 + $0xb0] sm:$0xff]
  %v59 = vld [vmem:[%s0 + $0xb8] sm:$0xff]
  %v60 = vld [vmem:[%s0 + $0xc0] sm:$0xff]
  %v61 = vld [vmem:[%s0 + $0xc8] sm:$0xff]
  %v62 = vld [vmem:[%s0 + $0xd0] sm:$0xff]
  %v63 = vld [vmem:[%s0 + $0xd8] sm:$0xff]
  %v64 = vld [vmem:[%s0 + $0xe0] sm:$0xff]
  %v65 = vld [vmem:[%s0 + $0xe8] sm:$0xff]
  %v66 = vld [vmem:[%s0 + $0xf0] sm:$0xff]
  %v67 = vld [vmem:[%s0 + $0xf8] sm:$0xff]
  %v68 = vld [vmem:[%s0 + $0x100] sm:$0xff]
  %v69 = vld [vmem:[%s0 + $0x108] sm:$0xff]
  %v70 = vld [vmem:[%s0 + $0x110] sm:$0xff]
  %v71 = vld [vmem:[%s0 + $0x118] sm:$0xff]
  %v72 = vld [vmem:[%s0 + $0x120] sm:$0xff]
  %v73 = vld [vmem:[%s0 + $0x128] sm:$0xff]
  %v74 = vld [vmem:[%s0 + $0x130] sm:$0xff]
  %v75 = vld [vmem:[%s0 + $0x138] sm:$0xff]
  %v76 = vld [vmem:[%s0 + $0x140] sm:$0xff]
  %v77 = vld [vmem:[%s0 + $0x148] sm:$0xff]
  %v78 = vld [vmem:[%s0 + $0x150] sm:$0xff]
  %v79 = vld [vmem:[%s0 + $0x158] sm:$0xff]
  %v80 = vld [vmem:[%s0 + $0x160] sm:$0xff]
  %v81 = vld [vmem:[%s0 + $0x168] sm:$0xff]
  %v82 = vld [vmem:[%s0 + $0x170] sm:$0xff]
  %v83 = vld [vmem:[%s0 + $0x178] sm:$0xff]
  %v84 = vld [vmem:[%s0 + $0x180] sm:$0xff]
  %v85 = vld [vmem:[%s0 + $0x188] sm:$0xff]
  %v86 = vld [vmem:[%s0 + $0x190] sm:$0xff]
  %v87 = vld [vmem:[%s0 + $0x198] sm:$0xff]
  %v88 = vld [vmem:[%s0 + $0x1a0] sm:$0xff]
  %v89 = vld [vmem:[%s0 + $0x1a8] sm:$0xff]
  %v90 = vld [vmem:[%s0 + $0x1b0] sm:$0xff]
  %v91 = vld [vmem:[%s0 + $0x1b8] sm:$0xff]
  %v92 = vld [vmem:[%s0 + $0x1c0] sm:$0xff]
  %v93 = vld [vmem:[%s0 + $0x1c8] sm:$0xff]
  %v94 = vld [vmem:[%s0 + $0x1d0] sm:$0xff]
  %v95 = vld [vmem:[%s0 + $0x1d8] sm:$0xff]
  %v96 = vld [vmem:[%s0 + $0x1e0] sm:$0xff]
  %v97 = vld [vmem:[%s0 + $0x1e8] sm:$0xff]
  %v98 = vld [vmem:[%s0 + $0x1f0] sm:$0xff]
  %v99 = vld [vmem:[%s0 + $0x1f8] sm:$0xff]
  %v100 = vld [vmem:[%s0 + $0x200] sm:$0xff]
  %v101 = vld [vmem:[%s0 + $0x208] sm:$0xff]
  %v102 = vld [vmem:[%s0 + $0x210] sm:$0xff]
  %v103 = vld [vmem:[%s0 + $0x218] sm:$0xff]
  %v104 = vld [vmem:[%s0 + $0x220] sm:$0xff]
  %v105 = vld [vmem:[%s0 + $0x228] sm:$0xff]
  %v106 = vld [vmem:[%s0 + $0x230] sm:$0xff]
  %v107 = vld [vmem:[%s0 + $0x238] sm:$0xff]
  %v108 = vld [vmem:[%s0 + $0x240] sm:$0xff]
  %v109 = vld [vmem:[%s0 + $0x248] sm:$0xff]
  %v110 = vld [vmem:[%s0 + $0x250] sm:$0xff]
  %v111 = vld [vmem:[%s0 + $0x258] sm:$0xff]
  %v112 = vld [vmem:[%s0 + $0x260] sm:$0xff]
  %v113 = vld [vmem:[%s0 + $0x268] sm:$0xff]
  %v114 = vld [vmem:[%s0 + $0x270] sm:$0xff]
  %v115 = vld [vmem:[%s0 + $0x278] sm:$0xff]
  %v116 = vld [vmem:[%s0 + $0x280] sm:$0xff]
  %v117 = vld [vmem:[%s0 + $0x288] sm:$0xff]
  %v118 = vld [vmem:[%s0 + $0x290] sm:$0xff]
  %v119 = vld [vmem:[%s0 + $0x298] sm:$0xff]
  %v120 = vld [vmem:[%s0 + $0x2a0] sm:$0xff]
  %v121 = vld [vmem:[%s0 + $0x2a8] sm:$0xff]
  %v122 = vld [vmem:[%s0 + $0x2b0] sm:$0xff]
  %v123 = vld [vmem:[%s0 + $0x2b8] sm:$0xff]
  %v124 = vld [vmem:[%s0 + $0x2c0] sm:$0xff]
  %v125 = vld [vmem:[%s0 + $0x2c8] sm:$0xff]
  %v126 = vld [vmem:[%s0 + $0x2d0] sm:$0xff]
  %v127 = vld [vmem:[%s0 + $0x2d8] sm:$0xff]
  %v128 = vld [vmem:[%s0 + $0x2e0] sm:$0xff]
  %v129 = vld [vmem:[%s0 + $0x2e8] sm:$0xff]
  %v130 = vld [vmem:[%s0 + $0x2f0] sm:$0xff]
  %v131 = vld [vmem:[%s0 + $0x2f8] sm:$0xff]
  %v132 = vld [vmem:[%s0 + $0x300] sm:$0xff]
  %v133 = vld [vmem:[%s0 + $0x308] sm:$0xff]
  %v134 = vld [vmem:[%s0 + $0x310] sm:$0xff]
  %v135 = vld [vmem:[%s0 + $0x318] sm:$0xff]
  %v136 = vld [vmem:[%s0 + $0x320] sm:$0xff]
  %v137 = vld [vmem:[%s0 + $0x328] sm:$0xff]
  %v138 = vld [vmem:[%s0 + $0x330] sm:$0xff]
  %v139 = vld [vmem:[%s0 + $0x338] sm:$0xff]
  %v140 = vld [vmem:[%s0 + $0x340] sm:$0xff]
  %v141 = vld [vmem:[%s0 + $0x348] sm:$0xff]
  %v142 = vld [vmem:[%s0 + $0x350] sm:$0xff]
  %v143 = vld [vmem:[%s0 + $0x358] sm:$0xff]
  %v144 = vld [vmem:[%s0 + $0x360] sm:$0xff]
  %v145 = vld [vmem:[%s0 + $0x368] sm:$0xff]
  %v146 = vld [vmem:[%s0 + $0x370] sm:$0xff]
  %v147 = vld [vmem:[%s0 + $0x378] sm:$0xff]
  %v148 = vld [vmem:[%s0 + $0x380] sm:$0xff]
  %v149 = vld [vmem:[%s0 + $0x388] sm:$0xff]
  %v150 = vld [vmem:[%s0 + $0x390] sm:$0xff]
  %v151 = vld [vmem:[%s0 + $0x398] sm:$0xff]
  %v152 = vld [vmem:[%s0 + $0x3a0] sm:$0xff]
  %v153 = vld [vmem:[%s0 + $0x3a8] sm:$0xff]
  %v154 = vld [vmem:[%s0 + $0x3b0] sm:$0xff]
  %v155 = vld [vmem:[%s0 + $0x3b8] sm:$0xff]
  %v156 = vld [vmem:[%s0 + $0x3c0] sm:$0xff]
  %v157 = vld [vmem:[%s0 + $0x3c8] sm:$0xff]
  %v158 = vld [vmem:[%s0 + $0x3d0] sm:$0xff]
  %v159 = vld [vmem:[%s0 + $0x3d8] sm:$0xff]
  %v160 = vld [vmem:[%s0 + $0x3e0] sm:$0xff]
  %v161 = vld [vmem:[%s0 + $0x3e8] sm:$0xff]
  %v162 = vld [vmem:[%s0 + $0x3f0] sm:$0xff]
  %v163 = vld [vmem:[%s0 + $0x3f8] sm:$0xff]
  %v164 = vld [vmem:[%s0 + $0x400] sm:$0xff]
  %v165 = vld [vmem:[%s0 + $0x408] sm:$0xff]
  %v166 = vld [vmem:[%s0 + $0x410] sm:$0xff]
  %v167 = vld [vmem:[%s0 + $0x418] sm:$0xff]
  %v168 = vld [vmem:[%s0 + $0x420] sm:$0xff]
  %v169 = vld [vmem:[%s0 + $0x428] sm:$0xff]
  %v170 = vld [vmem:[%s0 + $0x430] sm:$0xff]
  %v171 = vld [vmem:[%s0 + $0x438] sm:$0xff]
  %v172 = vld [vmem:[%s0 + $0x440] sm:$0xff]
  %v173 = vld [vmem:[%s0 + $0x448] sm:$0xff]
  %v174 = vld [vmem:[%s0 + $0x450] sm:$0xff]
  %v175 = vld [vmem:[%s0 + $0x458] sm:$0xff]
  %v176 = vld [vmem:[%s0 + $0x460] sm:$0xff]
  %v177 = vld [vmem:[%s0 + $0x468] sm:$0xff]
  %v178 = vld [vmem:[%s0 + $0x470] sm:$0xff]
  %v179 = vld [vmem:[%s0 + $0x478] sm:$0xff]
  %vm180 = vcmask 261120
  %v182 = vsel %vm180, %v35, 0
  %184 = vmatprep.subr.mxu0 0.0
  %185 = vmatpush1.msra.mxu0 0.0
  %186 = vmatprep.subr.mxu0 0.0
  %187 = vmatpush1.msra.mxu0 0.0
  %188 = vmatprep.subr.mxu0 0.0
  %189 = vmatpush1.msra.mxu0 0.0
  %190 = vmatprep.subr.mxu0 0.0
  %191 = vmatpush1.msra.mxu0 0.0
  %192 = vmatprep.subr.mxu0 0.0
  %193 = vmatpush1.msra.mxu0 0.0
  %194 = vmatprep.subr.mxu0 0.0
  %195 = vmatpush1.msra.mxu0 0.0
  %196 = vmatprep.subr.mxu0 0.0
  %197 = vmatpush1.msra.mxu0 0.0
  %198 = vmatprep.subr.mxu0 0.0
  %199 = vmatpush1.msra.mxu0 0.0
  %200 = vmatprep.subr.mxu0 0.0
  %201 = vmatpush1.msra.mxu0 0.0
  %202 = vmatprep.subr.mxu0 0.0
  %203 = vmatpush1.msra.mxu0 0.0
  %204 = vmatprep.subr.mxu0 0.0
  %205 = vmatpush1.msra.mxu0 0.0
  %206 = vmatprep.subr.mxu0 0.0
  %207 = vmatpush1.msra.mxu0 0.0
  %208 = vmatprep.subr.mxu0 %v145
  %209 = vmatpush1.msra.mxu0 %v144
  %210 = vmatprep.subr.mxu0 %v109
  %211 = vmatpush1.msra.mxu0 %v108
  %212 = vmatprep.subr.mxu0 %v73
  %213 = vmatpush1.msra.mxu0 %v72
  %214 = vmatprep.subr.mxu0 %v37
  %215 = vmatpush1.msra.mxu0 %v36
  %216 = vmatprep.subr.mxu0 0.0
  %217 = vmatpush2.msra.mxu0 0.0
  %218 = vmatprep.subr.mxu0 0.0
  %219 = vmatpush2.msra.mxu0 0.0
  %220 = vmatprep.subr.mxu0 0.0
  %221 = vmatpush2.msra.mxu0 0.0
  %222 = vmatprep.subr.mxu0 0.0
  %223 = vmatpush2.msra.mxu0 0.0
  %224 = vmatprep.subr.mxu0 0.0
  %225 = vmatpush2.msra.mxu0 0.0
  %226 = vmatprep.subr.mxu0 0.0
  %227 = vmatpush2.msra.mxu0 0.0
  %228 = vmatprep.subr.mxu0 0.0
  %229 = vmatpush2.msra.mxu0 0.0
  %230 = vmatprep.subr.mxu0 0.0
  %231 = vmatpush2.msra.mxu0 0.0
  %232 = vmatprep.subr.mxu0 0.0
  %233 = vmatpush2.msra.mxu0 0.0
  %234 = vmatprep.subr.mxu0 0.0
  %235 = vmatpush2.msra.mxu0 0.0
  %236 = vmatprep.subr.mxu0 0.0
  %237 = vmatpush2.msra.mxu0 0.0
  %238 = vmatprep.subr.mxu0 0.0
  %239 = vmatpush2.msra.mxu0 0.0
  %240 = vmatprep.subr.mxu0 0.0
  %241 = vmatpush2.msra.mxu0 0.0
  %242 = vmatprep.subr.mxu0 0.0
  %243 = vmatpush2.msra.mxu0 0.0
  %244 = vmatprep.subr.mxu0 0.0
  %245 = vmatpush2.msra.mxu0 0.0
  %246 = vmatprep.subr.mxu0 0.0
  %247 = vmatpush2.msra.mxu0 0.0
  %248 = vmatprep.mubr.f32.mxu0 0.0
  %249 = vmatmul.mubr.f32.gmra.mxu0 %v182
  %v250 = vpop.f32.mrf.mxu0
  %v251 = vadd.f32 0.0, %v250
  %v252 = vpop.f32.mrf.mxu0
  %v253 = vadd.f32 0.0, %v252
  %254 = vdwg.mxu0
  %255 = vmatprep.subr.mxu0 0.0
  %256 = vmatpush1.msra.mxu0 0.0
  %257 = vmatprep.subr.mxu0 0.0
  %258 = vmatpush1.msra.mxu0 0.0
  %259 = vmatprep.subr.mxu0 0.0
  %260 = vmatpush1.msra.mxu0 0.0
  %261 = vmatprep.subr.mxu0 0.0
  %262 = vmatpush1.msra.mxu0 0.0
  %263 = vmatprep.subr.mxu0 0.0
  %264 = vmatpush1.msra.mxu0 0.0
  %265 = vmatprep.subr.mxu0 0.0
  %266 = vmatpush1.msra.mxu0 0.0
  %267 = vmatprep.subr.mxu0 0.0
  %268 = vmatpush1.msra.mxu0 0.0
  %269 = vmatprep.subr.mxu0 0.0
  %270 = vmatpush1.msra.mxu0 0.0
  %271 = vmatprep.subr.mxu0 0.0
  %272 = vmatpush1.msra.mxu0 0.0
  %273 = vmatprep.subr.mxu0 0.0
  %274 = vmatpush1.msra.mxu0 0.0
  %275 = vmatprep.subr.mxu0 0.0
  %276 = vmatpush1.msra.mxu0 0.0
  %277 = vmatprep.subr.mxu0 0.0
  %278 = vmatpush1.msra.mxu0 0.0
  %279 = vmatprep.subr.mxu0 %v147
  %280 = vmatpush1.msra.mxu0 %v146
  %281 = vmatprep.subr.mxu0 %v111
  %282 = vmatpush1.msra.mxu0 %v110
  %283 = vmatprep.subr.mxu0 %v75
  %284 = vmatpush1.msra.mxu0 %v74
  %285 = vmatprep.subr.mxu0 %v39
  %286 = vmatpush1.msra.mxu0 %v38
  %287 = vmatprep.subr.mxu0 0.0
  %288 = vmatpush2.msra.mxu0 0.0
  %289 = vmatprep.subr.mxu0 0.0
  %290 = vmatpush2.msra.mxu0 0.0
  %291 = vmatprep.subr.mxu0 0.0
  %292 = vmatpush2.msra.mxu0 0.0
  %293 = vmatprep.subr.mxu0 0.0
  %294 = vmatpush2.msra.mxu0 0.0
  %295 = vmatprep.subr.mxu0 0.0
  %296 = vmatpush2.msra.mxu0 0.0
  %297 = vmatprep.subr.mxu0 0.0
  %298 = vmatpush2.msra.mxu0 0.0
  %299 = vmatprep.subr.mxu0 0.0
  %300 = vmatpush2.msra.mxu0 0.0
  %301 = vmatprep.subr.mxu0 0.0
  %302 = vmatpush2.msra.mxu0 0.0
  %303 = vmatprep.subr.mxu0 0.0
  %304 = vmatpush2.msra.mxu0 0.0
  %305 = vmatprep.subr.mxu0 0.0
  %306 = vmatpush2.msra.mxu0 0.0
  %307 = vmatprep.subr.mxu0 0.0
  %308 = vmatpush2.msra.mxu0 0.0
  %309 = vmatprep.subr.mxu0 0.0
  %310 = vmatpush2.msra.mxu0 0.0
  %311 = vmatprep.subr.mxu0 0.0
  %312 = vmatpush2.msra.mxu0 0.0
  %313 = vmatprep.subr.mxu0 0.0
  %314 = vmatpush2.msra.mxu0 0.0
  %315 = vmatprep.subr.mxu0 0.0
  %316 = vmatpush2.msra.mxu0 0.0
  %317 = vmatprep.subr.mxu0 0.0
  %318 = vmatpush2.msra.mxu0 0.0
  %319 = vmatprep.mubr.f32.mxu0 0.0
  %320 = vmatmul.mubr.f32.gmra.mxu0 %v182
  %v321 = vpop.f32.mrf.mxu0
  %v322 = vadd.f32 0.0, %v321
  %v323 = vpop.f32.mrf.mxu0
  %v324 = vadd.f32 0.0, %v323
  %325 = vdwg.mxu0
  %326 = vmatprep.subr.mxu0 0.0
  %327 = vmatpush1.msra.mxu0 0.0
  %328 = vmatprep.subr.mxu0 0.0
  %329 = vmatpush1.msra.mxu0 0.0
  %330 = vmatprep.subr.mxu0 0.0
  %331 = vmatpush1.msra.mxu0 0.0
  %332 = vmatprep.subr.mxu0 0.0
  %333 = vmatpush1.msra.mxu0 0.0
  %334 = vmatprep.subr.mxu0 0.0
  %335 = vmatpush1.msra.mxu0 0.0
  %336 = vmatprep.subr.mxu0 0.0
  %337 = vmatpush1.msra.mxu0 0.0
  %338 = vmatprep.subr.mxu0 0.0
  %339 = vmatpush1.msra.mxu0 0.0
  %340 = vmatprep.subr.mxu0 0.0
  %341 = vmatpush1.msra.mxu0 0.0
  %342 = vmatprep.subr.mxu0 0.0
  %343 = vmatpush1.msra.mxu0 0.0
  %344 = vmatprep.subr.mxu0 0.0
  %345 = vmatpush1.msra.mxu0 0.0
  %346 = vmatprep.subr.mxu0 0.0
  %347 = vmatpush1.msra.mxu0 0.0
  %348 = vmatprep.subr.mxu0 0.0
  %349 = vmatpush1.msra.mxu0 0.0
  %350 = vmatprep.subr.mxu0 %v149
  %351 = vmatpush1.msra.mxu0 %v148
  %352 = vmatprep.subr.mxu0 %v113
  %353 = vmatpush1.msra.mxu0 %v112
  %354 = vmatprep.subr.mxu0 %v77
  %355 = vmatpush1.msra.mxu0 %v76
  %356 = vmatprep.subr.mxu0 %v41
  %357 = vmatpush1.msra.mxu0 %v40
  %358 = vmatprep.subr.mxu0 0.0
  %359 = vmatpush2.msra.mxu0 0.0
  %360 = vmatprep.subr.mxu0 0.0
  %361 = vmatpush2.msra.mxu0 0.0
  %362 = vmatprep.subr.mxu0 0.0
  %363 = vmatpush2.msra.mxu0 0.0
  %364 = vmatprep.subr.mxu0 0.0
  %365 = vmatpush2.msra.mxu0 0.0
  %366 = vmatprep.subr.mxu0 0.0
  %367 = vmatpush2.msra.mxu0 0.0
  %368 = vmatprep.subr.mxu0 0.0
  %369 = vmatpush2.msra.mxu0 0.0
  %370 = vmatprep.subr.mxu0 0.0
  %371 = vmatpush2.msra.mxu0 0.0
  %372 = vmatprep.subr.mxu0 0.0
  %373 = vmatpush2.msra.mxu0 0.0
  %374 = vmatprep.subr.mxu0 0.0
  %375 = vmatpush2.msra.mxu0 0.0
  %376 = vmatprep.subr.mxu0 0.0
  %377 = vmatpush2.msra.mxu0 0.0
  %378 = vmatprep.subr.mxu0 0.0
  %379 = vmatpush2.msra.mxu0 0.0
  %380 = vmatprep.subr.mxu0 0.0
  %381 = vmatpush2.msra.mxu0 0.0
  %382 = vmatprep.subr.mxu0 0.0
  %383 = vmatpush2.msra.mxu0 0.0
  %384 = vmatprep.subr.mxu0 0.0
  %385 = vmatpush2.msra.mxu0 0.0
  %386 = vmatprep.subr.mxu0 0.0
  %387 = vmatpush2.msra.mxu0 0.0
  %388 = vmatprep.subr.mxu0 0.0
  %389 = vmatpush2.msra.mxu0 0.0
  %390 = vmatprep.mubr.f32.mxu0 0.0
  %391 = vmatmul.mubr.f32.gmra.mxu0 %v182
  %v392 = vpop.f32.mrf.mxu0
  %v393 = vadd.f32 0.0, %v392
  %v394 = vpop.f32.mrf.mxu0
  %v395 = vadd.f32 0.0, %v394
  %396 = vdwg.mxu0
  %397 = vmatprep.subr.mxu0 0.0
  %398 = vmatpush1.msra.mxu0 0.0
  %399 = vmatprep.subr.mxu0 0.0
  %400 = vmatpush1.msra.mxu0 0.0
  %401 = vmatprep.subr.mxu0 0.0
  %402 = vmatpush1.msra.mxu0 0.0
  %403 = vmatprep.subr.mxu0 0.0
  %404 = vmatpush1.msra.mxu0 0.0
  %405 = vmatprep.subr.mxu0 0.0
  %406 = vmatpush1.msra.mxu0 0.0
  %407 = vmatprep.subr.mxu0 0.0
  %408 = vmatpush1.msra.mxu0 0.0
  %409 = vmatprep.subr.mxu0 0.0
  %410 = vmatpush1.msra.mxu0 0.0
  %411 = vmatprep.subr.mxu0 0.0
  %412 = vmatpush1.msra.mxu0 0.0
  %413 = vmatprep.subr.mxu0 0.0
  %414 = vmatpush1.msra.mxu0 0.0
  %415 = vmatprep.subr.mxu0 0.0
  %416 = vmatpush1.msra.mxu0 0.0
  %417 = vmatprep.subr.mxu0 0.0
  %418 = vmatpush1.msra.mxu0 0.0
  %419 = vmatprep.subr.mxu0 0.0
  %420 = vmatpush1.msra.mxu0 0.0
  %421 = vmatprep.subr.mxu0 %v151
  %422 = vmatpush1.msra.mxu0 %v150
  %423 = vmatprep.subr.mxu0 %v115
  %424 = vmatpush1.msra.mxu0 %v114
  %425 = vmatprep.subr.mxu0 %v79
  %426 = vmatpush1.msra.mxu0 %v78
  %427 = vmatprep.subr.mxu0 %v43
  %428 = vmatpush1.msra.mxu0 %v42
  %429 = vmatprep.subr.mxu0 0.0
  %430 = vmatpush2.msra.mxu0 0.0
  %431 = vmatprep.subr.mxu0 0.0
  %432 = vmatpush2.msra.mxu0 0.0
  %433 = vmatprep.subr.mxu0 0.0
  %434 = vmatpush2.msra.mxu0 0.0
  %435 = vmatprep.subr.mxu0 0.0
  %436 = vmatpush2.msra.mxu0 0.0
  %437 = vmatprep.subr.mxu0 0.0
  %438 = vmatpush2.msra.mxu0 0.0
  %439 = vmatprep.subr.mxu0 0.0
  %440 = vmatpush2.msra.mxu0 0.0
  %441 = vmatprep.subr.mxu0 0.0
  %442 = vmatpush2.msra.mxu0 0.0
  %443 = vmatprep.subr.mxu0 0.0
  %444 = vmatpush2.msra.mxu0 0.0
  %445 = vmatprep.subr.mxu0 0.0
  %446 = vmatpush2.msra.mxu0 0.0
  %447 = vmatprep.subr.mxu0 0.0
  %448 = vmatpush2.msra.mxu0 0.0
  %449 = vmatprep.subr.mxu0 0.0
  %450 = vmatpush2.msra.mxu0 0.0
  %451 = vmatprep.subr.mxu0 0.0
  %452 = vmatpush2.msra.mxu0 0.0
  %453 = vmatprep.subr.mxu0 0.0
  %454 = vmatpush2.msra.mxu0 0.0
  %455 = vmatprep.subr.mxu0 0.0
  %456 = vmatpush2.msra.mxu0 0.0
  %457 = vmatprep.subr.mxu0 0.0
  %458 = vmatpush2.msra.mxu0 0.0
  %459 = vmatprep.subr.mxu0 0.0
  %460 = vmatpush2.msra.mxu0 0.0
  %461 = vmatprep.mubr.f32.mxu0 0.0
  %462 = vmatmul.mubr.f32.gmra.mxu0 %v182
  %v463 = vpop.f32.mrf.mxu0
  %v464 = vadd.f32 0.0, %v463
  %v465 = vpop.f32.mrf.mxu0
  %v466 = vadd.f32 0.0, %v465
  %467 = vdwg.mxu0
  %468 = vmatprep.subr.mxu0 0.0
  %469 = vmatpush1.msra.mxu0 0.0
  %470 = vmatprep.subr.mxu0 0.0
  %471 = vmatpush1.msra.mxu0 0.0
  %472 = vmatprep.subr.mxu0 0.0
  %473 = vmatpush1.msra.mxu0 0.0
  %474 = vmatprep.subr.mxu0 0.0
  %475 = vmatpush1.msra.mxu0 0.0
  %476 = vmatprep.subr.mxu0 0.0
  %477 = vmatpush1.msra.mxu0 0.0
  %478 = vmatprep.subr.mxu0 0.0
  %479 = vmatpush1.msra.mxu0 0.0
  %480 = vmatprep.subr.mxu0 0.0
  %481 = vmatpush1.msra.mxu0 0.0
  %482 = vmatprep.subr.mxu0 0.0
  %483 = vmatpush1.msra.mxu0 0.0
  %484 = vmatprep.subr.mxu0 0.0
  %485 = vmatpush1.msra.mxu0 0.0
  %486 = vmatprep.subr.mxu0 0.0
  %487 = vmatpush1.msra.mxu0 0.0
  %488 = vmatprep.subr.mxu0 0.0
  %489 = vmatpush1.msra.mxu0 0.0
  %490 = vmatprep.subr.mxu0 0.0
  %491 = vmatpush1.msra.mxu0 0.0
  %492 = vmatprep.subr.mxu0 %v153
  %493 = vmatpush1.msra.mxu0 %v152
  %494 = vmatprep.subr.mxu0 %v117
  %495 = vmatpush1.msra.mxu0 %v116
  %496 = vmatprep.subr.mxu0 %v81
  %497 = vmatpush1.msra.mxu0 %v80
  %498 = vmatprep.subr.mxu0 %v45
  %499 = vmatpush1.msra.mxu0 %v44
  %500 = vmatprep.subr.mxu0 0.0
  %501 = vmatpush2.msra.mxu0 0.0
  %502 = vmatprep.subr.mxu0 0.0
  %503 = vmatpush2.msra.mxu0 0.0
  %504 = vmatprep.subr.mxu0 0.0
  %505 = vmatpush2.msra.mxu0 0.0
  %506 = vmatprep.subr.mxu0 0.0
  %507 = vmatpush2.msra.mxu0 0.0
  %508 = vmatprep.subr.mxu0 0.0
  %509 = vmatpush2.msra.mxu0 0.0
  %510 = vmatprep.subr.mxu0 0.0
  %511 = vmatpush2.msra.mxu0 0.0
  %512 = vmatprep.subr.mxu0 0.0
  %513 = vmatpush2.msra.mxu0 0.0
  %514 = vmatprep.subr.mxu0 0.0
  %515 = vmatpush2.msra.mxu0 0.0
  %516 = vmatprep.subr.mxu0 0.0
  %517 = vmatpush2.msra.mxu0 0.0
  %518 = vmatprep.subr.mxu0 0.0
  %519 = vmatpush2.msra.mxu0 0.0
  %520 = vmatprep.subr.mxu0 0.0
  %521 = vmatpush2.msra.mxu0 0.0
  %522 = vmatprep.subr.mxu0 0.0
  %523 = vmatpush2.msra.mxu0 0.0
  %524 = vmatprep.subr.mxu0 0.0
  %525 = vmatpush2.msra.mxu0 0.0
  %526 = vmatprep.subr.mxu0 0.0
  %527 = vmatpush2.msra.mxu0 0.0
  %528 = vmatprep.subr.mxu0 0.0
  %529 = vmatpush2.msra.mxu0 0.0
  %530 = vmatprep.subr.mxu0 0.0
  %531 = vmatpush2.msra.mxu0 0.0
  %532 = vmatprep.mubr.f32.mxu0 0.0
  %533 = vmatmul.mubr.f32.gmra.mxu0 %v182
  %v534 = vpop.f32.mrf.mxu0
  %v535 = vadd.f32 0.0, %v534
  %v536 = vpop.f32.mrf.mxu0
  %v537 = vadd.f32 0.0, %v536
  %538 = vdwg.mxu0
  %539 = vmatprep.subr.mxu0 0.0
  %540 = vmatpush1.msra.mxu0 0.0
  %541 = vmatprep.subr.mxu0 0.0
  %542 = vmatpush1.msra.mxu0 0.0
  %543 = vmatprep.subr.mxu0 0.0
  %544 = vmatpush1.msra.mxu0 0.0
  %545 = vmatprep.subr.mxu0 0.0
  %546 = vmatpush1.msra.mxu0 0.0
  %547 = vmatprep.subr.mxu0 0.0
  %548 = vmatpush1.msra.mxu0 0.0
  %549 = vmatprep.subr.mxu0 0.0
  %550 = vmatpush1.msra.mxu0 0.0
  %551 = vmatprep.subr.mxu0 0.0
  %552 = vmatpush1.msra.mxu0 0.0
  %553 = vmatprep.subr.mxu0 0.0
  %554 = vmatpush1.msra.mxu0 0.0
  %555 = vmatprep.subr.mxu0 0.0
  %556 = vmatpush1.msra.mxu0 0.0
  %557 = vmatprep.subr.mxu0 0.0
  %558 = vmatpush1.msra.mxu0 0.0
  %559 = vmatprep.subr.mxu0 0.0
  %560 = vmatpush1.msra.mxu0 0.0
  %561 = vmatprep.subr.mxu0 0.0
  %562 = vmatpush1.msra.mxu0 0.0
  %563 = vmatprep.subr.mxu0 %v155
  %564 = vmatpush1.msra.mxu0 %v154
  %565 = vmatprep.subr.mxu0 %v119
  %566 = vmatpush1.msra.mxu0 %v118
  %567 = vmatprep.subr.mxu0 %v83
  %568 = vmatpush1.msra.mxu0 %v82
  %569 = vmatprep.subr.mxu0 %v47
  %570 = vmatpush1.msra.mxu0 %v46
  %571 = vmatprep.subr.mxu0 0.0
  %572 = vmatpush2.msra.mxu0 0.0
  %573 = vmatprep.subr.mxu0 0.0
  %574 = vmatpush2.msra.mxu0 0.0
  %575 = vmatprep.subr.mxu0 0.0
  %576 = vmatpush2.msra.mxu0 0.0
  %577 = vmatprep.subr.mxu0 0.0
  %578 = vmatpush2.msra.mxu0 0.0
  %579 = vmatprep.subr.mxu0 0.0
  %580 = vmatpush2.msra.mxu0 0.0
  %581 = vmatprep.subr.mxu0 0.0
  %582 = vmatpush2.msra.mxu0 0.0
  %583 = vmatprep.subr.mxu0 0.0
  %584 = vmatpush2.msra.mxu0 0.0
  %585 = vmatprep.subr.mxu0 0.0
  %586 = vmatpush2.msra.mxu0 0.0
  %587 = vmatprep.subr.mxu0 0.0
  %588 = vmatpush2.msra.mxu0 0.0
  %589 = vmatprep.subr.mxu0 0.0
  %590 = vmatpush2.msra.mxu0 0.0
  %591 = vmatprep.subr.mxu0 0.0
  %592 = vmatpush2.msra.mxu0 0.0
  %593 = vmatprep.subr.mxu0 0.0
  %594 = vmatpush2.msra.mxu0 0.0
  %595 = vmatprep.subr.mxu0 0.0
  %596 = vmatpush2.msra.mxu0 0.0
  %597 = vmatprep.subr.mxu0 0.0
  %598 = vmatpush2.msra.mxu0 0.0
  %599 = vmatprep.subr.mxu0 0.0
  %600 = vmatpush2.msra.mxu0 0.0
  %601 = vmatprep.subr.mxu0 0.0
  %602 = vmatpush2.msra.mxu0 0.0
  %603 = vmatprep.mubr.f32.mxu0 0.0
  %604 = vmatmul.mubr.f32.gmra.mxu0 %v182
  %v605 = vpop.f32.mrf.mxu0
  %v606 = vadd.f32 0.0, %v605
  %v607 = vpop.f32.mrf.mxu0
  %v608 = vadd.f32 0.0, %v607
  %609 = vdwg.mxu0
  %610 = vmatprep.subr.mxu0 0.0
  %611 = vmatpush1.msra.mxu0 0.0
  %612 = vmatprep.subr.mxu0 0.0
  %613 = vmatpush1.msra.mxu0 0.0
  %614 = vmatprep.subr.mxu0 0.0
  %615 = vmatpush1.msra.mxu0 0.0
  %616 = vmatprep.subr.mxu0 0.0
  %617 = vmatpush1.msra.mxu0 0.0
  %618 = vmatprep.subr.mxu0 0.0
  %619 = vmatpush1.msra.mxu0 0.0
  %620 = vmatprep.subr.mxu0 0.0
  %621 = vmatpush1.msra.mxu0 0.0
  %622 = vmatprep.subr.mxu0 0.0
  %623 = vmatpush1.msra.mxu0 0.0
  %624 = vmatprep.subr.mxu0 0.0
  %625 = vmatpush1.msra.mxu0 0.0
  %626 = vmatprep.subr.mxu0 0.0
  %627 = vmatpush1.msra.mxu0 0.0
  %628 = vmatprep.subr.mxu0 0.0
  %629 = vmatpush1.msra.mxu0 0.0
  %630 = vmatprep.subr.mxu0 0.0
  %631 = vmatpush1.msra.mxu0 0.0
  %632 = vmatprep.subr.mxu0 0.0
  %633 = vmatpush1.msra.mxu0 0.0
  %634 = vmatprep.subr.mxu0 %v157
  %635 = vmatpush1.msra.mxu0 %v156
  %636 = vmatprep.subr.mxu0 %v121
  %637 = vmatpush1.msra.mxu0 %v120
  %638 = vmatprep.subr.mxu0 %v85
  %639 = vmatpush1.msra.mxu0 %v84
  %640 = vmatprep.subr.mxu0 %v49
  %641 = vmatpush1.msra.mxu0 %v48
  %642 = vmatprep.subr.mxu0 0.0
  %643 = vmatpush2.msra.mxu0 0.0
  %644 = vmatprep.subr.mxu0 0.0
  %645 = vmatpush2.msra.mxu0 0.0
  %646 = vmatprep.subr.mxu0 0.0
  %647 = vmatpush2.msra.mxu0 0.0
  %648 = vmatprep.subr.mxu0 0.0
  %649 = vmatpush2.msra.mxu0 0.0
  %650 = vmatprep.subr.mxu0 0.0
  %651 = vmatpush2.msra.mxu0 0.0
  %652 = vmatprep.subr.mxu0 0.0
  %653 = vmatpush2.msra.mxu0 0.0
  %654 = vmatprep.subr.mxu0 0.0
  %655 = vmatpush2.msra.mxu0 0.0
  %656 = vmatprep.subr.mxu0 0.0
  %657 = vmatpush2.msra.mxu0 0.0
  %658 = vmatprep.subr.mxu0 0.0
  %659 = vmatpush2.msra.mxu0 0.0
  %660 = vmatprep.subr.mxu0 0.0
  %661 = vmatpush2.msra.mxu0 0.0
  %662 = vmatprep.subr.mxu0 0.0
  %663 = vmatpush2.msra.mxu0 0.0
  %664 = vmatprep.subr.mxu0 0.0
  %665 = vmatpush2.msra.mxu0 0.0
  %666 = vmatprep.subr.mxu0 0.0
  %667 = vmatpush2.msra.mxu0 0.0
  %668 = vmatprep.subr.mxu0 0.0
  %669 = vmatpush2.msra.mxu0 0.0
  %670 = vmatprep.subr.mxu0 0.0
  %671 = vmatpush2.msra.mxu0 0.0
  %672 = vmatprep.subr.mxu0 0.0
  %673 = vmatpush2.msra.mxu0 0.0
  %674 = vmatprep.mubr.f32.mxu0 0.0
  %675 = vmatmul.mubr.f32.gmra.mxu0 %v182
  %v676 = vpop.f32.mrf.mxu0
  %v677 = vadd.f32 0.0, %v676
  %v678 = vpop.f32.mrf.mxu0
  %v679 = vadd.f32 0.0, %v678
  %680 = vdwg.mxu0
  %681 = vmatprep.subr.mxu0 0.0
  %682 = vmatpush1.msra.mxu0 0.0
  %683 = vmatprep.subr.mxu0 0.0
  %684 = vmatpush1.msra.mxu0 0.0
  %685 = vmatprep.subr.mxu0 0.0
  %686 = vmatpush1.msra.mxu0 0.0
  %687 = vmatprep.subr.mxu0 0.0
  %688 = vmatpush1.msra.mxu0 0.0
  %689 = vmatprep.subr.mxu0 0.0
  %690 = vmatpush1.msra.mxu0 0.0
  %691 = vmatprep.subr.mxu0 0.0
  %692 = vmatpush1.msra.mxu0 0.0
  %693 = vmatprep.subr.mxu0 0.0
  %694 = vmatpush1.msra.mxu0 0.0
  %695 = vmatprep.subr.mxu0 0.0
  %696 = vmatpush1.msra.mxu0 0.0
  %697 = vmatprep.subr.mxu0 0.0
  %698 = vmatpush1.msra.mxu0 0.0
  %699 = vmatprep.subr.mxu0 0.0
  %700 = vmatpush1.msra.mxu0 0.0
  %701 = vmatprep.subr.mxu0 0.0
  %702 = vmatpush1.msra.mxu0 0.0
  %703 = vmatprep.subr.mxu0 0.0
  %704 = vmatpush1.msra.mxu0 0.0
  %705 = vmatprep.subr.mxu0 %v159
  %706 = vmatpush1.msra.mxu0 %v158
  %707 = vmatprep.subr.mxu0 %v123
  %708 = vmatpush1.msra.mxu0 %v122
  %709 = vmatprep.subr.mxu0 %v87
  %710 = vmatpush1.msra.mxu0 %v86
  %711 = vmatprep.subr.mxu0 %v51
  %712 = vmatpush1.msra.mxu0 %v50
  %713 = vmatprep.subr.mxu0 0.0
  %714 = vmatpush2.msra.mxu0 0.0
  %715 = vmatprep.subr.mxu0 0.0
  %716 = vmatpush2.msra.mxu0 0.0
  %717 = vmatprep.subr.mxu0 0.0
  %718 = vmatpush2.msra.mxu0 0.0
  %719 = vmatprep.subr.mxu0 0.0
  %720 = vmatpush2.msra.mxu0 0.0
  %721 = vmatprep.subr.mxu0 0.0
  %722 = vmatpush2.msra.mxu0 0.0
  %723 = vmatprep.subr.mxu0 0.0
  %724 = vmatpush2.msra.mxu0 0.0
  %725 = vmatprep.subr.mxu0 0.0
  %726 = vmatpush2.msra.mxu0 0.0
  %727 = vmatprep.subr.mxu0 0.0
  %728 = vmatpush2.msra.mxu0 0.0
  %729 = vmatprep.subr.mxu0 0.0
  %730 = vmatpush2.msra.mxu0 0.0
  %731 = vmatprep.subr.mxu0 0.0
  %732 = vmatpush2.msra.mxu0 0.0
  %733 = vmatprep.subr.mxu0 0.0
  %734 = vmatpush2.msra.mxu0 0.0
  %735 = vmatprep.subr.mxu0 0.0
  %736 = vmatpush2.msra.mxu0 0.0
  %737 = vmatprep.subr.mxu0 0.0
  %738 = vmatpush2.msra.mxu0 0.0
  %739 = vmatprep.subr.mxu0 0.0
  %740 = vmatpush2.msra.mxu0 0.0
  %741 = vmatprep.subr.mxu0 0.0
  %742 = vmatpush2.msra.mxu0 0.0
  %743 = vmatprep.subr.mxu0 0.0
  %744 = vmatpush2.msra.mxu0 0.0
  %745 = vmatprep.mubr.f32.mxu0 0.0
  %746 = vmatmul.mubr.f32.gmra.mxu0 %v182
  %v747 = vpop.f32.mrf.mxu0
  %v748 = vadd.f32 0.0, %v747
  %v749 = vpop.f32.mrf.mxu0
  %v750 = vadd.f32 0.0, %v749
  %751 = vdwg.mxu0
  %752 = vmatprep.subr.mxu0 0.0
  %753 = vmatpush1.msra.mxu0 0.0
  %754 = vmatprep.subr.mxu0 0.0
  %755 = vmatpush1.msra.mxu0 0.0
  %756 = vmatprep.subr.mxu0 0.0
  %757 = vmatpush1.msra.mxu0 0.0
  %758 = vmatprep.subr.mxu0 0.0
  %759 = vmatpush1.msra.mxu0 0.0
  %760 = vmatprep.subr.mxu0 0.0
  %761 = vmatpush1.msra.mxu0 0.0
  %762 = vmatprep.subr.mxu0 0.0
  %763 = vmatpush1.msra.mxu0 0.0
  %764 = vmatprep.subr.mxu0 0.0
  %765 = vmatpush1.msra.mxu0 0.0
  %766 = vmatprep.subr.mxu0 0.0
  %767 = vmatpush1.msra.mxu0 0.0
  %768 = vmatprep.subr.mxu0 0.0
  %769 = vmatpush1.msra.mxu0 0.0
  %770 = vmatprep.subr.mxu0 0.0
  %771 = vmatpush1.msra.mxu0 0.0
  %772 = vmatprep.subr.mxu0 0.0
  %773 = vmatpush1.msra.mxu0 0.0
  %774 = vmatprep.subr.mxu0 0.0
  %775 = vmatpush1.msra.mxu0 0.0
  %776 = vmatprep.subr.mxu0 %v161
  %777 = vmatpush1.msra.mxu0 %v160
  %778 = vmatprep.subr.mxu0 %v125
  %779 = vmatpush1.msra.mxu0 %v124
  %780 = vmatprep.subr.mxu0 %v89
  %781 = vmatpush1.msra.mxu0 %v88
  %782 = vmatprep.subr.mxu0 %v53
  %783 = vmatpush1.msra.mxu0 %v52
  %784 = vmatprep.subr.mxu0 0.0
  %785 = vmatpush2.msra.mxu0 0.0
  %786 = vmatprep.subr.mxu0 0.0
  %787 = vmatpush2.msra.mxu0 0.0
  %788 = vmatprep.subr.mxu0 0.0
  %789 = vmatpush2.msra.mxu0 0.0
  %790 = vmatprep.subr.mxu0 0.0
  %791 = vmatpush2.msra.mxu0 0.0
  %792 = vmatprep.subr.mxu0 0.0
  %793 = vmatpush2.msra.mxu0 0.0
  %794 = vmatprep.subr.mxu0 0.0
  %795 = vmatpush2.msra.mxu0 0.0
  %796 = vmatprep.subr.mxu0 0.0
  %797 = vmatpush2.msra.mxu0 0.0
  %798 = vmatprep.subr.mxu0 0.0
  %799 = vmatpush2.msra.mxu0 0.0
  %800 = vmatprep.subr.mxu0 0.0
  %801 = vmatpush2.msra.mxu0 0.0
  %802 = vmatprep.subr.mxu0 0.0
  %803 = vmatpush2.msra.mxu0 0.0
  %804 = vmatprep.subr.mxu0 0.0
  %805 = vmatpush2.msra.mxu0 0.0
  %806 = vmatprep.subr.mxu0 0.0
  %807 = vmatpush2.msra.mxu0 0.0
  %808 = vmatprep.subr.mxu0 0.0
  %809 = vmatpush2.msra.mxu0 0.0
  %810 = vmatprep.subr.mxu0 0.0
  %811 = vmatpush2.msra.mxu0 0.0
  %812 = vmatprep.subr.mxu0 0.0
  %813 = vmatpush2.msra.mxu0 0.0
  %814 = vmatprep.subr.mxu0 0.0
  %815 = vmatpush2.msra.mxu0 0.0
  %816 = vmatprep.mubr.f32.mxu0 0.0
  %817 = vmatmul.mubr.f32.gmra.mxu0 %v182
  %v818 = vpop.f32.mrf.mxu0
  %v819 = vadd.f32 0.0, %v818
  %v820 = vpop.f32.mrf.mxu0
  %v821 = vadd.f32 0.0, %v820
  %822 = vdwg.mxu0
  %823 = vmatprep.subr.mxu0 0.0
  %824 = vmatpush1.msra.mxu0 0.0
  %825 = vmatprep.subr.mxu0 0.0
  %826 = vmatpush1.msra.mxu0 0.0
  %827 = vmatprep.subr.mxu0 0.0
  %828 = vmatpush1.msra.mxu0 0.0
  %829 = vmatprep.subr.mxu0 0.0
  %830 = vmatpush1.msra.mxu0 0.0
  %831 = vmatprep.subr.mxu0 0.0
  %832 = vmatpush1.msra.mxu0 0.0
  %833 = vmatprep.subr.mxu0 0.0
  %834 = vmatpush1.msra.mxu0 0.0
  %835 = vmatprep.subr.mxu0 0.0
  %836 = vmatpush1.msra.mxu0 0.0
  %837 = vmatprep.subr.mxu0 0.0
  %838 = vmatpush1.msra.mxu0 0.0
  %839 = vmatprep.subr.mxu0 0.0
  %840 = vmatpush1.msra.mxu0 0.0
  %841 = vmatprep.subr.mxu0 0.0
  %842 = vmatpush1.msra.mxu0 0.0
  %843 = vmatprep.subr.mxu0 0.0
  %844 = vmatpush1.msra.mxu0 0.0
  %845 = vmatprep.subr.mxu0 0.0
  %846 = vmatpush1.msra.mxu0 0.0
  %847 = vmatprep.subr.mxu0 %v163
  %848 = vmatpush1.msra.mxu0 %v162
  %849 = vmatprep.subr.mxu0 %v127
  %850 = vmatpush1.msra.mxu0 %v126
  %851 = vmatprep.subr.mxu0 %v91
  %852 = vmatpush1.msra.mxu0 %v90
  %853 = vmatprep.subr.mxu0 %v55
  %854 = vmatpush1.msra.mxu0 %v54
  %855 = vmatprep.subr.mxu0 0.0
  %856 = vmatpush2.msra.mxu0 0.0
  %857 = vmatprep.subr.mxu0 0.0
  %858 = vmatpush2.msra.mxu0 0.0
  %859 = vmatprep.subr.mxu0 0.0
  %860 = vmatpush2.msra.mxu0 0.0
  %861 = vmatprep.subr.mxu0 0.0
  %862 = vmatpush2.msra.mxu0 0.0
  %863 = vmatprep.subr.mxu0 0.0
  %864 = vmatpush2.msra.mxu0 0.0
  %865 = vmatprep.subr.mxu0 0.0
  %866 = vmatpush2.msra.mxu0 0.0
  %867 = vmatprep.subr.mxu0 0.0
  %868 = vmatpush2.msra.mxu0 0.0
  %869 = vmatprep.subr.mxu0 0.0
  %870 = vmatpush2.msra.mxu0 0.0
  %871 = vmatprep.subr.mxu0 0.0
  %872 = vmatpush2.msra.mxu0 0.0
  %873 = vmatprep.subr.mxu0 0.0
  %874 = vmatpush2.msra.mxu0 0.0
  %875 = vmatprep.subr.mxu0 0.0
  %876 = vmatpush2.msra.mxu0 0.0
  %877 = vmatprep.subr.mxu0 0.0
  %878 = vmatpush2.msra.mxu0 0.0
  %879 = vmatprep.subr.mxu0 0.0
  %880 = vmatpush2.msra.mxu0 0.0
  %881 = vmatprep.subr.mxu0 0.0
  %882 = vmatpush2.msra.mxu0 0.0
  %883 = vmatprep.subr.mxu0 0.0
  %884 = vmatpush2.msra.mxu0 0.0
  %885 = vmatprep.subr.mxu0 0.0
  %886 = vmatpush2.msra.mxu0 0.0
  %887 = vmatprep.mubr.f32.mxu0 0.0
  %888 = vmatmul.mubr.f32.gmra.mxu0 %v182
  %v889 = vpop.f32.mrf.mxu0
  %v890 = vadd.f32 0.0, %v889
  %v891 = vpop.f32.mrf.mxu0
  %v892 = vadd.f32 0.0, %v891
  %893 = vdwg.mxu0
  %894 = vmatprep.subr.mxu0 0.0
  %895 = vmatpush1.msra.mxu0 0.0
  %896 = vmatprep.subr.mxu0 0.0
  %897 = vmatpush1.msra.mxu0 0.0
  %898 = vmatprep.subr.mxu0 0.0
  %899 = vmatpush1.msra.mxu0 0.0
  %900 = vmatprep.subr.mxu0 0.0
  %901 = vmatpush1.msra.mxu0 0.0
  %902 = vmatprep.subr.mxu0 0.0
  %903 = vmatpush1.msra.mxu0 0.0
  %904 = vmatprep.subr.mxu0 0.0
  %905 = vmatpush1.msra.mxu0 0.0
  %906 = vmatprep.subr.mxu0 0.0
  %907 = vmatpush1.msra.mxu0 0.0
  %908 = vmatprep.subr.mxu0 0.0
  %909 = vmatpush1.msra.mxu0 0.0
  %910 = vmatprep.subr.mxu0 0.0
  %911 = vmatpush1.msra.mxu0 0.0
  %912 = vmatprep.subr.mxu0 0.0
  %913 = vmatpush1.msra.mxu0 0.0
  %914 = vmatprep.subr.mxu0 0.0
  %915 = vmatpush1.msra.mxu0 0.0
  %916 = vmatprep.subr.mxu0 0.0
  %917 = vmatpush1.msra.mxu0 0.0
  %918 = vmatprep.subr.mxu0 %v165
  %919 = vmatpush1.msra.mxu0 %v164
  %920 = vmatprep.subr.mxu0 %v129
  %921 = vmatpush1.msra.mxu0 %v128
  %922 = vmatprep.subr.mxu0 %v93
  %923 = vmatpush1.msra.mxu0 %v92
  %924 = vmatprep.subr.mxu0 %v57
  %925 = vmatpush1.msra.mxu0 %v56
  %926 = vmatprep.subr.mxu0 0.0
  %927 = vmatpush2.msra.mxu0 0.0
  %928 = vmatprep.subr.mxu0 0.0
  %929 = vmatpush2.msra.mxu0 0.0
  %930 = vmatprep.subr.mxu0 0.0
  %931 = vmatpush2.msra.mxu0 0.0
  %932 = vmatprep.subr.mxu0 0.0
  %933 = vmatpush2.msra.mxu0 0.0
  %934 = vmatprep.subr.mxu0 0.0
  %935 = vmatpush2.msra.mxu0 0.0
  %936 = vmatprep.subr.mxu0 0.0
  %937 = vmatpush2.msra.mxu0 0.0
  %938 = vmatprep.subr.mxu0 0.0
  %939 = vmatpush2.msra.mxu0 0.0
  %940 = vmatprep.subr.mxu0 0.0
  %941 = vmatpush2.msra.mxu0 0.0
  %942 = vmatprep.subr.mxu0 0.0
  %943 = vmatpush2.msra.mxu0 0.0
  %944 = vmatprep.subr.mxu0 0.0
  %945 = vmatpush2.msra.mxu0 0.0
  %946 = vmatprep.subr.mxu0 0.0
  %947 = vmatpush2.msra.mxu0 0.0
  %948 = vmatprep.subr.mxu0 0.0
  %949 = vmatpush2.msra.mxu0 0.0
  %950 = vmatprep.subr.mxu0 0.0
  %951 = vmatpush2.msra.mxu0 0.0
  %952 = vmatprep.subr.mxu0 0.0
  %953 = vmatpush2.msra.mxu0 0.0
  %954 = vmatprep.subr.mxu0 0.0
  %955 = vmatpush2.msra.mxu0 0.0
  %956 = vmatprep.subr.mxu0 0.0
  %957 = vmatpush2.msra.mxu0 0.0
  %958 = vmatprep.mubr.f32.mxu0 0.0
  %959 = vmatmul.mubr.f32.gmra.mxu0 %v182
  %v960 = vpop.f32.mrf.mxu0
  %v961 = vadd.f32 0.0, %v960
  %v962 = vpop.f32.mrf.mxu0
  %v963 = vadd.f32 0.0, %v962
  %964 = vdwg.mxu0
  %965 = vmatprep.subr.mxu0 0.0
  %966 = vmatpush1.msra.mxu0 0.0
  %967 = vmatprep.subr.mxu0 0.0
  %968 = vmatpush1.msra.mxu0 0.0
  %969 = vmatprep.subr.mxu0 0.0
  %970 = vmatpush1.msra.mxu0 0.0
  %971 = vmatprep.subr.mxu0 0.0
  %972 = vmatpush1.msra.mxu0 0.0
  %973 = vmatprep.subr.mxu0 0.0
  %974 = vmatpush1.msra.mxu0 0.0
  %975 = vmatprep.subr.mxu0 0.0
  %976 = vmatpush1.msra.mxu0 0.0
  %977 = vmatprep.subr.mxu0 0.0
  %978 = vmatpush1.msra.mxu0 0.0
  %979 = vmatprep.subr.mxu0 0.0
  %980 = vmatpush1.msra.mxu0 0.0
  %981 = vmatprep.subr.mxu0 0.0
  %982 = vmatpush1.msra.mxu0 0.0
  %983 = vmatprep.subr.mxu0 0.0
  %984 = vmatpush1.msra.mxu0 0.0
  %985 = vmatprep.subr.mxu0 0.0
  %986 = vmatpush1.msra.mxu0 0.0
  %987 = vmatprep.subr.mxu0 0.0
  %988 = vmatpush1.msra.mxu0 0.0
  %989 = vmatprep.subr.mxu0 %v167
  %990 = vmatpush1.msra.mxu0 %v166
  %991 = vmatprep.subr.mxu0 %v131
  %992 = vmatpush1.msra.mxu0 %v130
  %993 = vmatprep.subr.mxu0 %v95
  %994 = vmatpush1.msra.mxu0 %v94
  %995 = vmatprep.subr.mxu0 %v59
  %996 = vmatpush1.msra.mxu0 %v58
  %997 = vmatprep.subr.mxu0 0.0
  %998 = vmatpush2.msra.mxu0 0.0
  %999 = vmatprep.subr.mxu0 0.0
  %1000 = vmatpush2.msra.mxu0 0.0
  %1001 = vmatprep.subr.mxu0 0.0
  %1002 = vmatpush2.msra.mxu0 0.0
  %1003 = vmatprep.subr.mxu0 0.0
  %1004 = vmatpush2.msra.mxu0 0.0
  %1005 = vmatprep.subr.mxu0 0.0
  %1006 = vmatpush2.msra.mxu0 0.0
  %1007 = vmatprep.subr.mxu0 0.0
  %1008 = vmatpush2.msra.mxu0 0.0
  %1009 = vmatprep.subr.mxu0 0.0
  %1010 = vmatpush2.msra.mxu0 0.0
  %1011 = vmatprep.subr.mxu0 0.0
  %1012 = vmatpush2.msra.mxu0 0.0
  %1013 = vmatprep.subr.mxu0 0.0
  %1014 = vmatpush2.msra.mxu0 0.0
  %1015 = vmatprep.subr.mxu0 0.0
  %1016 = vmatpush2.msra.mxu0 0.0
  %1017 = vmatprep.subr.mxu0 0.0
  %1018 = vmatpush2.msra.mxu0 0.0
  %1019 = vmatprep.subr.mxu0 0.0
  %1020 = vmatpush2.msra.mxu0 0.0
  %1021 = vmatprep.subr.mxu0 0.0
  %1022 = vmatpush2.msra.mxu0 0.0
  %1023 = vmatprep.subr.mxu0 0.0
  %1024 = vmatpush2.msra.mxu0 0.0
  %1025 = vmatprep.subr.mxu0 0.0
  %1026 = vmatpush2.msra.mxu0 0.0
  %1027 = vmatprep.subr.mxu0 0.0
  %1028 = vmatpush2.msra.mxu0 0.0
  %1029 = vmatprep.mubr.f32.mxu0 0.0
  %1030 = vmatmul.mubr.f32.gmra.mxu0 %v182
  %v1031 = vpop.f32.mrf.mxu0
  %v1032 = vadd.f32 0.0, %v1031
  %v1033 = vpop.f32.mrf.mxu0
  %v1034 = vadd.f32 0.0, %v1033
  %1035 = vdwg.mxu0
  %1036 = vmatprep.subr.mxu0 0.0
  %1037 = vmatpush1.msra.mxu0 0.0
  %1038 = vmatprep.subr.mxu0 0.0
  %1039 = vmatpush1.msra.mxu0 0.0
  %1040 = vmatprep.subr.mxu0 0.0
  %1041 = vmatpush1.msra.mxu0 0.0
  %1042 = vmatprep.subr.mxu0 0.0
  %1043 = vmatpush1.msra.mxu0 0.0
  %1044 = vmatprep.subr.mxu0 0.0
  %1045 = vmatpush1.msra.mxu0 0.0
  %1046 = vmatprep.subr.mxu0 0.0
  %1047 = vmatpush1.msra.mxu0 0.0
  %1048 = vmatprep.subr.mxu0 0.0
  %1049 = vmatpush1.msra.mxu0 0.0
  %1050 = vmatprep.subr.mxu0 0.0
  %1051 = vmatpush1.msra.mxu0 0.0
  %1052 = vmatprep.subr.mxu0 0.0
  %1053 = vmatpush1.msra.mxu0 0.0
  %1054 = vmatprep.subr.mxu0 0.0
  %1055 = vmatpush1.msra.mxu0 0.0
  %1056 = vmatprep.subr.mxu0 0.0
  %1057 = vmatpush1.msra.mxu0 0.0
  %1058 = vmatprep.subr.mxu0 0.0
  %1059 = vmatpush1.msra.mxu0 0.0
  %1060 = vmatprep.subr.mxu0 %v169
  %1061 = vmatpush1.msra.mxu0 %v168
  %1062 = vmatprep.subr.mxu0 %v133
  %1063 = vmatpush1.msra.mxu0 %v132
  %1064 = vmatprep.subr.mxu0 %v97
  %1065 = vmatpush1.msra.mxu0 %v96
  %1066 = vmatprep.subr.mxu0 %v61
  %1067 = vmatpush1.msra.mxu0 %v60
  %1068 = vmatprep.subr.mxu0 0.0
  %1069 = vmatpush2.msra.mxu0 0.0
  %1070 = vmatprep.subr.mxu0 0.0
  %1071 = vmatpush2.msra.mxu0 0.0
  %1072 = vmatprep.subr.mxu0 0.0
  %1073 = vmatpush2.msra.mxu0 0.0
  %1074 = vmatprep.subr.mxu0 0.0
  %1075 = vmatpush2.msra.mxu0 0.0
  %1076 = vmatprep.subr.mxu0 0.0
  %1077 = vmatpush2.msra.mxu0 0.0
  %1078 = vmatprep.subr.mxu0 0.0
  %1079 = vmatpush2.msra.mxu0 0.0
  %1080 = vmatprep.subr.mxu0 0.0
  %1081 = vmatpush2.msra.mxu0 0.0
  %1082 = vmatprep.subr.mxu0 0.0
  %1083 = vmatpush2.msra.mxu0 0.0
  %1084 = vmatprep.subr.mxu0 0.0
  %1085 = vmatpush2.msra.mxu0 0.0
  %1086 = vmatprep.subr.mxu0 0.0
  %1087 = vmatpush2.msra.mxu0 0.0
  %1088 = vmatprep.subr.mxu0 0.0
  %1089 = vmatpush2.msra.mxu0 0.0
  %1090 = vmatprep.subr.mxu0 0.0
  %1091 = vmatpush2.msra.mxu0 0.0
  %1092 = vmatprep.subr.mxu0 0.0
  %1093 = vmatpush2.msra.mxu0 0.0
  %1094 = vmatprep.subr.mxu0 0.0
  %1095 = vmatpush2.msra.mxu0 0.0
  %1096 = vmatprep.subr.mxu0 0.0
  %1097 = vmatpush2.msra.mxu0 0.0
  %1098 = vmatprep.subr.mxu0 0.0
  %1099 = vmatpush2.msra.mxu0 0.0
  %1100 = vmatprep.mubr.f32.mxu0 0.0
  %1101 = vmatmul.mubr.f32.gmra.mxu0 %v182
  %v1102 = vpop.f32.mrf.mxu0
  %v1103 = vadd.f32 0.0, %v1102
  %v1104 = vpop.f32.mrf.mxu0
  %v1105 = vadd.f32 0.0, %v1104
  %1106 = vdwg.mxu0
  %1107 = vmatprep.subr.mxu0 0.0
  %1108 = vmatpush1.msra.mxu0 0.0
  %1109 = vmatprep.subr.mxu0 0.0
  %1110 = vmatpush1.msra.mxu0 0.0
  %1111 = vmatprep.subr.mxu0 0.0
  %1112 = vmatpush1.msra.mxu0 0.0
  %1113 = vmatprep.subr.mxu0 0.0
  %1114 = vmatpush1.msra.mxu0 0.0
  %1115 = vmatprep.subr.mxu0 0.0
  %1116 = vmatpush1.msra.mxu0 0.0
  %1117 = vmatprep.subr.mxu0 0.0
  %1118 = vmatpush1.msra.mxu0 0.0
  %1119 = vmatprep.subr.mxu0 0.0
  %1120 = vmatpush1.msra.mxu0 0.0
  %1121 = vmatprep.subr.mxu0 0.0
  %1122 = vmatpush1.msra.mxu0 0.0
  %1123 = vmatprep.subr.mxu0 0.0
  %1124 = vmatpush1.msra.mxu0 0.0
  %1125 = vmatprep.subr.mxu0 0.0
  %1126 = vmatpush1.msra.mxu0 0.0
  %1127 = vmatprep.subr.mxu0 0.0
  %1128 = vmatpush1.msra.mxu0 0.0
  %1129 = vmatprep.subr.mxu0 0.0
  %1130 = vmatpush1.msra.mxu0 0.0
  %1131 = vmatprep.subr.mxu0 %v171
  %1132 = vmatpush1.msra.mxu0 %v170
  %1133 = vmatprep.subr.mxu0 %v135
  %1134 = vmatpush1.msra.mxu0 %v134
  %1135 = vmatprep.subr.mxu0 %v99
  %1136 = vmatpush1.msra.mxu0 %v98
  %1137 = vmatprep.subr.mxu0 %v63
  %1138 = vmatpush1.msra.mxu0 %v62
  %1139 = vmatprep.subr.mxu0 0.0
  %1140 = vmatpush2.msra.mxu0 0.0
  %1141 = vmatprep.subr.mxu0 0.0
  %1142 = vmatpush2.msra.mxu0 0.0
  %1143 = vmatprep.subr.mxu0 0.0
  %1144 = vmatpush2.msra.mxu0 0.0
  %1145 = vmatprep.subr.mxu0 0.0
  %1146 = vmatpush2.msra.mxu0 0.0
  %1147 = vmatprep.subr.mxu0 0.0
  %1148 = vmatpush2.msra.mxu0 0.0
  %1149 = vmatprep.subr.mxu0 0.0
  %1150 = vmatpush2.msra.mxu0 0.0
  %1151 = vmatprep.subr.mxu0 0.0
  %1152 = vmatpush2.msra.mxu0 0.0
  %1153 = vmatprep.subr.mxu0 0.0
  %1154 = vmatpush2.msra.mxu0 0.0
  %1155 = vmatprep.subr.mxu0 0.0
  %1156 = vmatpush2.msra.mxu0 0.0
  %1157 = vmatprep.subr.mxu0 0.0
  %1158 = vmatpush2.msra.mxu0 0.0
  %1159 = vmatprep.subr.mxu0 0.0
  %1160 = vmatpush2.msra.mxu0 0.0
  %1161 = vmatprep.subr.mxu0 0.0
  %1162 = vmatpush2.msra.mxu0 0.0
  %1163 = vmatprep.subr.mxu0 0.0
  %1164 = vmatpush2.msra.mxu0 0.0
  %1165 = vmatprep.subr.mxu0 0.0
  %1166 = vmatpush2.msra.mxu0 0.0
  %1167 = vmatprep.subr.mxu0 0.0
  %1168 = vmatpush2.msra.mxu0 0.0
  %1169 = vmatprep.subr.mxu0 0.0
  %1170 = vmatpush2.msra.mxu0 0.0
  %1171 = vmatprep.mubr.f32.mxu0 0.0
  %1172 = vmatmul.mubr.f32.gmra.mxu0 %v182
  %v1173 = vpop.f32.mrf.mxu0
  %v1174 = vadd.f32 0.0, %v1173
  %v1175 = vpop.f32.mrf.mxu0
  %v1176 = vadd.f32 0.0, %v1175
  %1177 = vdwg.mxu0
  %1178 = vmatprep.subr.mxu0 0.0
  %1179 = vmatpush1.msra.mxu0 0.0
  %1180 = vmatprep.subr.mxu0 0.0
  %1181 = vmatpush1.msra.mxu0 0.0
  %1182 = vmatprep.subr.mxu0 0.0
  %1183 = vmatpush1.msra.mxu0 0.0
  %1184 = vmatprep.subr.mxu0 0.0
  %1185 = vmatpush1.msra.mxu0 0.0
  %1186 = vmatprep.subr.mxu0 0.0
  %1187 = vmatpush1.msra.mxu0 0.0
  %1188 = vmatprep.subr.mxu0 0.0
  %1189 = vmatpush1.msra.mxu0 0.0
  %1190 = vmatprep.subr.mxu0 0.0
  %1191 = vmatpush1.msra.mxu0 0.0
  %1192 = vmatprep.subr.mxu0 0.0
  %1193 = vmatpush1.msra.mxu0 0.0
  %1194 = vmatprep.subr.mxu0 0.0
  %1195 = vmatpush1.msra.mxu0 0.0
  %1196 = vmatprep.subr.mxu0 0.0
  %1197 = vmatpush1.msra.mxu0 0.0
  %1198 = vmatprep.subr.mxu0 0.0
  %1199 = vmatpush1.msra.mxu0 0.0
  %1200 = vmatprep.subr.mxu0 0.0
  %1201 = vmatpush1.msra.mxu0 0.0
  %1202 = vmatprep.subr.mxu0 %v173
  %1203 = vmatpush1.msra.mxu0 %v172
  %1204 = vmatprep.subr.mxu0 %v137
  %1205 = vmatpush1.msra.mxu0 %v136
  %1206 = vmatprep.subr.mxu0 %v101
  %1207 = vmatpush1.msra.mxu0 %v100
  %1208 = vmatprep.subr.mxu0 %v65
  %1209 = vmatpush1.msra.mxu0 %v64
  %1210 = vmatprep.subr.mxu0 0.0
  %1211 = vmatpush2.msra.mxu0 0.0
  %1212 = vmatprep.subr.mxu0 0.0
  %1213 = vmatpush2.msra.mxu0 0.0
  %1214 = vmatprep.subr.mxu0 0.0
  %1215 = vmatpush2.msra.mxu0 0.0
  %1216 = vmatprep.subr.mxu0 0.0
  %1217 = vmatpush2.msra.mxu0 0.0
  %1218 = vmatprep.subr.mxu0 0.0
  %1219 = vmatpush2.msra.mxu0 0.0
  %1220 = vmatprep.subr.mxu0 0.0
  %1221 = vmatpush2.msra.mxu0 0.0
  %1222 = vmatprep.subr.mxu0 0.0
  %1223 = vmatpush2.msra.mxu0 0.0
  %1224 = vmatprep.subr.mxu0 0.0
  %1225 = vmatpush2.msra.mxu0 0.0
  %1226 = vmatprep.subr.mxu0 0.0
  %1227 = vmatpush2.msra.mxu0 0.0
  %1228 = vmatprep.subr.mxu0 0.0
  %1229 = vmatpush2.msra.mxu0 0.0
  %1230 = vmatprep.subr.mxu0 0.0
  %1231 = vmatpush2.msra.mxu0 0.0
  %1232 = vmatprep.subr.mxu0 0.0
  %1233 = vmatpush2.msra.mxu0 0.0
  %1234 = vmatprep.subr.mxu0 0.0
  %1235 = vmatpush2.msra.mxu0 0.0
  %1236 = vmatprep.subr.mxu0 0.0
  %1237 = vmatpush2.msra.mxu0 0.0
  %1238 = vmatprep.subr.mxu0 0.0
  %1239 = vmatpush2.msra.mxu0 0.0
  %1240 = vmatprep.subr.mxu0 0.0
  %1241 = vmatpush2.msra.mxu0 0.0
  %1242 = vmatprep.mubr.f32.mxu0 0.0
  %1243 = vmatmul.mubr.f32.gmra.mxu0 %v182
  %v1244 = vpop.f32.mrf.mxu0
  %v1245 = vadd.f32 0.0, %v1244
  %v1246 = vpop.f32.mrf.mxu0
  %v1247 = vadd.f32 0.0, %v1246
  %1248 = vdwg.mxu0
  %1249 = vmatprep.subr.mxu0 0.0
  %1250 = vmatpush1.msra.mxu0 0.0
  %1251 = vmatprep.subr.mxu0 0.0
  %1252 = vmatpush1.msra.mxu0 0.0
  %1253 = vmatprep.subr.mxu0 0.0
  %1254 = vmatpush1.msra.mxu0 0.0
  %1255 = vmatprep.subr.mxu0 0.0
  %1256 = vmatpush1.msra.mxu0 0.0
  %1257 = vmatprep.subr.mxu0 0.0
  %1258 = vmatpush1.msra.mxu0 0.0
  %1259 = vmatprep.subr.mxu0 0.0
  %1260 = vmatpush1.msra.mxu0 0.0
  %1261 = vmatprep.subr.mxu0 0.0
  %1262 = vmatpush1.msra.mxu0 0.0
  %1263 = vmatprep.subr.mxu0 0.0
  %1264 = vmatpush1.msra.mxu0 0.0
  %1265 = vmatprep.subr.mxu0 0.0
  %1266 = vmatpush1.msra.mxu0 0.0
  %1267 = vmatprep.subr.mxu0 0.0
  %1268 = vmatpush1.msra.mxu0 0.0
  %1269 = vmatprep.subr.mxu0 0.0
  %1270 = vmatpush1.msra.mxu0 0.0
  %1271 = vmatprep.subr.mxu0 0.0
  %1272 = vmatpush1.msra.mxu0 0.0
  %1273 = vmatprep.subr.mxu0 %v175
  %1274 = vmatpush1.msra.mxu0 %v174
  %1275 = vmatprep.subr.mxu0 %v139
  %1276 = vmatpush1.msra.mxu0 %v138
  %1277 = vmatprep.subr.mxu0 %v103
  %1278 = vmatpush1.msra.mxu0 %v102
  %1279 = vmatprep.subr.mxu0 %v67
  %1280 = vmatpush1.msra.mxu0 %v66
  %1281 = vmatprep.subr.mxu0 0.0
  %1282 = vmatpush2.msra.mxu0 0.0
  %1283 = vmatprep.subr.mxu0 0.0
  %1284 = vmatpush2.msra.mxu0 0.0
  %1285 = vmatprep.subr.mxu0 0.0
  %1286 = vmatpush2.msra.mxu0 0.0
  %1287 = vmatprep.subr.mxu0 0.0
  %1288 = vmatpush2.msra.mxu0 0.0
  %1289 = vmatprep.subr.mxu0 0.0
  %1290 = vmatpush2.msra.mxu0 0.0
  %1291 = vmatprep.subr.mxu0 0.0
  %1292 = vmatpush2.msra.mxu0 0.0
  %1293 = vmatprep.subr.mxu0 0.0
  %1294 = vmatpush2.msra.mxu0 0.0
  %1295 = vmatprep.subr.mxu0 0.0
  %1296 = vmatpush2.msra.mxu0 0.0
  %1297 = vmatprep.subr.mxu0 0.0
  %1298 = vmatpush2.msra.mxu0 0.0
  %1299 = vmatprep.subr.mxu0 0.0
  %1300 = vmatpush2.msra.mxu0 0.0
  %1301 = vmatprep.subr.mxu0 0.0
  %1302 = vmatpush2.msra.mxu0 0.0
  %1303 = vmatprep.subr.mxu0 0.0
  %1304 = vmatpush2.msra.mxu0 0.0
  %1305 = vmatprep.subr.mxu0 0.0
  %1306 = vmatpush2.msra.mxu0 0.0
  %1307 = vmatprep.subr.mxu0 0.0
  %1308 = vmatpush2.msra.mxu0 0.0
  %1309 = vmatprep.subr.mxu0 0.0
  %1310 = vmatpush2.msra.mxu0 0.0
  %1311 = vmatprep.subr.mxu0 0.0
  %1312 = vmatpush2.msra.mxu0 0.0
  %1313 = vmatprep.mubr.f32.mxu0 0.0
  %1314 = vmatmul.mubr.f32.gmra.mxu0 %v182
  %v1315 = vpop.f32.mrf.mxu0
  %v1316 = vadd.f32 0.0, %v1315
  %v1317 = vpop.f32.mrf.mxu0
  %v1318 = vadd.f32 0.0, %v1317
  %1319 = vdwg.mxu0
  %1320 = vmatprep.subr.mxu0 0.0
  %1321 = vmatpush1.msra.mxu0 0.0
  %1322 = vmatprep.subr.mxu0 0.0
  %1323 = vmatpush1.msra.mxu0 0.0
  %1324 = vmatprep.subr.mxu0 0.0
  %1325 = vmatpush1.msra.mxu0 0.0
  %1326 = vmatprep.subr.mxu0 0.0
  %1327 = vmatpush1.msra.mxu0 0.0
  %1328 = vmatprep.subr.mxu0 0.0
  %1329 = vmatpush1.msra.mxu0 0.0
  %1330 = vmatprep.subr.mxu0 0.0
  %1331 = vmatpush1.msra.mxu0 0.0
  %1332 = vmatprep.subr.mxu0 0.0
  %1333 = vmatpush1.msra.mxu0 0.0
  %1334 = vmatprep.subr.mxu0 0.0
  %1335 = vmatpush1.msra.mxu0 0.0
  %1336 = vmatprep.subr.mxu0 0.0
  %1337 = vmatpush1.msra.mxu0 0.0
  %1338 = vmatprep.subr.mxu0 0.0
  %1339 = vmatpush1.msra.mxu0 0.0
  %1340 = vmatprep.subr.mxu0 0.0
  %1341 = vmatpush1.msra.mxu0 0.0
  %1342 = vmatprep.subr.mxu0 0.0
  %1343 = vmatpush1.msra.mxu0 0.0
  %1344 = vmatprep.subr.mxu0 %v177
  %1345 = vmatpush1.msra.mxu0 %v176
  %1346 = vmatprep.subr.mxu0 %v141
  %1347 = vmatpush1.msra.mxu0 %v140
  %1348 = vmatprep.subr.mxu0 %v105
  %1349 = vmatpush1.msra.mxu0 %v104
  %1350 = vmatprep.subr.mxu0 %v69
  %1351 = vmatpush1.msra.mxu0 %v68
  %1352 = vmatprep.subr.mxu0 0.0
  %1353 = vmatpush2.msra.mxu0 0.0
  %1354 = vmatprep.subr.mxu0 0.0
  %1355 = vmatpush2.msra.mxu0 0.0
  %1356 = vmatprep.subr.mxu0 0.0
  %1357 = vmatpush2.msra.mxu0 0.0
  %1358 = vmatprep.subr.mxu0 0.0
  %1359 = vmatpush2.msra.mxu0 0.0
  %1360 = vmatprep.subr.mxu0 0.0
  %1361 = vmatpush2.msra.mxu0 0.0
  %1362 = vmatprep.subr.mxu0 0.0
  %1363 = vmatpush2.msra.mxu0 0.0
  %1364 = vmatprep.subr.mxu0 0.0
  %1365 = vmatpush2.msra.mxu0 0.0
  %1366 = vmatprep.subr.mxu0 0.0
  %1367 = vmatpush2.msra.mxu0 0.0
  %1368 = vmatprep.subr.mxu0 0.0
  %1369 = vmatpush2.msra.mxu0 0.0
  %1370 = vmatprep.subr.mxu0 0.0
  %1371 = vmatpush2.msra.mxu0 0.0
  %1372 = vmatprep.subr.mxu0 0.0
  %1373 = vmatpush2.msra.mxu0 0.0
  %1374 = vmatprep.subr.mxu0 0.0
  %1375 = vmatpush2.msra.mxu0 0.0
  %1376 = vmatprep.subr.mxu0 0.0
  %1377 = vmatpush2.msra.mxu0 0.0
  %1378 = vmatprep.subr.mxu0 0.0
  %1379 = vmatpush2.msra.mxu0 0.0
  %1380 = vmatprep.subr.mxu0 0.0
  %1381 = vmatpush2.msra.mxu0 0.0
  %1382 = vmatprep.subr.mxu0 0.0
  %1383 = vmatpush2.msra.mxu0 0.0
  %1384 = vmatprep.mubr.f32.mxu0 0.0
  %1385 = vmatmul.mubr.f32.gmra.mxu0 %v182
  %v1386 = vpop.f32.mrf.mxu0
  %v1387 = vadd.f32 0.0, %v1386
  %v1388 = vpop.f32.mrf.mxu0
  %v1389 = vadd.f32 0.0, %v1388
  %1390 = vdwg.mxu0
  %1391 = vmatprep.subr.mxu0 0.0
  %1392 = vmatpush1.msra.mxu0 0.0
  %1393 = vmatprep.subr.mxu0 0.0
  %1394 = vmatpush1.msra.mxu0 0.0
  %1395 = vmatprep.subr.mxu0 0.0
  %1396 = vmatpush1.msra.mxu0 0.0
  %1397 = vmatprep.subr.mxu0 0.0
  %1398 = vmatpush1.msra.mxu0 0.0
  %1399 = vmatprep.subr.mxu0 0.0
  %1400 = vmatpush1.msra.mxu0 0.0
  %1401 = vmatprep.subr.mxu0 0.0
  %1402 = vmatpush1.msra.mxu0 0.0
  %1403 = vmatprep.subr.mxu0 0.0
  %1404 = vmatpush1.msra.mxu0 0.0
  %1405 = vmatprep.subr.mxu0 0.0
  %1406 = vmatpush1.msra.mxu0 0.0
  %1407 = vmatprep.subr.mxu0 0.0
  %1408 = vmatpush1.msra.mxu0 0.0
  %1409 = vmatprep.subr.mxu0 0.0
  %1410 = vmatpush1.msra.mxu0 0.0
  %1411 = vmatprep.subr.mxu0 0.0
  %1412 = vmatpush1.msra.mxu0 0.0
  %1413 = vmatprep.subr.mxu0 0.0
  %1414 = vmatpush1.msra.mxu0 0.0
  %1415 = vmatprep.subr.mxu0 %v179
  %1416 = vmatpush1.msra.mxu0 %v178
  %1417 = vmatprep.subr.mxu0 %v143
  %1418 = vmatpush1.msra.mxu0 %v142
  %1419 = vmatprep.subr.mxu0 %v107
  %1420 = vmatpush1.msra.mxu0 %v106
  %1421 = vmatprep.subr.mxu0 %v71
  %1422 = vmatpush1.msra.mxu0 %v70
  %1423 = vmatprep.subr.mxu0 0.0
  %1424 = vmatpush2.msra.mxu0 0.0
  %1425 = vmatprep.subr.mxu0 0.0
  %1426 = vmatpush2.msra.mxu0 0.0
  %1427 = vmatprep.subr.mxu0 0.0
  %1428 = vmatpush2.msra.mxu0 0.0
  %1429 = vmatprep.subr.mxu0 0.0
  %1430 = vmatpush2.msra.mxu0 0.0
  %1431 = vmatprep.subr.mxu0 0.0
  %1432 = vmatpush2.msra.mxu0 0.0
  %1433 = vmatprep.subr.mxu0 0.0
  %1434 = vmatpush2.msra.mxu0 0.0
  %1435 = vmatprep.subr.mxu0 0.0
  %1436 = vmatpush2.msra.mxu0 0.0
  %1437 = vmatprep.subr.mxu0 0.0
  %1438 = vmatpush2.msra.mxu0 0.0
  %1439 = vmatprep.subr.mxu0 0.0
  %1440 = vmatpush2.msra.mxu0 0.0
  %1441 = vmatprep.subr.mxu0 0.0
  %1442 = vmatpush2.msra.mxu0 0.0
  %1443 = vmatprep.subr.mxu0 0.0
  %1444 = vmatpush2.msra.mxu0 0.0
  %1445 = vmatprep.subr.mxu0 0.0
  %1446 = vmatpush2.msra.mxu0 0.0
  %1447 = vmatprep.subr.mxu0 0.0
  %1448 = vmatpush2.msra.mxu0 0.0
  %1449 = vmatprep.subr.mxu0 0.0
  %1450 = vmatpush2.msra.mxu0 0.0
  %1451 = vmatprep.subr.mxu0 0.0
  %1452 = vmatpush2.msra.mxu0 0.0
  %1453 = vmatprep.subr.mxu0 0.0
  %1454 = vmatpush2.msra.mxu0 0.0
  %1455 = vmatprep.mubr.f32.mxu0 0.0
  %1456 = vmatmul.mubr.f32.gmra.mxu0 %v182
  %v1457 = vpop.f32.mrf.mxu0
  %v1458 = vadd.f32 0.0, %v1457
  %v1459 = vpop.f32.mrf.mxu0
  %v1460 = vadd.f32 0.0, %v1459
  %1461 = vdwg.mxu0
  %v1462 = vmax.f32 %v251, %v537
  %v1463 = vmax.f32 %v253, %v606
  %v1464 = vmax.f32 %v322, %v608
  %v1465 = vmax.f32 %v324, %v677
  %v1466 = vmax.f32 %v393, %v679
  %v1467 = vmax.f32 %v395, %v748
  %v1468 = vmax.f32 %v464, %v750
  %v1469 = vmax.f32 %v466, %v819
  %v1470 = vmax.f32 %v535, %v821
  %v1471 = vmax.f32 %v890, %v1176
  %v1472 = vmax.f32 %v892, %v1245
  %v1473 = vmax.f32 %v961, %v1247
  %v1474 = vmax.f32 %v963, %v1316
  %v1475 = vmax.f32 %v1032, %v1318
  %v1476 = vmax.f32 %v1034, %v1387
  %v1477 = vmax.f32 %v1103, %v1389
  %v1478 = vmax.f32 %v1105, %v1458
  %v1479 = vmax.f32 %v1174, %v1460
  %v1480 = vmax.f32 %v1462, %v1471
  %v1481 = vmax.f32 %v1463, %v1472
  %v1482 = vmax.f32 %v1464, %v1473
  %v1483 = vmax.f32 %v1465, %v1474
  %v1484 = vmax.f32 %v1466, %v1475
  %v1485 = vmax.f32 %v1467, %v1476
  %v1486 = vmax.f32 %v1468, %v1477
  %v1487 = vmax.f32 %v1469, %v1478
  %v1488 = vmax.f32 %v1470, %v1479
  %v1489 = vmax.f32 %v1480, 0.0
  %v1490 = vmax.f32 %v1481, 0.0
  %v1491 = vmax.f32 %v1482, 0.0
  %v1492 = vmax.f32 %v1483, 0.0
  %v1493 = vmax.f32 %v1484, 0.0
  %v1494 = vmax.f32 %v1485, 0.0
  %v1495 = vmax.f32 %v1486, 0.0
  %v1496 = vmax.f32 %v1487, 0.0
  %v1497 = vmax.f32 %v1488, 0.0
  %1505 = vrot.lane.b32.xlu0 %v1489, 32
  %v1506 = vpop.permute.xlu0 %1505
  %1507 = vrot.lane.b32.xlu0 %v1490, 32
  %v1508 = vpop.permute.xlu0 %1507
  %1509 = vrot.lane.b32.xlu0 %v1491, 32
  %v1510 = vpop.permute.xlu0 %1509
  %1511 = vrot.lane.b32.xlu0 %v1492, 32
  %v1512 = vpop.permute.xlu0 %1511
  %1513 = vrot.lane.b32.xlu0 %v1493, 32
  %v1514 = vpop.permute.xlu0 %1513
  %1515 = vrot.lane.b32.xlu0 %v1494, 32
  %v1516 = vpop.permute.xlu0 %1515
  %1517 = vrot.lane.b32.xlu0 %v1495, 32
  %v1518 = vpop.permute.xlu0 %1517
  %v1519 = vsel %vm180, %v1506, %v1508
  %v1520 = vsel %vm180, %v1508, %v1510
  %v1521 = vsel %vm180, %v1510, %v1512
  %v1522 = vsel %vm180, %v1512, %v1514
  %v1523 = vsel %vm180, %v1514, %v1516
  %v1524 = vsel %vm180, %v1516, %v1518
  %1530 = vrot.lane.b32.xlu0 %v1490, 64
  %v1531 = vpop.permute.xlu0 %1530
  %1532 = vrot.lane.b32.xlu0 %v1491, 64
  %v1533 = vpop.permute.xlu0 %1532
  %1534 = vrot.lane.b32.xlu0 %v1492, 64
  %v1535 = vpop.permute.xlu0 %1534
  %1536 = vrot.lane.b32.xlu0 %v1493, 64
  %v1537 = vpop.permute.xlu0 %1536
  %1538 = vrot.lane.b32.xlu0 %v1494, 64
  %v1539 = vpop.permute.xlu0 %1538
  %1540 = vrot.lane.b32.xlu0 %v1495, 64
  %v1541 = vpop.permute.xlu0 %1540
  %1542 = vrot.lane.b32.xlu0 %v1496, 64
  %v1543 = vpop.permute.xlu0 %1542
  %vm1544 = vcmask 523264
  %v1545 = vsel %vm1544, %v1531, %v1533
  %v1546 = vsel %vm1544, %v1533, %v1535
  %v1547 = vsel %vm1544, %v1535, %v1537
  %v1548 = vsel %vm1544, %v1537, %v1539
  %v1549 = vsel %vm1544, %v1539, %v1541
  %v1550 = vsel %vm1544, %v1541, %v1543
  %1556 = vrot.lane.b32.xlu0 %v1491, 96
  %v1557 = vpop.permute.xlu0 %1556
  %1558 = vrot.lane.b32.xlu0 %v1492, 96
  %v1559 = vpop.permute.xlu0 %1558
  %1560 = vrot.lane.b32.xlu0 %v1493, 96
  %v1561 = vpop.permute.xlu0 %1560
  %1562 = vrot.lane.b32.xlu0 %v1494, 96
  %v1563 = vpop.permute.xlu0 %1562
  %1564 = vrot.lane.b32.xlu0 %v1495, 96
  %v1565 = vpop.permute.xlu0 %1564
  %1566 = vrot.lane.b32.xlu0 %v1496, 96
  %v1567 = vpop.permute.xlu0 %1566
  %1568 = vrot.lane.b32.xlu0 %v1497, 96
  %v1569 = vpop.permute.xlu0 %1568
  %vm1570 = vcmask 785408
  %v1571 = vsel %vm1570, %v1557, %v1559
  %v1572 = vsel %vm1570, %v1559, %v1561
  %v1573 = vsel %vm1570, %v1561, %v1563
  %v1574 = vsel %vm1570, %v1563, %v1565
  %v1575 = vsel %vm1570, %v1565, %v1567
  %v1576 = vsel %vm1570, %v1567, %v1569
  %1581 = vst.msk [vmem:[#allocation2] sm:$0xff] %vm1544, %v1489
  %1582 = vst.msk [vmem:[#allocation2 + $0x20] sm:$0xff] %vm1544, %v1519
  %1583 = vst.msk [vmem:[#allocation2 + $0x40] sm:$0xff] %vm1544, %v1545
  %1584 = vst.msk [vmem:[#allocation2 + $0x60] sm:$0xff] %vm1544, %v1571
  %1585 = vst.msk [vmem:[#allocation2 + $0x80] sm:$0xff] %vm1544, %v1492
  %1586 = vrot.lane.b32.xlu0 %v1489, 96
  %v1587 = vpop.permute.xlu0 %1586
  %1588 = vrot.lane.b32.xlu0 %v1490, 96
  %v1589 = vpop.permute.xlu0 %1588
  %1590 = vrot.lane.b32.xlu0 %v1519, 96
  %v1591 = vpop.permute.xlu0 %1590
  %1592 = vrot.lane.b32.xlu0 %v1520, 96
  %v1593 = vpop.permute.xlu0 %1592
  %1594 = vrot.lane.b32.xlu0 %v1545, 96
  %v1595 = vpop.permute.xlu0 %1594
  %1596 = vrot.lane.b32.xlu0 %v1546, 96
  %v1597 = vpop.permute.xlu0 %1596
  %1598 = vrot.lane.b32.xlu0 %v1571, 96
  %v1599 = vpop.permute.xlu0 %1598
  %1600 = vrot.lane.b32.xlu0 %v1572, 96
  %v1601 = vpop.permute.xlu0 %1600
  %v1602 = vsel %vm1570, %v1587, %v1589
  %v1603 = vsel %vm1570, %v1591, %v1593
  %v1604 = vsel %vm1570, %v1595, %v1597
  %v1605 = vsel %vm1570, %v1599, %v1601
  %vm1611 = vcmask 1048064
  %1612 = vst.msk [vmem:[#allocation2] sm:$0xff] %vm1611, %v1602
  %1613 = vst.msk [vmem:[#allocation2 + $0x20] sm:$0xff] %vm1611, %v1603
  %1614 = vst.msk [vmem:[#allocation2 + $0x40] sm:$0xff] %vm1611, %v1604
  %1615 = vst.msk [vmem:[#allocation2 + $0x60] sm:$0xff] %vm1611, %v1605
  %1616 = vst.msk [vmem:[#allocation2 + $0x80] sm:$0xff] %vm1611, %v1572
  %1617 = vrot.lane.b32.xlu0 %v1520, 64
  %v1618 = vpop.permute.xlu0 %1617
  %1619 = vrot.lane.b32.xlu0 %v1546, 64
  %v1620 = vpop.permute.xlu0 %1619
  %1621 = vrot.lane.b32.xlu0 %v1572, 64
  %v1622 = vpop.permute.xlu0 %1621
  %1628 = vst.msk [vmem:[#allocation2 + $0x8] sm:$0xff] %vm1544, %v1531
  %1629 = vst.msk [vmem:[#allocation2 + $0x28] sm:$0xff] %vm1544, %v1618
  %1630 = vst.msk [vmem:[#allocation2 + $0x48] sm:$0xff] %vm1544, %v1620
  %1631 = vst.msk [vmem:[#allocation2 + $0x68] sm:$0xff] %vm1544, %v1622
  %1632 = vst.msk [vmem:[#allocation2 + $0x88] sm:$0xff] %vm1544, %v1537
  %1633 = vrot.lane.b32.xlu0 %v1521, 32
  %v1634 = vpop.permute.xlu0 %1633
  %1635 = vrot.lane.b32.xlu0 %v1547, 32
  %v1636 = vpop.permute.xlu0 %1635
  %1637 = vrot.lane.b32.xlu0 %v1573, 32
  %v1638 = vpop.permute.xlu0 %1637
  %1644 = vst.msk [vmem:[#allocation2 + $0x8] sm:$0xff] %vm1611, %v1510
  %1645 = vst.msk [vmem:[#allocation2 + $0x28] sm:$0xff] %vm1611, %v1634
  %1646 = vst.msk [vmem:[#allocation2 + $0x48] sm:$0xff] %vm1611, %v1636
  %1647 = vst.msk [vmem:[#allocation2 + $0x68] sm:$0xff] %vm1611, %v1638
  %1648 = vst.msk [vmem:[#allocation2 + $0x88] sm:$0xff] %vm1611, %v1516
  %1649 = vst.msk [vmem:[#allocation2 + $0x10] sm:$0xff] %vm1544, %v1492
  %1650 = vst.msk [vmem:[#allocation2 + $0x30] sm:$0xff] %vm1544, %v1522
  %1651 = vst.msk [vmem:[#allocation2 + $0x50] sm:$0xff] %vm1544, %v1548
  %1652 = vst.msk [vmem:[#allocation2 + $0x70] sm:$0xff] %vm1544, %v1574
  %1653 = vst.msk [vmem:[#allocation2 + $0x90] sm:$0xff] %vm1544, %v1495
  %1654 = vrot.lane.b32.xlu0 %v1522, 96
  %v1655 = vpop.permute.xlu0 %1654
  %1656 = vrot.lane.b32.xlu0 %v1523, 96
  %v1657 = vpop.permute.xlu0 %1656
  %1658 = vrot.lane.b32.xlu0 %v1548, 96
  %v1659 = vpop.permute.xlu0 %1658
  %1660 = vrot.lane.b32.xlu0 %v1549, 96
  %v1661 = vpop.permute.xlu0 %1660
  %1662 = vrot.lane.b32.xlu0 %v1574, 96
  %v1663 = vpop.permute.xlu0 %1662
  %1664 = vrot.lane.b32.xlu0 %v1575, 96
  %v1665 = vpop.permute.xlu0 %1664
  %v1666 = vsel %vm1570, %v1655, %v1657
  %v1667 = vsel %vm1570, %v1659, %v1661
  %v1668 = vsel %vm1570, %v1663, %v1665
  %1673 = vst.msk [vmem:[#allocation2 + $0x10] sm:$0xff] %vm1611, %v1572
  %1674 = vst.msk [vmem:[#allocation2 + $0x30] sm:$0xff] %vm1611, %v1666
  %1675 = vst.msk [vmem:[#allocation2 + $0x50] sm:$0xff] %vm1611, %v1667
  %1676 = vst.msk [vmem:[#allocation2 + $0x70] sm:$0xff] %vm1611, %v1668
  %1677 = vst.msk [vmem:[#allocation2 + $0x90] sm:$0xff] %vm1611, %v1575
  %1678 = vrot.lane.b32.xlu0 %v1523, 64
  %v1679 = vpop.permute.xlu0 %1678
  %1680 = vrot.lane.b32.xlu0 %v1549, 64
  %v1681 = vpop.permute.xlu0 %1680
  %1682 = vrot.lane.b32.xlu0 %v1575, 64
  %v1683 = vpop.permute.xlu0 %1682
  %1688 = vst.msk [vmem:[#allocation2 + $0x18] sm:$0xff] %vm1544, %v1537
  %1689 = vst.msk [vmem:[#allocation2 + $0x38] sm:$0xff] %vm1544, %v1679
  %1690 = vst.msk [vmem:[#allocation2 + $0x58] sm:$0xff] %vm1544, %v1681
  %1691 = vst.msk [vmem:[#allocation2 + $0x78] sm:$0xff] %vm1544, %v1683
  %1692 = vst.msk [vmem:[#allocation2 + $0x98] sm:$0xff] %vm1544, %v1543
  %1693 = vrot.lane.b32.xlu0 %v1524, 32
  %v1694 = vpop.permute.xlu0 %1693
  %1695 = vrot.lane.b32.xlu0 %v1550, 32
  %v1696 = vpop.permute.xlu0 %1695
  %1697 = vrot.lane.b32.xlu0 %v1576, 32
  %v1698 = vpop.permute.xlu0 %1697
  %1699 = vrot.lane.b32.xlu0 %v1497, 32
  %v1700 = vpop.permute.xlu0 %1699
  %1705 = vst.msk [vmem:[#allocation2 + $0x18] sm:$0xff] %vm1611, %v1516
  %1706 = vst.msk [vmem:[#allocation2 + $0x38] sm:$0xff] %vm1611, %v1694
  %1707 = vst.msk [vmem:[#allocation2 + $0x58] sm:$0xff] %vm1611, %v1696
  %1708 = vst.msk [vmem:[#allocation2 + $0x78] sm:$0xff] %vm1611, %v1698
  %1709 = vst.msk [vmem:[#allocation2 + $0x98] sm:$0xff] %vm1611, %v1700
  %1710 = vrot.lane.b32.xlu0 %v1489, 120
  %v1711 = vpop.permute.xlu0 %1710
  %1712 = vrot.lane.b32.xlu0 %v1519, 120
  %v1713 = vpop.permute.xlu0 %1712
  %1714 = vrot.lane.b32.xlu0 %v1545, 120
  %v1715 = vpop.permute.xlu0 %1714
  %1716 = vrot.lane.b32.xlu0 %v1571, 120
  %v1717 = vpop.permute.xlu0 %1716
  %1718 = vrot.lane.b32.xlu0 %v1492, 120
  %v1719 = vpop.permute.xlu0 %1718
  %1725 = vst.msk [vmem:[#allocation2 + $0xa0] sm:$0xff] %vm1544, %v1711
  %1726 = vst.msk [vmem:[#allocation2 + $0xc0] sm:$0xff] %vm1544, %v1713
  %1727 = vst.msk [vmem:[#allocation2 + $0xe0] sm:$0xff] %vm1544, %v1715
  %1728 = vst.msk [vmem:[#allocation2 + $0x100] sm:$0xff] %vm1544, %v1717
  %1729 = vst.msk [vmem:[#allocation2 + $0x120] sm:$0xff] %vm1544, %v1719
  %1730 = vrot.lane.b32.xlu0 %v1489, 88
  %v1731 = vpop.permute.xlu0 %1730
  %1732 = vrot.lane.b32.xlu0 %v1490, 88
  %v1733 = vpop.permute.xlu0 %1732
  %1734 = vrot.lane.b32.xlu0 %v1519, 88
  %v1735 = vpop.permute.xlu0 %1734
  %1736 = vrot.lane.b32.xlu0 %v1520, 88
  %v1737 = vpop.permute.xlu0 %1736
  %1738 = vrot.lane.b32.xlu0 %v1545, 88
  %v1739 = vpop.permute.xlu0 %1738
  %1740 = vrot.lane.b32.xlu0 %v1546, 88
  %v1741 = vpop.permute.xlu0 %1740
  %1742 = vrot.lane.b32.xlu0 %v1571, 88
  %v1743 = vpop.permute.xlu0 %1742
  %1744 = vrot.lane.b32.xlu0 %v1572, 88
  %v1745 = vpop.permute.xlu0 %1744
  %1746 = vrot.lane.b32.xlu0 %v1492, 88
  %v1747 = vpop.permute.xlu0 %1746
  %1748 = vrot.lane.b32.xlu0 %v1493, 88
  %v1749 = vpop.permute.xlu0 %1748
  %vm1750 = vcmask 719872
  %v1751 = vsel %vm1750, %v1731, %v1733
  %v1752 = vsel %vm1750, %v1735, %v1737
  %v1753 = vsel %vm1750, %v1739, %v1741
  %v1754 = vsel %vm1750, %v1743, %v1745
  %v1755 = vsel %vm1750, %v1747, %v1749
  %1761 = vst.msk [vmem:[#allocation2 + $0xa0] sm:$0xff] %vm1611, %v1751
  %1762 = vst.msk [vmem:[#allocation2 + $0xc0] sm:$0xff] %vm1611, %v1752
  %1763 = vst.msk [vmem:[#allocation2 + $0xe0] sm:$0xff] %vm1611, %v1753
  %1764 = vst.msk [vmem:[#allocation2 + $0x100] sm:$0xff] %vm1611, %v1754
  %1765 = vst.msk [vmem:[#allocation2 + $0x120] sm:$0xff] %vm1611, %v1755
  %1766 = vrot.lane.b32.xlu0 %v1490, 56
  %v1767 = vpop.permute.xlu0 %1766
  %1768 = vrot.lane.b32.xlu0 %v1491, 56
  %v1769 = vpop.permute.xlu0 %1768
  %1770 = vrot.lane.b32.xlu0 %v1520, 56
  %v1771 = vpop.permute.xlu0 %1770
  %1772 = vrot.lane.b32.xlu0 %v1521, 56
  %v1773 = vpop.permute.xlu0 %1772
  %1774 = vrot.lane.b32.xlu0 %v1546, 56
  %v1775 = vpop.permute.xlu0 %1774
  %1776 = vrot.lane.b32.xlu0 %v1547, 56
  %v1777 = vpop.permute.xlu0 %1776
  %1778 = vrot.lane.b32.xlu0 %v1572, 56
  %v1779 = vpop.permute.xlu0 %1778
  %1780 = vrot.lane.b32.xlu0 %v1573, 56
  %v1781 = vpop.permute.xlu0 %1780
  %1782 = vrot.lane.b32.xlu0 %v1493, 56
  %v1783 = vpop.permute.xlu0 %1782
  %1784 = vrot.lane.b32.xlu0 %v1494, 56
  %v1785 = vpop.permute.xlu0 %1784
  %vm1786 = vcmask 457728
  %v1787 = vsel %vm1786, %v1767, %v1769
  %v1788 = vsel %vm1786, %v1771, %v1773
  %v1789 = vsel %vm1786, %v1775, %v1777
  %v1790 = vsel %vm1786, %v1779, %v1781
  %v1791 = vsel %vm1786, %v1783, %v1785
  %1797 = vst.msk [vmem:[#allocation2 + $0xa8] sm:$0xff] %vm1544, %v1787
  %1798 = vst.msk [vmem:[#allocation2 + $0xc8] sm:$0xff] %vm1544, %v1788
  %1799 = vst.msk [vmem:[#allocation2 + $0xe8] sm:$0xff] %vm1544, %v1789
  %1800 = vst.msk [vmem:[#allocation2 + $0x108] sm:$0xff] %vm1544, %v1790
  %1801 = vst.msk [vmem:[#allocation2 + $0x128] sm:$0xff] %vm1544, %v1791
  %1802 = vrot.lane.b32.xlu0 %v1491, 24
  %v1803 = vpop.permute.xlu0 %1802
  %1804 = vrot.lane.b32.xlu0 %v1521, 24
  %v1805 = vpop.permute.xlu0 %1804
  %1806 = vrot.lane.b32.xlu0 %v1547, 24
  %v1807 = vpop.permute.xlu0 %1806
  %1808 = vrot.lane.b32.xlu0 %v1573, 24
  %v1809 = vpop.permute.xlu0 %1808
  %1810 = vrot.lane.b32.xlu0 %v1494, 24
  %v1811 = vpop.permute.xlu0 %1810
  %1817 = vst.msk [vmem:[#allocation2 + $0xa8] sm:$0xff] %vm1611, %v1803
  %1818 = vst.msk [vmem:[#allocation2 + $0xc8] sm:$0xff] %vm1611, %v1805
  %1819 = vst.msk [vmem:[#allocation2 + $0xe8] sm:$0xff] %vm1611, %v1807
  %1820 = vst.msk [vmem:[#allocation2 + $0x108] sm:$0xff] %vm1611, %v1809
  %1821 = vst.msk [vmem:[#allocation2 + $0x128] sm:$0xff] %vm1611, %v1811
  %1822 = vrot.lane.b32.xlu0 %v1522, 120
  %v1823 = vpop.permute.xlu0 %1822
  %1824 = vrot.lane.b32.xlu0 %v1548, 120
  %v1825 = vpop.permute.xlu0 %1824
  %1826 = vrot.lane.b32.xlu0 %v1574, 120
  %v1827 = vpop.permute.xlu0 %1826
  %1828 = vrot.lane.b32.xlu0 %v1495, 120
  %v1829 = vpop.permute.xlu0 %1828
  %1834 = vst.msk [vmem:[#allocation2 + $0xb0] sm:$0xff] %vm1544, %v1719
  %1835 = vst.msk [vmem:[#allocation2 + $0xd0] sm:$0xff] %vm1544, %v1823
  %1836 = vst.msk [vmem:[#allocation2 + $0xf0] sm:$0xff] %vm1544, %v1825
  %1837 = vst.msk [vmem:[#allocation2 + $0x110] sm:$0xff] %vm1544, %v1827
  %1838 = vst.msk [vmem:[#allocation2 + $0x130] sm:$0xff] %vm1544, %v1829
  %1839 = vrot.lane.b32.xlu0 %v1522, 88
  %v1840 = vpop.permute.xlu0 %1839
  %1841 = vrot.lane.b32.xlu0 %v1523, 88
  %v1842 = vpop.permute.xlu0 %1841
  %1843 = vrot.lane.b32.xlu0 %v1548, 88
  %v1844 = vpop.permute.xlu0 %1843
  %1845 = vrot.lane.b32.xlu0 %v1549, 88
  %v1846 = vpop.permute.xlu0 %1845
  %1847 = vrot.lane.b32.xlu0 %v1574, 88
  %v1848 = vpop.permute.xlu0 %1847
  %1849 = vrot.lane.b32.xlu0 %v1575, 88
  %v1850 = vpop.permute.xlu0 %1849
  %1851 = vrot.lane.b32.xlu0 %v1495, 88
  %v1852 = vpop.permute.xlu0 %1851
  %1853 = vrot.lane.b32.xlu0 %v1496, 88
  %v1854 = vpop.permute.xlu0 %1853
  %v1855 = vsel %vm1750, %v1840, %v1842
  %v1856 = vsel %vm1750, %v1844, %v1846
  %v1857 = vsel %vm1750, %v1848, %v1850
  %v1858 = vsel %vm1750, %v1852, %v1854
  %1863 = vst.msk [vmem:[#allocation2 + $0xb0] sm:$0xff] %vm1611, %v1755
  %1864 = vst.msk [vmem:[#allocation2 + $0xd0] sm:$0xff] %vm1611, %v1855
  %1865 = vst.msk [vmem:[#allocation2 + $0xf0] sm:$0xff] %vm1611, %v1856
  %1866 = vst.msk [vmem:[#allocation2 + $0x110] sm:$0xff] %vm1611, %v1857
  %1867 = vst.msk [vmem:[#allocation2 + $0x130] sm:$0xff] %vm1611, %v1858
  %1868 = vrot.lane.b32.xlu0 %v1523, 56
  %v1869 = vpop.permute.xlu0 %1868
  %1870 = vrot.lane.b32.xlu0 %v1524, 56
  %v1871 = vpop.permute.xlu0 %1870
  %1872 = vrot.lane.b32.xlu0 %v1549, 56
  %v1873 = vpop.permute.xlu0 %1872
  %1874 = vrot.lane.b32.xlu0 %v1550, 56
  %v1875 = vpop.permute.xlu0 %1874
  %1876 = vrot.lane.b32.xlu0 %v1575, 56
  %v1877 = vpop.permute.xlu0 %1876
  %1878 = vrot.lane.b32.xlu0 %v1576, 56
  %v1879 = vpop.permute.xlu0 %1878
  %1880 = vrot.lane.b32.xlu0 %v1496, 56
  %v1881 = vpop.permute.xlu0 %1880
  %1882 = vrot.lane.b32.xlu0 %v1497, 56
  %v1883 = vpop.permute.xlu0 %1882
  %v1884 = vsel %vm1786, %v1869, %v1871
  %v1885 = vsel %vm1786, %v1873, %v1875
  %v1886 = vsel %vm1786, %v1877, %v1879
  %v1887 = vsel %vm1786, %v1881, %v1883
  %1892 = vst.msk [vmem:[#allocation2 + $0xb8] sm:$0xff] %vm1544, %v1791
  %1893 = vst.msk [vmem:[#allocation2 + $0xd8] sm:$0xff] %vm1544, %v1884
  %1894 = vst.msk [vmem:[#allocation2 + $0xf8] sm:$0xff] %vm1544, %v1885
  %1895 = vst.msk [vmem:[#allocation2 + $0x118] sm:$0xff] %vm1544, %v1886
  %1896 = vst.msk [vmem:[#allocation2 + $0x138] sm:$0xff] %vm1544, %v1887
  %1897 = vrot.lane.b32.xlu0 %v1524, 24
  %v1898 = vpop.permute.xlu0 %1897
  %1899 = vrot.lane.b32.xlu0 %v1550, 24
  %v1900 = vpop.permute.xlu0 %1899
  %1901 = vrot.lane.b32.xlu0 %v1576, 24
  %v1902 = vpop.permute.xlu0 %1901
  %1903 = vrot.lane.b32.xlu0 %v1497, 24
  %v1904 = vpop.permute.xlu0 %1903
  %1909 = vst.msk [vmem:[#allocation2 + $0xb8] sm:$0xff] %vm1611, %v1811
  %1910 = vst.msk [vmem:[#allocation2 + $0xd8] sm:$0xff] %vm1611, %v1898
  %1911 = vst.msk [vmem:[#allocation2 + $0xf8] sm:$0xff] %vm1611, %v1900
  %1912 = vst.msk [vmem:[#allocation2 + $0x118] sm:$0xff] %vm1611, %v1902
  %1913 = vst.msk [vmem:[#allocation2 + $0x138] sm:$0xff] %vm1611, %v1904
  %1914 = vrot.lane.b32.xlu0 %v1489, 112
  %v1915 = vpop.permute.xlu0 %1914
  %1916 = vrot.lane.b32.xlu0 %v1519, 112
  %v1917 = vpop.permute.xlu0 %1916
  %1918 = vrot.lane.b32.xlu0 %v1545, 112
  %v1919 = vpop.permute.xlu0 %1918
  %1920 = vrot.lane.b32.xlu0 %v1571, 112
  %v1921 = vpop.permute.xlu0 %1920
  %1922 = vrot.lane.b32.xlu0 %v1492, 112
  %v1923 = vpop.permute.xlu0 %1922
  %1929 = vst.msk [vmem:[#allocation2 + $0x140] sm:$0xff] %vm1544, %v1915
  %1930 = vst.msk [vmem:[#allocation2 + $0x160] sm:$0xff] %vm1544, %v1917
  %1931 = vst.msk [vmem:[#allocation2 + $0x180] sm:$0xff] %vm1544, %v1919
  %1932 = vst.msk [vmem:[#allocation2 + $0x1a0] sm:$0xff] %vm1544, %v1921
  %1933 = vst.msk [vmem:[#allocation2 + $0x1c0] sm:$0xff] %vm1544, %v1923
  %1934 = vrot.lane.b32.xlu0 %v1489, 80
  %v1935 = vpop.permute.xlu0 %1934
  %1936 = vrot.lane.b32.xlu0 %v1490, 80
  %v1937 = vpop.permute.xlu0 %1936
  %1938 = vrot.lane.b32.xlu0 %v1519, 80
  %v1939 = vpop.permute.xlu0 %1938
  %1940 = vrot.lane.b32.xlu0 %v1520, 80
  %v1941 = vpop.permute.xlu0 %1940
  %1942 = vrot.lane.b32.xlu0 %v1545, 80
  %v1943 = vpop.permute.xlu0 %1942
  %1944 = vrot.lane.b32.xlu0 %v1546, 80
  %v1945 = vpop.permute.xlu0 %1944
  %1946 = vrot.lane.b32.xlu0 %v1571, 80
  %v1947 = vpop.permute.xlu0 %1946
  %1948 = vrot.lane.b32.xlu0 %v1572, 80
  %v1949 = vpop.permute.xlu0 %1948
  %1950 = vrot.lane.b32.xlu0 %v1492, 80
  %v1951 = vpop.permute.xlu0 %1950
  %1952 = vrot.lane.b32.xlu0 %v1493, 80
  %v1953 = vpop.permute.xlu0 %1952
  %vm1954 = vcmask 654336
  %v1955 = vsel %vm1954, %v1935, %v1937
  %v1956 = vsel %vm1954, %v1939, %v1941
  %v1957 = vsel %vm1954, %v1943, %v1945
  %v1958 = vsel %vm1954, %v1947, %v1949
  %v1959 = vsel %vm1954, %v1951, %v1953
  %1965 = vst.msk [vmem:[#allocation2 + $0x140] sm:$0xff] %vm1611, %v1955
  %1966 = vst.msk [vmem:[#allocation2 + $0x160] sm:$0xff] %vm1611, %v1956
  %1967 = vst.msk [vmem:[#allocation2 + $0x180] sm:$0xff] %vm1611, %v1957
  %1968 = vst.msk [vmem:[#allocation2 + $0x1a0] sm:$0xff] %vm1611, %v1958
  %1969 = vst.msk [vmem:[#allocation2 + $0x1c0] sm:$0xff] %vm1611, %v1959
  %1970 = vrot.lane.b32.xlu0 %v1490, 48
  %v1971 = vpop.permute.xlu0 %1970
  %1972 = vrot.lane.b32.xlu0 %v1491, 48
  %v1973 = vpop.permute.xlu0 %1972
  %1974 = vrot.lane.b32.xlu0 %v1520, 48
  %v1975 = vpop.permute.xlu0 %1974
  %1976 = vrot.lane.b32.xlu0 %v1521, 48
  %v1977 = vpop.permute.xlu0 %1976
  %1978 = vrot.lane.b32.xlu0 %v1546, 48
  %v1979 = vpop.permute.xlu0 %1978
  %1980 = vrot.lane.b32.xlu0 %v1547, 48
  %v1981 = vpop.permute.xlu0 %1980
  %1982 = vrot.lane.b32.xlu0 %v1572, 48
  %v1983 = vpop.permute.xlu0 %1982
  %1984 = vrot.lane.b32.xlu0 %v1573, 48
  %v1985 = vpop.permute.xlu0 %1984
  %1986 = vrot.lane.b32.xlu0 %v1493, 48
  %v1987 = vpop.permute.xlu0 %1986
  %1988 = vrot.lane.b32.xlu0 %v1494, 48
  %v1989 = vpop.permute.xlu0 %1988
  %vm1990 = vcmask 392192
  %v1991 = vsel %vm1990, %v1971, %v1973
  %v1992 = vsel %vm1990, %v1975, %v1977
  %v1993 = vsel %vm1990, %v1979, %v1981
  %v1994 = vsel %vm1990, %v1983, %v1985
  %v1995 = vsel %vm1990, %v1987, %v1989
  %2001 = vst.msk [vmem:[#allocation2 + $0x148] sm:$0xff] %vm1544, %v1991
  %2002 = vst.msk [vmem:[#allocation2 + $0x168] sm:$0xff] %vm1544, %v1992
  %2003 = vst.msk [vmem:[#allocation2 + $0x188] sm:$0xff] %vm1544, %v1993
  %2004 = vst.msk [vmem:[#allocation2 + $0x1a8] sm:$0xff] %vm1544, %v1994
  %2005 = vst.msk [vmem:[#allocation2 + $0x1c8] sm:$0xff] %vm1544, %v1995
  %2006 = vrot.lane.b32.xlu0 %v1491, 16
  %v2007 = vpop.permute.xlu0 %2006
  %2008 = vrot.lane.b32.xlu0 %v1521, 16
  %v2009 = vpop.permute.xlu0 %2008
  %2010 = vrot.lane.b32.xlu0 %v1547, 16
  %v2011 = vpop.permute.xlu0 %2010
  %2012 = vrot.lane.b32.xlu0 %v1573, 16
  %v2013 = vpop.permute.xlu0 %2012
  %2014 = vrot.lane.b32.xlu0 %v1494, 16
  %v2015 = vpop.permute.xlu0 %2014
  %2021 = vst.msk [vmem:[#allocation2 + $0x148] sm:$0xff] %vm1611, %v2007
  %2022 = vst.msk [vmem:[#allocation2 + $0x168] sm:$0xff] %vm1611, %v2009
  %2023 = vst.msk [vmem:[#allocation2 + $0x188] sm:$0xff] %vm1611, %v2011
  %2024 = vst.msk [vmem:[#allocation2 + $0x1a8] sm:$0xff] %vm1611, %v2013
  %2025 = vst.msk [vmem:[#allocation2 + $0x1c8] sm:$0xff] %vm1611, %v2015
  %2026 = vrot.lane.b32.xlu0 %v1522, 112
  %v2027 = vpop.permute.xlu0 %2026
  %2028 = vrot.lane.b32.xlu0 %v1548, 112
  %v2029 = vpop.permute.xlu0 %2028
  %2030 = vrot.lane.b32.xlu0 %v1574, 112
  %v2031 = vpop.permute.xlu0 %2030
  %2032 = vrot.lane.b32.xlu0 %v1495, 112
  %v2033 = vpop.permute.xlu0 %2032
  %2038 = vst.msk [vmem:[#allocation2 + $0x150] sm:$0xff] %vm1544, %v1923
  %2039 = vst.msk [vmem:[#allocation2 + $0x170] sm:$0xff] %vm1544, %v2027
  %2040 = vst.msk [vmem:[#allocation2 + $0x190] sm:$0xff] %vm1544, %v2029
  %2041 = vst.msk [vmem:[#allocation2 + $0x1b0] sm:$0xff] %vm1544, %v2031
  %2042 = vst.msk [vmem:[#allocation2 + $0x1d0] sm:$0xff] %vm1544, %v2033
  %2043 = vrot.lane.b32.xlu0 %v1522, 80
  %v2044 = vpop.permute.xlu0 %2043
  %2045 = vrot.lane.b32.xlu0 %v1523, 80
  %v2046 = vpop.permute.xlu0 %2045
  %2047 = vrot.lane.b32.xlu0 %v1548, 80
  %v2048 = vpop.permute.xlu0 %2047
  %2049 = vrot.lane.b32.xlu0 %v1549, 80
  %v2050 = vpop.permute.xlu0 %2049
  %2051 = vrot.lane.b32.xlu0 %v1574, 80
  %v2052 = vpop.permute.xlu0 %2051
  %2053 = vrot.lane.b32.xlu0 %v1575, 80
  %v2054 = vpop.permute.xlu0 %2053
  %2055 = vrot.lane.b32.xlu0 %v1495, 80
  %v2056 = vpop.permute.xlu0 %2055
  %2057 = vrot.lane.b32.xlu0 %v1496, 80
  %v2058 = vpop.permute.xlu0 %2057
  %v2059 = vsel %vm1954, %v2044, %v2046
  %v2060 = vsel %vm1954, %v2048, %v2050
  %v2061 = vsel %vm1954, %v2052, %v2054
  %v2062 = vsel %vm1954, %v2056, %v2058
  %2067 = vst.msk [vmem:[#allocation2 + $0x150] sm:$0xff] %vm1611, %v1959
  %2068 = vst.msk [vmem:[#allocation2 + $0x170] sm:$0xff] %vm1611, %v2059
  %2069 = vst.msk [vmem:[#allocation2 + $0x190] sm:$0xff] %vm1611, %v2060
  %2070 = vst.msk [vmem:[#allocation2 + $0x1b0] sm:$0xff] %vm1611, %v2061
  %2071 = vst.msk [vmem:[#allocation2 + $0x1d0] sm:$0xff] %vm1611, %v2062
  %2072 = vrot.lane.b32.xlu0 %v1523, 48
  %v2073 = vpop.permute.xlu0 %2072
  %2074 = vrot.lane.b32.xlu0 %v1524, 48
  %v2075 = vpop.permute.xlu0 %2074
  %2076 = vrot.lane.b32.xlu0 %v1549, 48
  %v2077 = vpop.permute.xlu0 %2076
  %2078 = vrot.lane.b32.xlu0 %v1550, 48
  %v2079 = vpop.permute.xlu0 %2078
  %2080 = vrot.lane.b32.xlu0 %v1575, 48
  %v2081 = vpop.permute.xlu0 %2080
  %2082 = vrot.lane.b32.xlu0 %v1576, 48
  %v2083 = vpop.permute.xlu0 %2082
  %2084 = vrot.lane.b32.xlu0 %v1496, 48
  %v2085 = vpop.permute.xlu0 %2084
  %2086 = vrot.lane.b32.xlu0 %v1497, 48
  %v2087 = vpop.permute.xlu0 %2086
  %v2088 = vsel %vm1990, %v2073, %v2075
  %v2089 = vsel %vm1990, %v2077, %v2079
  %v2090 = vsel %vm1990, %v2081, %v2083
  %v2091 = vsel %vm1990, %v2085, %v2087
  %2096 = vst.msk [vmem:[#allocation2 + $0x158] sm:$0xff] %vm1544, %v1995
  %2097 = vst.msk [vmem:[#allocation2 + $0x178] sm:$0xff] %vm1544, %v2088
  %2098 = vst.msk [vmem:[#allocation2 + $0x198] sm:$0xff] %vm1544, %v2089
  %2099 = vst.msk [vmem:[#allocation2 + $0x1b8] sm:$0xff] %vm1544, %v2090
  %2100 = vst.msk [vmem:[#allocation2 + $0x1d8] sm:$0xff] %vm1544, %v2091
  %2101 = vrot.lane.b32.xlu0 %v1524, 16
  %v2102 = vpop.permute.xlu0 %2101
  %2103 = vrot.lane.b32.xlu0 %v1550, 16
  %v2104 = vpop.permute.xlu0 %2103
  %2105 = vrot.lane.b32.xlu0 %v1576, 16
  %v2106 = vpop.permute.xlu0 %2105
  %2107 = vrot.lane.b32.xlu0 %v1497, 16
  %v2108 = vpop.permute.xlu0 %2107
  %2113 = vst.msk [vmem:[#allocation2 + $0x158] sm:$0xff] %vm1611, %v2015
  %2114 = vst.msk [vmem:[#allocation2 + $0x178] sm:$0xff] %vm1611, %v2102
  %2115 = vst.msk [vmem:[#allocation2 + $0x198] sm:$0xff] %vm1611, %v2104
  %2116 = vst.msk [vmem:[#allocation2 + $0x1b8] sm:$0xff] %vm1611, %v2106
  %2117 = vst.msk [vmem:[#allocation2 + $0x1d8] sm:$0xff] %vm1611, %v2108
  %2118 = vrot.lane.b32.xlu0 %v1489, 104
  %v2119 = vpop.permute.xlu0 %2118
  %2120 = vrot.lane.b32.xlu0 %v1519, 104
  %v2121 = vpop.permute.xlu0 %2120
  %2122 = vrot.lane.b32.xlu0 %v1545, 104
  %v2123 = vpop.permute.xlu0 %2122
  %2124 = vrot.lane.b32.xlu0 %v1571, 104
  %v2125 = vpop.permute.xlu0 %2124
  %2126 = vrot.lane.b32.xlu0 %v1492, 104
  %v2127 = vpop.permute.xlu0 %2126
  %2133 = vst.msk [vmem:[#allocation2 + $0x1e0] sm:$0xff] %vm1544, %v2119
  %2134 = vst.msk [vmem:[#allocation2 + $0x200] sm:$0xff] %vm1544, %v2121
  %2135 = vst.msk [vmem:[#allocation2 + $0x220] sm:$0xff] %vm1544, %v2123
  %2136 = vst.msk [vmem:[#allocation2 + $0x240] sm:$0xff] %vm1544, %v2125
  %2137 = vst.msk [vmem:[#allocation2 + $0x260] sm:$0xff] %vm1544, %v2127
  %2138 = vrot.lane.b32.xlu0 %v1489, 72
  %v2139 = vpop.permute.xlu0 %2138
  %2140 = vrot.lane.b32.xlu0 %v1490, 72
  %v2141 = vpop.permute.xlu0 %2140
  %2142 = vrot.lane.b32.xlu0 %v1519, 72
  %v2143 = vpop.permute.xlu0 %2142
  %2144 = vrot.lane.b32.xlu0 %v1520, 72
  %v2145 = vpop.permute.xlu0 %2144
  %2146 = vrot.lane.b32.xlu0 %v1545, 72
  %v2147 = vpop.permute.xlu0 %2146
  %2148 = vrot.lane.b32.xlu0 %v1546, 72
  %v2149 = vpop.permute.xlu0 %2148
  %2150 = vrot.lane.b32.xlu0 %v1571, 72
  %v2151 = vpop.permute.xlu0 %2150
  %2152 = vrot.lane.b32.xlu0 %v1572, 72
  %v2153 = vpop.permute.xlu0 %2152
  %2154 = vrot.lane.b32.xlu0 %v1492, 72
  %v2155 = vpop.permute.xlu0 %2154
  %2156 = vrot.lane.b32.xlu0 %v1493, 72
  %v2157 = vpop.permute.xlu0 %2156
  %vm2158 = vcmask 588800
  %v2159 = vsel %vm2158, %v2139, %v2141
  %v2160 = vsel %vm2158, %v2143, %v2145
  %v2161 = vsel %vm2158, %v2147, %v2149
  %v2162 = vsel %vm2158, %v2151, %v2153
  %v2163 = vsel %vm2158, %v2155, %v2157
  %2169 = vst.msk [vmem:[#allocation2 + $0x1e0] sm:$0xff] %vm1611, %v2159
  %2170 = vst.msk [vmem:[#allocation2 + $0x200] sm:$0xff] %vm1611, %v2160
  %2171 = vst.msk [vmem:[#allocation2 + $0x220] sm:$0xff] %vm1611, %v2161
  %2172 = vst.msk [vmem:[#allocation2 + $0x240] sm:$0xff] %vm1611, %v2162
  %2173 = vst.msk [vmem:[#allocation2 + $0x260] sm:$0xff] %vm1611, %v2163
  %2174 = vrot.lane.b32.xlu0 %v1490, 40
  %v2175 = vpop.permute.xlu0 %2174
  %2176 = vrot.lane.b32.xlu0 %v1491, 40
  %v2177 = vpop.permute.xlu0 %2176
  %2178 = vrot.lane.b32.xlu0 %v1520, 40
  %v2179 = vpop.permute.xlu0 %2178
  %2180 = vrot.lane.b32.xlu0 %v1521, 40
  %v2181 = vpop.permute.xlu0 %2180
  %2182 = vrot.lane.b32.xlu0 %v1546, 40
  %v2183 = vpop.permute.xlu0 %2182
  %2184 = vrot.lane.b32.xlu0 %v1547, 40
  %v2185 = vpop.permute.xlu0 %2184
  %2186 = vrot.lane.b32.xlu0 %v1572, 40
  %v2187 = vpop.permute.xlu0 %2186
  %2188 = vrot.lane.b32.xlu0 %v1573, 40
  %v2189 = vpop.permute.xlu0 %2188
  %2190 = vrot.lane.b32.xlu0 %v1493, 40
  %v2191 = vpop.permute.xlu0 %2190
  %2192 = vrot.lane.b32.xlu0 %v1494, 40
  %v2193 = vpop.permute.xlu0 %2192
  %vm2194 = vcmask 326656
  %v2195 = vsel %vm2194, %v2175, %v2177
  %v2196 = vsel %vm2194, %v2179, %v2181
  %v2197 = vsel %vm2194, %v2183, %v2185
  %v2198 = vsel %vm2194, %v2187, %v2189
  %v2199 = vsel %vm2194, %v2191, %v2193
  %2205 = vst.msk [vmem:[#allocation2 + $0x1e8] sm:$0xff] %vm1544, %v2195
  %2206 = vst.msk [vmem:[#allocation2 + $0x208] sm:$0xff] %vm1544, %v2196
  %2207 = vst.msk [vmem:[#allocation2 + $0x228] sm:$0xff] %vm1544, %v2197
  %2208 = vst.msk [vmem:[#allocation2 + $0x248] sm:$0xff] %vm1544, %v2198
  %2209 = vst.msk [vmem:[#allocation2 + $0x268] sm:$0xff] %vm1544, %v2199
  %2210 = vrot.lane.b32.xlu0 %v1491, 8
  %v2211 = vpop.permute.xlu0 %2210
  %2212 = vrot.lane.b32.xlu0 %v1521, 8
  %v2213 = vpop.permute.xlu0 %2212
  %2214 = vrot.lane.b32.xlu0 %v1547, 8
  %v2215 = vpop.permute.xlu0 %2214
  %2216 = vrot.lane.b32.xlu0 %v1573, 8
  %v2217 = vpop.permute.xlu0 %2216
  %2218 = vrot.lane.b32.xlu0 %v1494, 8
  %v2219 = vpop.permute.xlu0 %2218
  %2225 = vst.msk [vmem:[#allocation2 + $0x1e8] sm:$0xff] %vm1611, %v2211
  %2226 = vst.msk [vmem:[#allocation2 + $0x208] sm:$0xff] %vm1611, %v2213
  %2227 = vst.msk [vmem:[#allocation2 + $0x228] sm:$0xff] %vm1611, %v2215
  %2228 = vst.msk [vmem:[#allocation2 + $0x248] sm:$0xff] %vm1611, %v2217
  %2229 = vst.msk [vmem:[#allocation2 + $0x268] sm:$0xff] %vm1611, %v2219
  %2230 = vrot.lane.b32.xlu0 %v1522, 104
  %v2231 = vpop.permute.xlu0 %2230
  %2232 = vrot.lane.b32.xlu0 %v1548, 104
  %v2233 = vpop.permute.xlu0 %2232
  %2234 = vrot.lane.b32.xlu0 %v1574, 104
  %v2235 = vpop.permute.xlu0 %2234
  %2236 = vrot.lane.b32.xlu0 %v1495, 104
  %v2237 = vpop.permute.xlu0 %2236
  %2242 = vst.msk [vmem:[#allocation2 + $0x1f0] sm:$0xff] %vm1544, %v2127
  %2243 = vst.msk [vmem:[#allocation2 + $0x210] sm:$0xff] %vm1544, %v2231
  %2244 = vst.msk [vmem:[#allocation2 + $0x230] sm:$0xff] %vm1544, %v2233
  %2245 = vst.msk [vmem:[#allocation2 + $0x250] sm:$0xff] %vm1544, %v2235
  %2246 = vst.msk [vmem:[#allocation2 + $0x270] sm:$0xff] %vm1544, %v2237
  %2247 = vrot.lane.b32.xlu0 %v1522, 72
  %v2248 = vpop.permute.xlu0 %2247
  %2249 = vrot.lane.b32.xlu0 %v1523, 72
  %v2250 = vpop.permute.xlu0 %2249
  %2251 = vrot.lane.b32.xlu0 %v1548, 72
  %v2252 = vpop.permute.xlu0 %2251
  %2253 = vrot.lane.b32.xlu0 %v1549, 72
  %v2254 = vpop.permute.xlu0 %2253
  %2255 = vrot.lane.b32.xlu0 %v1574, 72
  %v2256 = vpop.permute.xlu0 %2255
  %2257 = vrot.lane.b32.xlu0 %v1575, 72
  %v2258 = vpop.permute.xlu0 %2257
  %2259 = vrot.lane.b32.xlu0 %v1495, 72
  %v2260 = vpop.permute.xlu0 %2259
  %2261 = vrot.lane.b32.xlu0 %v1496, 72
  %v2262 = vpop.permute.xlu0 %2261
  %v2263 = vsel %vm2158, %v2248, %v2250
  %v2264 = vsel %vm2158, %v2252, %v2254
  %v2265 = vsel %vm2158, %v2256, %v2258
  %v2266 = vsel %vm2158, %v2260, %v2262
  %2271 = vst.msk [vmem:[#allocation2 + $0x1f0] sm:$0xff] %vm1611, %v2163
  %2272 = vst.msk [vmem:[#allocation2 + $0x210] sm:$0xff] %vm1611, %v2263
  %2273 = vst.msk [vmem:[#allocation2 + $0x230] sm:$0xff] %vm1611, %v2264
  %2274 = vst.msk [vmem:[#allocation2 + $0x250] sm:$0xff] %vm1611, %v2265
  %2275 = vst.msk [vmem:[#allocation2 + $0x270] sm:$0xff] %vm1611, %v2266
  %2276 = vrot.lane.b32.xlu0 %v1523, 40
  %v2277 = vpop.permute.xlu0 %2276
  %2278 = vrot.lane.b32.xlu0 %v1524, 40
  %v2279 = vpop.permute.xlu0 %2278
  %2280 = vrot.lane.b32.xlu0 %v1549, 40
  %v2281 = vpop.permute.xlu0 %2280
  %2282 = vrot.lane.b32.xlu0 %v1550, 40
  %v2283 = vpop.permute.xlu0 %2282
  %2284 = vrot.lane.b32.xlu0 %v1575, 40
  %v2285 = vpop.permute.xlu0 %2284
  %2286 = vrot.lane.b32.xlu0 %v1576, 40
  %v2287 = vpop.permute.xlu0 %2286
  %2288 = vrot.lane.b32.xlu0 %v1496, 40
  %v2289 = vpop.permute.xlu0 %2288
  %2290 = vrot.lane.b32.xlu0 %v1497, 40
  %v2291 = vpop.permute.xlu0 %2290
  %v2292 = vsel %vm2194, %v2277, %v2279
  %v2293 = vsel %vm2194, %v2281, %v2283
  %v2294 = vsel %vm2194, %v2285, %v2287
  %v2295 = vsel %vm2194, %v2289, %v2291
  %2300 = vst.msk [vmem:[#allocation2 + $0x1f8] sm:$0xff] %vm1544, %v2199
  %2301 = vst.msk [vmem:[#allocation2 + $0x218] sm:$0xff] %vm1544, %v2292
  %2302 = vst.msk [vmem:[#allocation2 + $0x238] sm:$0xff] %vm1544, %v2293
  %2303 = vst.msk [vmem:[#allocation2 + $0x258] sm:$0xff] %vm1544, %v2294
  %2304 = vst.msk [vmem:[#allocation2 + $0x278] sm:$0xff] %vm1544, %v2295
  %2305 = vrot.lane.b32.xlu0 %v1524, 8
  %v2306 = vpop.permute.xlu0 %2305
  %2307 = vrot.lane.b32.xlu0 %v1550, 8
  %v2308 = vpop.permute.xlu0 %2307
  %2309 = vrot.lane.b32.xlu0 %v1576, 8
  %v2310 = vpop.permute.xlu0 %2309
  %2311 = vrot.lane.b32.xlu0 %v1497, 8
  %v2312 = vpop.permute.xlu0 %2311
  %2317 = vst.msk [vmem:[#allocation2 + $0x1f8] sm:$0xff] %vm1611, %v2219
  %2318 = vst.msk [vmem:[#allocation2 + $0x218] sm:$0xff] %vm1611, %v2306
  %2319 = vst.msk [vmem:[#allocation2 + $0x238] sm:$0xff] %vm1611, %v2308
  %2320 = vst.msk [vmem:[#allocation2 + $0x258] sm:$0xff] %vm1611, %v2310
  %2321 = vst.msk [vmem:[#allocation2 + $0x278] sm:$0xff] %vm1611, %v2312
  %2327 = vst.msk [vmem:[#allocation2 + $0x280] sm:$0xff] %vm1544, %v1587
  %2328 = vst.msk [vmem:[#allocation2 + $0x2a0] sm:$0xff] %vm1544, %v1591
  %2329 = vst.msk [vmem:[#allocation2 + $0x2c0] sm:$0xff] %vm1544, %v1595
  %2330 = vst.msk [vmem:[#allocation2 + $0x2e0] sm:$0xff] %vm1544, %v1599
  %2331 = vst.msk [vmem:[#allocation2 + $0x300] sm:$0xff] %vm1544, %v1559
  %2332 = vst.msk [vmem:[#allocation2 + $0x280] sm:$0xff] %vm1611, %v1531
  %2333 = vst.msk [vmem:[#allocation2 + $0x2a0] sm:$0xff] %vm1611, %v1618
  %2334 = vst.msk [vmem:[#allocation2 + $0x2c0] sm:$0xff] %vm1611, %v1620
  %2335 = vst.msk [vmem:[#allocation2 + $0x2e0] sm:$0xff] %vm1611, %v1622
  %2336 = vst.msk [vmem:[#allocation2 + $0x300] sm:$0xff] %vm1611, %v1537
  %2337 = vrot.lane.b32.xlu0 %v1520, 32
  %v2338 = vpop.permute.xlu0 %2337
  %2339 = vrot.lane.b32.xlu0 %v1546, 32
  %v2340 = vpop.permute.xlu0 %2339
  %2341 = vrot.lane.b32.xlu0 %v1572, 32
  %v2342 = vpop.permute.xlu0 %2341
  %v2343 = vsel %vm180, %v2338, %v1634
  %v2344 = vsel %vm180, %v2340, %v1636
  %v2345 = vsel %vm180, %v2342, %v1638
  %2351 = vst.msk [vmem:[#allocation2 + $0x288] sm:$0xff] %vm1544, %v1520
  %2352 = vst.msk [vmem:[#allocation2 + $0x2a8] sm:$0xff] %vm1544, %v2343
  %2353 = vst.msk [vmem:[#allocation2 + $0x2c8] sm:$0xff] %vm1544, %v2344
  %2354 = vst.msk [vmem:[#allocation2 + $0x2e8] sm:$0xff] %vm1544, %v2345
  %2355 = vst.msk [vmem:[#allocation2 + $0x308] sm:$0xff] %vm1544, %v1523
  %2356 = vst.msk [vmem:[#allocation2 + $0x288] sm:$0xff] %vm1611, %v1491
  %2357 = vst.msk [vmem:[#allocation2 + $0x2a8] sm:$0xff] %vm1611, %v1521
  %2358 = vst.msk [vmem:[#allocation2 + $0x2c8] sm:$0xff] %vm1611, %v1547
  %2359 = vst.msk [vmem:[#allocation2 + $0x2e8] sm:$0xff] %vm1611, %v1573
  %2360 = vst.msk [vmem:[#allocation2 + $0x308] sm:$0xff] %vm1611, %v1494
  %2365 = vst.msk [vmem:[#allocation2 + $0x290] sm:$0xff] %vm1544, %v1559
  %2366 = vst.msk [vmem:[#allocation2 + $0x2b0] sm:$0xff] %vm1544, %v1655
  %2367 = vst.msk [vmem:[#allocation2 + $0x2d0] sm:$0xff] %vm1544, %v1659
  %2368 = vst.msk [vmem:[#allocation2 + $0x2f0] sm:$0xff] %vm1544, %v1663
  %2369 = vst.msk [vmem:[#allocation2 + $0x310] sm:$0xff] %vm1544, %v1565
  %2370 = vst.msk [vmem:[#allocation2 + $0x290] sm:$0xff] %vm1611, %v1537
  %2371 = vst.msk [vmem:[#allocation2 + $0x2b0] sm:$0xff] %vm1611, %v1679
  %2372 = vst.msk [vmem:[#allocation2 + $0x2d0] sm:$0xff] %vm1611, %v1681
  %2373 = vst.msk [vmem:[#allocation2 + $0x2f0] sm:$0xff] %vm1611, %v1683
  %2374 = vst.msk [vmem:[#allocation2 + $0x310] sm:$0xff] %vm1611, %v1543
  %2375 = vrot.lane.b32.xlu0 %v1523, 32
  %v2376 = vpop.permute.xlu0 %2375
  %2377 = vrot.lane.b32.xlu0 %v1549, 32
  %v2378 = vpop.permute.xlu0 %2377
  %2379 = vrot.lane.b32.xlu0 %v1575, 32
  %v2380 = vpop.permute.xlu0 %2379
  %2381 = vrot.lane.b32.xlu0 %v1496, 32
  %v2382 = vpop.permute.xlu0 %2381
  %v2383 = vsel %vm180, %v2376, %v1694
  %v2384 = vsel %vm180, %v2378, %v1696
  %v2385 = vsel %vm180, %v2380, %v1698
  %v2386 = vsel %vm180, %v2382, %v1700
  %2391 = vst.msk [vmem:[#allocation2 + $0x298] sm:$0xff] %vm1544, %v1523
  %2392 = vst.msk [vmem:[#allocation2 + $0x2b8] sm:$0xff] %vm1544, %v2383
  %2393 = vst.msk [vmem:[#allocation2 + $0x2d8] sm:$0xff] %vm1544, %v2384
  %2394 = vst.msk [vmem:[#allocation2 + $0x2f8] sm:$0xff] %vm1544, %v2385
  %2395 = vst.msk [vmem:[#allocation2 + $0x318] sm:$0xff] %vm1544, %v2386
  %2396 = vst.msk [vmem:[#allocation2 + $0x298] sm:$0xff] %vm1611, %v1494
  %2397 = vst.msk [vmem:[#allocation2 + $0x2b8] sm:$0xff] %vm1611, %v1524
  %2398 = vst.msk [vmem:[#allocation2 + $0x2d8] sm:$0xff] %vm1611, %v1550
  %2399 = vst.msk [vmem:[#allocation2 + $0x2f8] sm:$0xff] %vm1611, %v1576
  %2400 = vst.msk [vmem:[#allocation2 + $0x318] sm:$0xff] %vm1611, %v1497
  %v2401 = vld [vmem:[%s2] sm:$0xff]
  %v2402 = vld [vmem:[%s2 + $0x8] sm:$0xff]
  %v2403 = vld [vmem:[%s2 + $0x10] sm:$0xff]
  %v2404 = vld [vmem:[%s2 + $0x18] sm:$0xff]
  %v2405 = vld [vmem:[#allocation2] sm:$0xff]
  %v2406 = vld [vmem:[#allocation2 + $0x8] sm:$0xff]
  %v2407 = vld [vmem:[#allocation2 + $0x10] sm:$0xff]
  %v2408 = vld [vmem:[#allocation2 + $0x18] sm:$0xff]
  %v2409 = vld [vmem:[#allocation2 + $0x20] sm:$0xff]
  %v2410 = vld [vmem:[#allocation2 + $0x28] sm:$0xff]
  %v2411 = vld [vmem:[#allocation2 + $0x30] sm:$0xff]
  %v2412 = vld [vmem:[#allocation2 + $0x38] sm:$0xff]
  %v2413 = vld [vmem:[#allocation2 + $0x40] sm:$0xff]
  %v2414 = vld [vmem:[#allocation2 + $0x48] sm:$0xff]
  %v2415 = vld [vmem:[#allocation2 + $0x50] sm:$0xff]
  %v2416 = vld [vmem:[#allocation2 + $0x58] sm:$0xff]
  %v2417 = vld [vmem:[#allocation2 + $0x60] sm:$0xff]
  %v2418 = vld [vmem:[#allocation2 + $0x68] sm:$0xff]
  %v2419 = vld [vmem:[#allocation2 + $0x70] sm:$0xff]
  %v2420 = vld [vmem:[#allocation2 + $0x78] sm:$0xff]
  %v2421 = vld [vmem:[#allocation2 + $0x80] sm:$0xff]
  %v2422 = vld [vmem:[#allocation2 + $0x88] sm:$0xff]
  %v2423 = vld [vmem:[#allocation2 + $0x90] sm:$0xff]
  %v2424 = vld [vmem:[#allocation2 + $0x98] sm:$0xff]
  %v2425 = vld [vmem:[#allocation2 + $0xa0] sm:$0xff]
  %v2426 = vld [vmem:[#allocation2 + $0xa8] sm:$0xff]
  %v2427 = vld [vmem:[#allocation2 + $0xb0] sm:$0xff]
  %v2428 = vld [vmem:[#allocation2 + $0xb8] sm:$0xff]
  %v2429 = vld [vmem:[#allocation2 + $0xc0] sm:$0xff]
  %v2430 = vld [vmem:[#allocation2 + $0xc8] sm:$0xff]
  %v2431 = vld [vmem:[#allocation2 + $0xd0] sm:$0xff]
  %v2432 = vld [vmem:[#allocation2 + $0xd8] sm:$0xff]
  %v2433 = vld [vmem:[#allocation2 + $0xe0] sm:$0xff]
  %v2434 = vld [vmem:[#allocation2 + $0xe8] sm:$0xff]
  %v2435 = vld [vmem:[#allocation2 + $0xf0] sm:$0xff]
  %v2436 = vld [vmem:[#allocation2 + $0xf8] sm:$0xff]
  %v2437 = vld [vmem:[#allocation2 + $0x100] sm:$0xff]
  %v2438 = vld [vmem:[#allocation2 + $0x108] sm:$0xff]
  %v2439 = vld [vmem:[#allocation2 + $0x110] sm:$0xff]
  %v2440 = vld [vmem:[#allocation2 + $0x118] sm:$0xff]
  %v2441 = vld [vmem:[#allocation2 + $0x120] sm:$0xff]
  %v2442 = vld [vmem:[#allocation2 + $0x128] sm:$0xff]
  %v2443 = vld [vmem:[#allocation2 + $0x130] sm:$0xff]
  %v2444 = vld [vmem:[#allocation2 + $0x138] sm:$0xff]
  %v2445 = vld [vmem:[#allocation2 + $0x140] sm:$0xff]
  %v2446 = vld [vmem:[#allocation2 + $0x148] sm:$0xff]
  %v2447 = vld [vmem:[#allocation2 + $0x150] sm:$0xff]
  %v2448 = vld [vmem:[#allocation2 + $0x158] sm:$0xff]
  %v2449 = vld [vmem:[#allocation2 + $0x160] sm:$0xff]
  %v2450 = vld [vmem:[#allocation2 + $0x168] sm:$0xff]
  %v2451 = vld [vmem:[#allocation2 + $0x170] sm:$0xff]
  %v2452 = vld [vmem:[#allocation2 + $0x178] sm:$0xff]
  %v2453 = vld [vmem:[#allocation2 + $0x180] sm:$0xff]
  %v2454 = vld [vmem:[#allocation2 + $0x188] sm:$0xff]
  %v2455 = vld [vmem:[#allocation2 + $0x190] sm:$0xff]
  %v2456 = vld [vmem:[#allocation2 + $0x198] sm:$0xff]
  %v2457 = vld [vmem:[#allocation2 + $0x1a0] sm:$0xff]
  %v2458 = vld [vmem:[#allocation2 + $0x1a8] sm:$0xff]
  %v2459 = vld [vmem:[#allocation2 + $0x1b0] sm:$0xff]
  %v2460 = vld [vmem:[#allocation2 + $0x1b8] sm:$0xff]
  %v2461 = vld [vmem:[#allocation2 + $0x1c0] sm:$0xff]
  %v2462 = vld [vmem:[#allocation2 + $0x1c8] sm:$0xff]
  %v2463 = vld [vmem:[#allocation2 + $0x1d0] sm:$0xff]
  %v2464 = vld [vmem:[#allocation2 + $0x1d8] sm:$0xff]
  %v2465 = vld [vmem:[#allocation2 + $0x1e0] sm:$0xff]
  %v2466 = vld [vmem:[#allocation2 + $0x1e8] sm:$0xff]
  %v2467 = vld [vmem:[#allocation2 + $0x1f0] sm:$0xff]
  %v2468 = vld [vmem:[#allocation2 + $0x1f8] sm:$0xff]
  %v2469 = vld [vmem:[#allocation2 + $0x200] sm:$0xff]
  %v2470 = vld [vmem:[#allocation2 + $0x208] sm:$0xff]
  %v2471 = vld [vmem:[#allocation2 + $0x210] sm:$0xff]
  %v2472 = vld [vmem:[#allocation2 + $0x218] sm:$0xff]
  %v2473 = vld [vmem:[#allocation2 + $0x220] sm:$0xff]
  %v2474 = vld [vmem:[#allocation2 + $0x228] sm:$0xff]
  %v2475 = vld [vmem:[#allocation2 + $0x230] sm:$0xff]
  %v2476 = vld [vmem:[#allocation2 + $0x238] sm:$0xff]
  %v2477 = vld [vmem:[#allocation2 + $0x240] sm:$0xff]
  %v2478 = vld [vmem:[#allocation2 + $0x248] sm:$0xff]
  %v2479 = vld [vmem:[#allocation2 + $0x250] sm:$0xff]
  %v2480 = vld [vmem:[#allocation2 + $0x258] sm:$0xff]
  %v2481 = vld [vmem:[#allocation2 + $0x260] sm:$0xff]
  %v2482 = vld [vmem:[#allocation2 + $0x268] sm:$0xff]
  %v2483 = vld [vmem:[#allocation2 + $0x270] sm:$0xff]
  %v2484 = vld [vmem:[#allocation2 + $0x278] sm:$0xff]
  %v2485 = vld [vmem:[#allocation2 + $0x280] sm:$0xff]
  %v2486 = vld [vmem:[#allocation2 + $0x288] sm:$0xff]
  %v2487 = vld [vmem:[#allocation2 + $0x290] sm:$0xff]
  %v2488 = vld [vmem:[#allocation2 + $0x298] sm:$0xff]
  %v2489 = vld [vmem:[#allocation2 + $0x2a0] sm:$0xff]
  %v2490 = vld [vmem:[#allocation2 + $0x2a8] sm:$0xff]
  %v2491 = vld [vmem:[#allocation2 + $0x2b0] sm:$0xff]
  %v2492 = vld [vmem:[#allocation2 + $0x2b8] sm:$0xff]
  %v2493 = vld [vmem:[#allocation2 + $0x2c0] sm:$0xff]
  %v2494 = vld [vmem:[#allocation2 + $0x2c8] sm:$0xff]
  %v2495 = vld [vmem:[#allocation2 + $0x2d0] sm:$0xff]
  %v2496 = vld [vmem:[#allocation2 + $0x2d8] sm:$0xff]
  %v2497 = vld [vmem:[#allocation2 + $0x2e0] sm:$0xff]
  %v2498 = vld [vmem:[#allocation2 + $0x2e8] sm:$0xff]
  %v2499 = vld [vmem:[#allocation2 + $0x2f0] sm:$0xff]
  %v2500 = vld [vmem:[#allocation2 + $0x2f8] sm:$0xff]
  %v2501 = vld [vmem:[#allocation2 + $0x300] sm:$0xff]
  %v2502 = vld [vmem:[#allocation2 + $0x308] sm:$0xff]
  %v2503 = vld [vmem:[#allocation2 + $0x310] sm:$0xff]
  %v2504 = vld [vmem:[#allocation2 + $0x318] sm:$0xff]
  %v2505 = vld [vmem:[%s3] sm:$0xff]
  %v2506 = vld [vmem:[%s3 + $0x8] sm:$0xff]
  %2508 = vset.pattern.permute.xlu0 0
  %2509 = vperm.xlu0 %2508, %v2505
  %v2510 = vpop.permute.xlu0 %2509
  %2513 = vset.pattern.permute.xlu0 0
  %2514 = vperm.xlu0 %2513, %v2506
  %v2515 = vpop.permute.xlu0 %2514
  %v2518 = vsel %vm2158, %v2402, 0
  %v2521 = vsel %vm2158, %v2404, 0
  %2523 = vmatprep.subr.mxu0 %v2466
  %2524 = vmatpush1.msra.mxu0 %v2465
  %2525 = vmatprep.subr.mxu0 %v2462
  %2526 = vmatpush1.msra.mxu0 %v2461
  %2527 = vmatprep.subr.mxu0 %v2458
  %2528 = vmatpush1.msra.mxu0 %v2457
  %2529 = vmatprep.subr.mxu0 %v2454
  %2530 = vmatpush1.msra.mxu0 %v2453
  %2531 = vmatprep.subr.mxu0 %v2450
  %2532 = vmatpush1.msra.mxu0 %v2449
  %2533 = vmatprep.subr.mxu0 %v2446
  %2534 = vmatpush1.msra.mxu0 %v2445
  %2535 = vmatprep.subr.mxu0 %v2442
  %2536 = vmatpush1.msra.mxu0 %v2441
  %2537 = vmatprep.subr.mxu0 %v2438
  %2538 = vmatpush1.msra.mxu0 %v2437
  %2539 = vmatprep.subr.mxu0 %v2434
  %2540 = vmatpush1.msra.mxu0 %v2433
  %2541 = vmatprep.subr.mxu0 %v2430
  %2542 = vmatpush1.msra.mxu0 %v2429
  %2543 = vmatprep.subr.mxu0 %v2426
  %2544 = vmatpush1.msra.mxu0 %v2425
  %2545 = vmatprep.subr.mxu0 %v2422
  %2546 = vmatpush1.msra.mxu0 %v2421
  %2547 = vmatprep.subr.mxu0 %v2418
  %2548 = vmatpush1.msra.mxu0 %v2417
  %2549 = vmatprep.subr.mxu0 %v2414
  %2550 = vmatpush1.msra.mxu0 %v2413
  %2551 = vmatprep.subr.mxu0 %v2410
  %2552 = vmatpush1.msra.mxu0 %v2409
  %2553 = vmatprep.subr.mxu0 %v2406
  %2554 = vmatpush1.msra.mxu0 %v2405
  %2555 = vmatprep.subr.mxu0 0.0
  %2556 = vmatpush2.msra.mxu0 0.0
  %2557 = vmatprep.subr.mxu0 0.0
  %2558 = vmatpush2.msra.mxu0 0.0
  %2559 = vmatprep.subr.mxu0 0.0
  %2560 = vmatpush2.msra.mxu0 0.0
  %2561 = vmatprep.subr.mxu0 0.0
  %2562 = vmatpush2.msra.mxu0 0.0
  %2563 = vmatprep.subr.mxu0 0.0
  %2564 = vmatpush2.msra.mxu0 0.0
  %2565 = vmatprep.subr.mxu0 0.0
  %2566 = vmatpush2.msra.mxu0 0.0
  %2567 = vmatprep.subr.mxu0 0.0
  %2568 = vmatpush2.msra.mxu0 0.0
  %2569 = vmatprep.subr.mxu0 %v2502
  %2570 = vmatpush2.msra.mxu0 %v2501
  %2571 = vmatprep.subr.mxu0 %v2498
  %2572 = vmatpush2.msra.mxu0 %v2497
  %2573 = vmatprep.subr.mxu0 %v2494
  %2574 = vmatpush2.msra.mxu0 %v2493
  %2575 = vmatprep.subr.mxu0 %v2490
  %2576 = vmatpush2.msra.mxu0 %v2489
  %2577 = vmatprep.subr.mxu0 %v2486
  %2578 = vmatpush2.msra.mxu0 %v2485
  %2579 = vmatprep.subr.mxu0 %v2482
  %2580 = vmatpush2.msra.mxu0 %v2481
  %2581 = vmatprep.subr.mxu0 %v2478
  %2582 = vmatpush2.msra.mxu0 %v2477
  %2583 = vmatprep.subr.mxu0 %v2474
  %2584 = vmatpush2.msra.mxu0 %v2473
  %2585 = vmatprep.subr.mxu0 %v2470
  %2586 = vmatpush2.msra.mxu0 %v2469
  %2587 = vmatprep.mubr.f32.mxu0 %v2518
  %2588 = vmatmul.mubr.f32.gmra.mxu0 %v2401
  %v2589 = vpop.f32.mrf.mxu0
  %v2590 = vadd.f32 %v2510, %v2589
  %v2591 = vpop.f32.mrf.mxu0
  %v2592 = vadd.f32 %v2510, %v2591
  %2593 = vmatprep.mubr.f32.mxu0 %v2521
  %2594 = vmatmul.mubr.f32.gmra.mxu0 %v2403
  %v2595 = vpop.f32.mrf.mxu0
  %v2596 = vadd.f32 %v2515, %v2595
  %v2597 = vpop.f32.mrf.mxu0
  %v2598 = vadd.f32 %v2515, %v2597
  %2599 = vdwg.mxu0
  %2600 = vmatprep.subr.mxu0 %v2468
  %2601 = vmatpush1.msra.mxu0 %v2467
  %2602 = vmatprep.subr.mxu0 %v2464
  %2603 = vmatpush1.msra.mxu0 %v2463
  %2604 = vmatprep.subr.mxu0 %v2460
  %2605 = vmatpush1.msra.mxu0 %v2459
  %2606 = vmatprep.subr.mxu0 %v2456
  %2607 = vmatpush1.msra.mxu0 %v2455
  %2608 = vmatprep.subr.mxu0 %v2452
  %2609 = vmatpush1.msra.mxu0 %v2451
  %2610 = vmatprep.subr.mxu0 %v2448
  %2611 = vmatpush1.msra.mxu0 %v2447
  %2612 = vmatprep.subr.mxu0 %v2444
  %2613 = vmatpush1.msra.mxu0 %v2443
  %2614 = vmatprep.subr.mxu0 %v2440
  %2615 = vmatpush1.msra.mxu0 %v2439
  %2616 = vmatprep.subr.mxu0 %v2436
  %2617 = vmatpush1.msra.mxu0 %v2435
  %2618 = vmatprep.subr.mxu0 %v2432
  %2619 = vmatpush1.msra.mxu0 %v2431
  %2620 = vmatprep.subr.mxu0 %v2428
  %2621 = vmatpush1.msra.mxu0 %v2427
  %2622 = vmatprep.subr.mxu0 %v2424
  %2623 = vmatpush1.msra.mxu0 %v2423
  %2624 = vmatprep.subr.mxu0 %v2420
  %2625 = vmatpush1.msra.mxu0 %v2419
  %2626 = vmatprep.subr.mxu0 %v2416
  %2627 = vmatpush1.msra.mxu0 %v2415
  %2628 = vmatprep.subr.mxu0 %v2412
  %2629 = vmatpush1.msra.mxu0 %v2411
  %2630 = vmatprep.subr.mxu0 %v2408
  %2631 = vmatpush1.msra.mxu0 %v2407
  %2632 = vmatprep.subr.mxu0 0.0
  %2633 = vmatpush2.msra.mxu0 0.0
  %2634 = vmatprep.subr.mxu0 0.0
  %2635 = vmatpush2.msra.mxu0 0.0
  %2636 = vmatprep.subr.mxu0 0.0
  %2637 = vmatpush2.msra.mxu0 0.0
  %2638 = vmatprep.subr.mxu0 0.0
  %2639 = vmatpush2.msra.mxu0 0.0
  %2640 = vmatprep.subr.mxu0 0.0
  %2641 = vmatpush2.msra.mxu0 0.0
  %2642 = vmatprep.subr.mxu0 0.0
  %2643 = vmatpush2.msra.mxu0 0.0
  %2644 = vmatprep.subr.mxu0 0.0
  %2645 = vmatpush2.msra.mxu0 0.0
  %2646 = vmatprep.subr.mxu0 %v2504
  %2647 = vmatpush2.msra.mxu0 %v2503
  %2648 = vmatprep.subr.mxu0 %v2500
  %2649 = vmatpush2.msra.mxu0 %v2499
  %2650 = vmatprep.subr.mxu0 %v2496
  %2651 = vmatpush2.msra.mxu0 %v2495
  %2652 = vmatprep.subr.mxu0 %v2492
  %2653 = vmatpush2.msra.mxu0 %v2491
  %2654 = vmatprep.subr.mxu0 %v2488
  %2655 = vmatpush2.msra.mxu0 %v2487
  %2656 = vmatprep.subr.mxu0 %v2484
  %2657 = vmatpush2.msra.mxu0 %v2483
  %2658 = vmatprep.subr.mxu0 %v2480
  %2659 = vmatpush2.msra.mxu0 %v2479
  %2660 = vmatprep.subr.mxu0 %v2476
  %2661 = vmatpush2.msra.mxu0 %v2475
  %2662 = vmatprep.subr.mxu0 %v2472
  %2663 = vmatpush2.msra.mxu0 %v2471
  %2664 = vmatprep.mubr.f32.mxu0 %v2518
  %2665 = vmatmul.mubr.f32.gmra.mxu0 %v2401
  %v2666 = vpop.f32.mrf.mxu0
  %v2667 = vadd.f32 %v2510, %v2666
  %v2668 = vpop.f32.mrf.mxu0
  %v2669 = vadd.f32 %v2510, %v2668
  %2670 = vmatprep.mubr.f32.mxu0 %v2521
  %2671 = vmatmul.mubr.f32.gmra.mxu0 %v2403
  %v2672 = vpop.f32.mrf.mxu0
  %v2673 = vadd.f32 %v2515, %v2672
  %v2674 = vpop.f32.mrf.mxu0
  %v2675 = vadd.f32 %v2515, %v2674
  %2676 = vdwg.mxu0
  %v2677 = vmax.f32 %v2590, 0.0
  %v2678 = vmax.f32 %v2592, 0.0
  %v2679 = vmax.f32 %v2667, 0.0
  %v2680 = vmax.f32 %v2669, 0.0
  %v2681 = vmax.f32 %v2596, 0.0
  %v2682 = vmax.f32 %v2598, 0.0
  %v2683 = vmax.f32 %v2673, 0.0
  %v2684 = vmax.f32 %v2675, 0.0
  %2687 = vrot.lane.b32.xlu0 %v2677, 120
  %v2688 = vpop.permute.xlu0 %2687
  %2689 = vrot.lane.b32.xlu0 %v2681, 120
  %v2690 = vpop.permute.xlu0 %2689
  %v2693 = vmax.f32 %v2677, %v2688
  %v2694 = vmax.f32 %v2681, %v2690
  %2697 = vrot.lane.b32.xlu0 %v2693, 64
  %v2698 = vpop.permute.xlu0 %2697
  %2699 = vrot.lane.b32.xlu0 %v2694, 64
  %v2700 = vpop.permute.xlu0 %2699
  %v2703 = vmax.f32 %v2693, %v2698
  %v2704 = vmax.f32 %v2694, %v2700
  %2707 = vrot.lane.b32.xlu0 %v2678, 120
  %v2708 = vpop.permute.xlu0 %2707
  %2709 = vrot.lane.b32.xlu0 %v2682, 120
  %v2710 = vpop.permute.xlu0 %2709
  %v2713 = vmax.f32 %v2678, %v2708
  %v2714 = vmax.f32 %v2682, %v2710
  %2717 = vrot.lane.b32.xlu0 %v2713, 64
  %v2718 = vpop.permute.xlu0 %2717
  %2719 = vrot.lane.b32.xlu0 %v2714, 64
  %v2720 = vpop.permute.xlu0 %2719
  %v2723 = vmax.f32 %v2713, %v2718
  %v2724 = vmax.f32 %v2714, %v2720
  %2727 = vrot.lane.b32.xlu0 %v2679, 120
  %v2728 = vpop.permute.xlu0 %2727
  %2729 = vrot.lane.b32.xlu0 %v2683, 120
  %v2730 = vpop.permute.xlu0 %2729
  %v2733 = vmax.f32 %v2679, %v2728
  %v2734 = vmax.f32 %v2683, %v2730
  %2737 = vrot.lane.b32.xlu0 %v2733, 64
  %v2738 = vpop.permute.xlu0 %2737
  %2739 = vrot.lane.b32.xlu0 %v2734, 64
  %v2740 = vpop.permute.xlu0 %2739
  %v2743 = vmax.f32 %v2733, %v2738
  %v2744 = vmax.f32 %v2734, %v2740
  %2747 = vrot.lane.b32.xlu0 %v2680, 120
  %v2748 = vpop.permute.xlu0 %2747
  %2749 = vrot.lane.b32.xlu0 %v2684, 120
  %v2750 = vpop.permute.xlu0 %2749
  %v2753 = vmax.f32 %v2680, %v2748
  %v2754 = vmax.f32 %v2684, %v2750
  %2757 = vrot.lane.b32.xlu0 %v2753, 64
  %v2758 = vpop.permute.xlu0 %2757
  %2759 = vrot.lane.b32.xlu0 %v2754, 64
  %v2760 = vpop.permute.xlu0 %2759
  %v2763 = vmax.f32 %v2753, %v2758
  %v2764 = vmax.f32 %v2754, %v2760
  %2767 = vrot.lane.b32.xlu0 %v2703, 112
  %v2768 = vpop.permute.xlu0 %2767
  %2769 = vrot.lane.b32.xlu0 %v2704, 112
  %v2770 = vpop.permute.xlu0 %2769
  %2773 = vrot.lane.b32.xlu0 %v2703, 96
  %v2774 = vpop.permute.xlu0 %2773
  %2775 = vrot.lane.b32.xlu0 %v2704, 96
  %v2776 = vpop.permute.xlu0 %2775
  %2779 = vrot.lane.b32.xlu0 %v2703, 80
  %v2780 = vpop.permute.xlu0 %2779
  %2781 = vrot.lane.b32.xlu0 %v2704, 80
  %v2782 = vpop.permute.xlu0 %2781
  %2787 = vrot.lane.b32.xlu0 %v2723, 112
  %v2788 = vpop.permute.xlu0 %2787
  %2789 = vrot.lane.b32.xlu0 %v2724, 112
  %v2790 = vpop.permute.xlu0 %2789
  %2793 = vrot.lane.b32.xlu0 %v2723, 96
  %v2794 = vpop.permute.xlu0 %2793
  %2795 = vrot.lane.b32.xlu0 %v2724, 96
  %v2796 = vpop.permute.xlu0 %2795
  %2799 = vrot.lane.b32.xlu0 %v2723, 80
  %v2800 = vpop.permute.xlu0 %2799
  %2801 = vrot.lane.b32.xlu0 %v2724, 80
  %v2802 = vpop.permute.xlu0 %2801
  %2807 = vrot.lane.b32.xlu0 %v2743, 112
  %v2808 = vpop.permute.xlu0 %2807
  %2809 = vrot.lane.b32.xlu0 %v2744, 112
  %v2810 = vpop.permute.xlu0 %2809
  %2813 = vrot.lane.b32.xlu0 %v2743, 96
  %v2814 = vpop.permute.xlu0 %2813
  %2815 = vrot.lane.b32.xlu0 %v2744, 96
  %v2816 = vpop.permute.xlu0 %2815
  %2819 = vrot.lane.b32.xlu0 %v2743, 80
  %v2820 = vpop.permute.xlu0 %2819
  %2821 = vrot.lane.b32.xlu0 %v2744, 80
  %v2822 = vpop.permute.xlu0 %2821
  %2827 = vrot.lane.b32.xlu0 %v2763, 112
  %v2828 = vpop.permute.xlu0 %2827
  %2829 = vrot.lane.b32.xlu0 %v2764, 112
  %v2830 = vpop.permute.xlu0 %2829
  %2833 = vrot.lane.b32.xlu0 %v2763, 96
  %v2834 = vpop.permute.xlu0 %2833
  %2835 = vrot.lane.b32.xlu0 %v2764, 96
  %v2836 = vpop.permute.xlu0 %2835
  %2839 = vrot.lane.b32.xlu0 %v2763, 80
  %v2840 = vpop.permute.xlu0 %2839
  %2841 = vrot.lane.b32.xlu0 %v2764, 80
  %v2842 = vpop.permute.xlu0 %2841
  %v2845 = vld [vmem:[%s4] sm:$0xff]
  %v2846 = vld [vmem:[%s4 + $0x8] sm:$0xff]
  %v2847 = vld [vmem:[%s4 + $0x10] sm:$0xff]
  %v2848 = vld [vmem:[%s4 + $0x18] sm:$0xff]
  %v2849 = vld [vmem:[%s4 + $0x20] sm:$0xff]
  %v2850 = vld [vmem:[%s4 + $0x28] sm:$0xff]
  %v2851 = vld [vmem:[%s4 + $0x30] sm:$0xff]
  %v2852 = vld [vmem:[%s4 + $0x38] sm:$0xff]
  %v2853 = vld [vmem:[%s4 + $0x40] sm:$0xff]
  %v2854 = vld [vmem:[%s4 + $0x48] sm:$0xff]
  %v2855 = vld [vmem:[%s4 + $0x50] sm:$0xff]
  %v2856 = vld [vmem:[%s4 + $0x58] sm:$0xff]
  %v2857 = vld [vmem:[%s4 + $0x60] sm:$0xff]
  %v2858 = vld [vmem:[%s4 + $0x68] sm:$0xff]
  %v2859 = vld [vmem:[%s4 + $0x70] sm:$0xff]
  %v2860 = vld [vmem:[%s4 + $0x78] sm:$0xff]
  %v2861 = vld [vmem:[%s4 + $0x80] sm:$0xff]
  %v2862 = vld [vmem:[%s4 + $0x88] sm:$0xff]
  %v2863 = vld [vmem:[%s4 + $0x90] sm:$0xff]
  %v2864 = vld [vmem:[%s4 + $0x98] sm:$0xff]
  %v2865 = vld [vmem:[%s4 + $0xa0] sm:$0xff]
  %v2866 = vld [vmem:[%s4 + $0xa8] sm:$0xff]
  %v2867 = vld [vmem:[%s4 + $0xb0] sm:$0xff]
  %v2868 = vld [vmem:[%s4 + $0xb8] sm:$0xff]
  %v2869 = vld [vmem:[%s4 + $0xc0] sm:$0xff]
  %v2870 = vld [vmem:[%s4 + $0xc8] sm:$0xff]
  %v2871 = vld [vmem:[%s4 + $0xd0] sm:$0xff]
  %v2872 = vld [vmem:[%s4 + $0xd8] sm:$0xff]
  %v2873 = vld [vmem:[%s4 + $0xe0] sm:$0xff]
  %v2874 = vld [vmem:[%s4 + $0xe8] sm:$0xff]
  %v2875 = vld [vmem:[%s4 + $0xf0] sm:$0xff]
  %v2876 = vld [vmem:[%s4 + $0xf8] sm:$0xff]
  %v2877 = vld [vmem:[%s5] sm:$0xff]
  %v2878 = vld [vmem:[%s5 + $0x8] sm:$0xff]
  %v2879 = vld [vmem:[%s5 + $0x10] sm:$0xff]
  %v2880 = vld [vmem:[%s5 + $0x18] sm:$0xff]
  %v2881 = vld [vmem:[%s5 + $0x20] sm:$0xff]
  %v2882 = vld [vmem:[%s5 + $0x28] sm:$0xff]
  %v2883 = vld [vmem:[%s5 + $0x30] sm:$0xff]
  %v2884 = vld [vmem:[%s5 + $0x38] sm:$0xff]
  %v2885 = vld [vmem:[%s5 + $0x40] sm:$0xff]
  %v2886 = vld [vmem:[%s5 + $0x48] sm:$0xff]
  %v2887 = vld [vmem:[%s5 + $0x50] sm:$0xff]
  %v2888 = vld [vmem:[%s5 + $0x58] sm:$0xff]
  %v2889 = vld [vmem:[%s5 + $0x60] sm:$0xff]
  %v2890 = vld [vmem:[%s5 + $0x68] sm:$0xff]
  %v2891 = vld [vmem:[%s5 + $0x70] sm:$0xff]
  %v2892 = vld [vmem:[%s5 + $0x78] sm:$0xff]
  %2894 = vset.pattern.permute.xlu0 0
  %2895 = vperm.xlu0 %2894, %v2877
  %v2896 = vpop.permute.xlu0 %2895
  %2899 = vset.pattern.permute.xlu0 0
  %2900 = vperm.xlu0 %2899, %v2878
  %v2901 = vpop.permute.xlu0 %2900
  %2904 = vset.pattern.permute.xlu0 0
  %2905 = vperm.xlu0 %2904, %v2879
  %v2906 = vpop.permute.xlu0 %2905
  %2909 = vset.pattern.permute.xlu0 0
  %2910 = vperm.xlu0 %2909, %v2880
  %v2911 = vpop.permute.xlu0 %2910
  %2914 = vset.pattern.permute.xlu0 0
  %2915 = vperm.xlu0 %2914, %v2881
  %v2916 = vpop.permute.xlu0 %2915
  %2919 = vset.pattern.permute.xlu0 0
  %2920 = vperm.xlu0 %2919, %v2882
  %v2921 = vpop.permute.xlu0 %2920
  %2924 = vset.pattern.permute.xlu0 0
  %2925 = vperm.xlu0 %2924, %v2883
  %v2926 = vpop.permute.xlu0 %2925
  %2929 = vset.pattern.permute.xlu0 0
  %2930 = vperm.xlu0 %2929, %v2884
  %v2931 = vpop.permute.xlu0 %2930
  %2934 = vset.pattern.permute.xlu0 0
  %2935 = vperm.xlu0 %2934, %v2885
  %v2936 = vpop.permute.xlu0 %2935
  %2939 = vset.pattern.permute.xlu0 0
  %2940 = vperm.xlu0 %2939, %v2886
  %v2941 = vpop.permute.xlu0 %2940
  %2944 = vset.pattern.permute.xlu0 0
  %2945 = vperm.xlu0 %2944, %v2887
  %v2946 = vpop.permute.xlu0 %2945
  %2949 = vset.pattern.permute.xlu0 0
  %2950 = vperm.xlu0 %2949, %v2888
  %v2951 = vpop.permute.xlu0 %2950
  %2954 = vset.pattern.permute.xlu0 0
  %2955 = vperm.xlu0 %2954, %v2889
  %v2956 = vpop.permute.xlu0 %2955
  %2959 = vset.pattern.permute.xlu0 0
  %2960 = vperm.xlu0 %2959, %v2890
  %v2961 = vpop.permute.xlu0 %2960
  %2964 = vset.pattern.permute.xlu0 0
  %2965 = vperm.xlu0 %2964, %v2891
  %v2966 = vpop.permute.xlu0 %2965
  %2969 = vset.pattern.permute.xlu0 0
  %2970 = vperm.xlu0 %2969, %v2892
  %v2971 = vpop.permute.xlu0 %2970
  %2973 = vmatprep.subr.mxu0 0.0
  %2974 = vmatpush1.msra.mxu0 %v2802
  %2975 = vmatprep.subr.mxu0 0.0
  %2976 = vmatpush1.msra.mxu0 %v2800
  %2977 = vmatprep.subr.mxu0 0.0
  %2978 = vmatpush1.msra.mxu0 %v2796
  %2979 = vmatprep.subr.mxu0 0.0
  %2980 = vmatpush1.msra.mxu0 %v2794
  %2981 = vmatprep.subr.mxu0 0.0
  %2982 = vmatpush1.msra.mxu0 %v2790
  %2983 = vmatprep.subr.mxu0 0.0
  %2984 = vmatpush1.msra.mxu0 %v2788
  %2985 = vmatprep.subr.mxu0 0.0
  %2986 = vmatpush1.msra.mxu0 %v2724
  %2987 = vmatprep.subr.mxu0 0.0
  %2988 = vmatpush1.msra.mxu0 %v2723
  %2989 = vmatprep.subr.mxu0 0.0
  %2990 = vmatpush1.msra.mxu0 %v2782
  %2991 = vmatprep.subr.mxu0 0.0
  %2992 = vmatpush1.msra.mxu0 %v2780
  %2993 = vmatprep.subr.mxu0 0.0
  %2994 = vmatpush1.msra.mxu0 %v2776
  %2995 = vmatprep.subr.mxu0 0.0
  %2996 = vmatpush1.msra.mxu0 %v2774
  %2997 = vmatprep.subr.mxu0 0.0
  %2998 = vmatpush1.msra.mxu0 %v2770
  %2999 = vmatprep.subr.mxu0 0.0
  %3000 = vmatpush1.msra.mxu0 %v2768
  %3001 = vmatprep.subr.mxu0 0.0
  %3002 = vmatpush1.msra.mxu0 %v2704
  %3003 = vmatprep.subr.mxu0 0.0
  %3004 = vmatpush1.msra.mxu0 %v2703
  %3005 = vmatprep.subr.mxu0 0.0
  %3006 = vmatpush2.msra.mxu0 %v2842
  %3007 = vmatprep.subr.mxu0 0.0
  %3008 = vmatpush2.msra.mxu0 %v2840
  %3009 = vmatprep.subr.mxu0 0.0
  %3010 = vmatpush2.msra.mxu0 %v2836
  %3011 = vmatprep.subr.mxu0 0.0
  %3012 = vmatpush2.msra.mxu0 %v2834
  %3013 = vmatprep.subr.mxu0 0.0
  %3014 = vmatpush2.msra.mxu0 %v2830
  %3015 = vmatprep.subr.mxu0 0.0
  %3016 = vmatpush2.msra.mxu0 %v2828
  %3017 = vmatprep.subr.mxu0 0.0
  %3018 = vmatpush2.msra.mxu0 %v2764
  %3019 = vmatprep.subr.mxu0 0.0
  %3020 = vmatpush2.msra.mxu0 %v2763
  %3021 = vmatprep.subr.mxu0 0.0
  %3022 = vmatpush2.msra.mxu0 %v2822
  %3023 = vmatprep.subr.mxu0 0.0
  %3024 = vmatpush2.msra.mxu0 %v2820
  %3025 = vmatprep.subr.mxu0 0.0
  %3026 = vmatpush2.msra.mxu0 %v2816
  %3027 = vmatprep.subr.mxu0 0.0
  %3028 = vmatpush2.msra.mxu0 %v2814
  %3029 = vmatprep.subr.mxu0 0.0
  %3030 = vmatpush2.msra.mxu0 %v2810
  %3031 = vmatprep.subr.mxu0 0.0
  %3032 = vmatpush2.msra.mxu0 %v2808
  %3033 = vmatprep.subr.mxu0 0.0
  %3034 = vmatpush2.msra.mxu0 %v2744
  %3035 = vmatprep.subr.mxu0 0.0
  %3036 = vmatpush2.msra.mxu0 %v2743
  %3037 = vmatprep.mubr.f32.mxu0 %v2846
  %3038 = vmatmul.mubr.f32.gmra.mxu0 %v2845
  %v3039 = vpop.f32.mrf.mxu0
  %v3040 = vadd.f32 %v2896, %v3039
  %v3041 = vpop.f32.mrf.mxu0
  %3042 = vmatprep.mubr.f32.mxu0 %v2848
  %3043 = vmatmul.mubr.f32.gmra.mxu0 %v2847
  %v3044 = vpop.f32.mrf.mxu0
  %v3045 = vadd.f32 %v2901, %v3044
  %v3046 = vpop.f32.mrf.mxu0
  %3047 = vmatprep.mubr.f32.mxu0 %v2850
  %3048 = vmatmul.mubr.f32.gmra.mxu0 %v2849
  %v3049 = vpop.f32.mrf.mxu0
  %v3050 = vadd.f32 %v2906, %v3049
  %v3051 = vpop.f32.mrf.mxu0
  %3052 = vmatprep.mubr.f32.mxu0 %v2852
  %3053 = vmatmul.mubr.f32.gmra.mxu0 %v2851
  %v3054 = vpop.f32.mrf.mxu0
  %v3055 = vadd.f32 %v2911, %v3054
  %v3056 = vpop.f32.mrf.mxu0
  %3057 = vmatprep.mubr.f32.mxu0 %v2854
  %3058 = vmatmul.mubr.f32.gmra.mxu0 %v2853
  %v3059 = vpop.f32.mrf.mxu0
  %v3060 = vadd.f32 %v2916, %v3059
  %v3061 = vpop.f32.mrf.mxu0
  %3062 = vmatprep.mubr.f32.mxu0 %v2856
  %3063 = vmatmul.mubr.f32.gmra.mxu0 %v2855
  %v3064 = vpop.f32.mrf.mxu0
  %v3065 = vadd.f32 %v2921, %v3064
  %v3066 = vpop.f32.mrf.mxu0
  %3067 = vmatprep.mubr.f32.mxu0 %v2858
  %3068 = vmatmul.mubr.f32.gmra.mxu0 %v2857
  %v3069 = vpop.f32.mrf.mxu0
  %v3070 = vadd.f32 %v2926, %v3069
  %v3071 = vpop.f32.mrf.mxu0
  %3072 = vmatprep.mubr.f32.mxu0 %v2860
  %3073 = vmatmul.mubr.f32.gmra.mxu0 %v2859
  %v3074 = vpop.f32.mrf.mxu0
  %v3075 = vadd.f32 %v2931, %v3074
  %v3076 = vpop.f32.mrf.mxu0
  %3077 = vmatprep.mubr.f32.mxu0 %v2862
  %3078 = vmatmul.mubr.f32.gmra.mxu0 %v2861
  %v3079 = vpop.f32.mrf.mxu0
  %v3080 = vadd.f32 %v2936, %v3079
  %v3081 = vpop.f32.mrf.mxu0
  %3082 = vmatprep.mubr.f32.mxu0 %v2864
  %3083 = vmatmul.mubr.f32.gmra.mxu0 %v2863
  %v3084 = vpop.f32.mrf.mxu0
  %v3085 = vadd.f32 %v2941, %v3084
  %v3086 = vpop.f32.mrf.mxu0
  %3087 = vmatprep.mubr.f32.mxu0 %v2866
  %3088 = vmatmul.mubr.f32.gmra.mxu0 %v2865
  %v3089 = vpop.f32.mrf.mxu0
  %v3090 = vadd.f32 %v2946, %v3089
  %v3091 = vpop.f32.mrf.mxu0
  %3092 = vmatprep.mubr.f32.mxu0 %v2868
  %3093 = vmatmul.mubr.f32.gmra.mxu0 %v2867
  %v3094 = vpop.f32.mrf.mxu0
  %v3095 = vadd.f32 %v2951, %v3094
  %v3096 = vpop.f32.mrf.mxu0
  %3097 = vmatprep.mubr.f32.mxu0 %v2870
  %3098 = vmatmul.mubr.f32.gmra.mxu0 %v2869
  %v3099 = vpop.f32.mrf.mxu0
  %v3100 = vadd.f32 %v2956, %v3099
  %v3101 = vpop.f32.mrf.mxu0
  %3102 = vmatprep.mubr.f32.mxu0 %v2872
  %3103 = vmatmul.mubr.f32.gmra.mxu0 %v2871
  %v3104 = vpop.f32.mrf.mxu0
  %v3105 = vadd.f32 %v2961, %v3104
  %v3106 = vpop.f32.mrf.mxu0
  %3107 = vmatprep.mubr.f32.mxu0 %v2874
  %3108 = vmatmul.mubr.f32.gmra.mxu0 %v2873
  %v3109 = vpop.f32.mrf.mxu0
  %v3110 = vadd.f32 %v2966, %v3109
  %v3111 = vpop.f32.mrf.mxu0
  %3112 = vmatprep.mubr.f32.mxu0 %v2876
  %3113 = vmatmul.mubr.f32.gmra.mxu0 %v2875
  %v3114 = vpop.f32.mrf.mxu0
  %v3115 = vadd.f32 %v2971, %v3114
  %v3116 = vpop.f32.mrf.mxu0
  %3117 = vdwg.mxu0
  %v3118 = vmax.f32 %v3040, 0.0
  %v3119 = vmax.f32 %v3045, 0.0
  %v3120 = vmax.f32 %v3050, 0.0
  %v3121 = vmax.f32 %v3055, 0.0
  %v3122 = vmax.f32 %v3060, 0.0
  %v3123 = vmax.f32 %v3065, 0.0
  %v3124 = vmax.f32 %v3070, 0.0
  %v3125 = vmax.f32 %v3075, 0.0
  %v3126 = vmax.f32 %v3080, 0.0
  %v3127 = vmax.f32 %v3085, 0.0
  %v3128 = vmax.f32 %v3090, 0.0
  %v3129 = vmax.f32 %v3095, 0.0
  %v3130 = vmax.f32 %v3100, 0.0
  %v3131 = vmax.f32 %v3105, 0.0
  %v3132 = vmax.f32 %v3110, 0.0
  %v3133 = vmax.f32 %v3115, 0.0
  %3134 = vxpose.xlu0.b32.start [1/16] %v3118, 128
  %3135 = vxpose.xlu0.b32.cont [2/16] %v3119, 128
  %3136 = vxpose.xlu0.b32.cont [3/16] %v3120, 128
  %3137 = vxpose.xlu0.b32.cont [4/16] %v3121, 128
  %3138 = vxpose.xlu0.b32.cont [5/16] %v3122, 128
  %3139 = vxpose.xlu0.b32.cont [6/16] %v3123, 128
  %3140 = vxpose.xlu0.b32.cont [7/16] %v3124, 128
  %3141 = vxpose.xlu0.b32.cont [8/16] %v3125, 128
  %3142 = vxpose.xlu0.b32.cont [9/16] %v3126, 128
  %3143 = vxpose.xlu0.b32.cont [10/16] %v3127, 128
  %3144 = vxpose.xlu0.b32.cont [11/16] %v3128, 128
  %3145 = vxpose.xlu0.b32.cont [12/16] %v3129, 128
  %3146 = vxpose.xlu0.b32.cont [13/16] %v3130, 128
  %3147 = vxpose.xlu0.b32.cont [14/16] %v3131, 128
  %3148 = vxpose.xlu0.b32.cont [15/16] %v3132, 128
  %3149 = vxpose.xlu0.b32.end [16/16] %v3133, 128
  %v3150 = vpop.trf.xlu0
  %v3151 = vpop.trf.xlu0
  %v3152 = vpop.trf.xlu0
  %v3153 = vpop.trf.xlu0
  %v3154 = vpop.trf.xlu0
  %v3155 = vpop.trf.xlu0
  %v3156 = vpop.trf.xlu0
  %v3157 = vpop.trf.xlu0
  %v3158 = vpop.trf.xlu0
  %v3159 = vpop.trf.xlu0
  %v3160 = vpop.trf.xlu0
  %v3161 = vpop.trf.xlu0
  %v3162 = vpop.trf.xlu0
  %v3163 = vpop.trf.xlu0
  %v3164 = vpop.trf.xlu0
  %v3165 = vpop.trf.xlu0
  %v3166 = vld [vmem:[%s6] sm:$0xff]
  %v3167 = vld [vmem:[%s6 + $0x8] sm:$0xff]
  %v3168 = vld [vmem:[%s6 + $0x10] sm:$0xff]
  %v3169 = vld [vmem:[%s6 + $0x18] sm:$0xff]
  %v3170 = vld [vmem:[%s6 + $0x20] sm:$0xff]
  %v3171 = vld [vmem:[%s6 + $0x28] sm:$0xff]
  %v3172 = vld [vmem:[%s6 + $0x30] sm:$0xff]
  %v3173 = vld [vmem:[%s6 + $0x38] sm:$0xff]
  %v3174 = vld [vmem:[%s6 + $0x40] sm:$0xff]
  %v3175 = vld [vmem:[%s6 + $0x48] sm:$0xff]
  %v3176 = vld [vmem:[%s6 + $0x50] sm:$0xff]
  %v3177 = vld [vmem:[%s6 + $0x58] sm:$0xff]
  %v3178 = vld [vmem:[%s6 + $0x60] sm:$0xff]
  %v3179 = vld [vmem:[%s6 + $0x68] sm:$0xff]
  %v3180 = vld [vmem:[%s6 + $0x70] sm:$0xff]
  %v3181 = vld [vmem:[%s6 + $0x78] sm:$0xff]
  %v3182 = vld [vmem:[%s7] sm:$0x1]
  %v3184 = vlaneseq
  %v3185 = vshrl.u32 %v3184, 7
  %v3186 = vsub.s32 0, %v3185
  %v3187 = vrot.slane %v3182, %v3186
  %3189 = vmatprep.subr.mxu0 0.0
  %3190 = vmatpush1.msra.mxu0 %v3181
  %3191 = vmatprep.subr.mxu0 0.0
  %3192 = vmatpush1.msra.mxu0 %v3180
  %3193 = vmatprep.subr.mxu0 0.0
  %3194 = vmatpush1.msra.mxu0 %v3179
  %3195 = vmatprep.subr.mxu0 0.0
  %3196 = vmatpush1.msra.mxu0 %v3178
  %3197 = vmatprep.subr.mxu0 0.0
  %3198 = vmatpush1.msra.mxu0 %v3177
  %3199 = vmatprep.subr.mxu0 0.0
  %3200 = vmatpush1.msra.mxu0 %v3176
  %3201 = vmatprep.subr.mxu0 0.0
  %3202 = vmatpush1.msra.mxu0 %v3175
  %3203 = vmatprep.subr.mxu0 0.0
  %3204 = vmatpush1.msra.mxu0 %v3174
  %3205 = vmatprep.subr.mxu0 0.0
  %3206 = vmatpush1.msra.mxu0 %v3173
  %3207 = vmatprep.subr.mxu0 0.0
  %3208 = vmatpush1.msra.mxu0 %v3172
  %3209 = vmatprep.subr.mxu0 0.0
  %3210 = vmatpush1.msra.mxu0 %v3171
  %3211 = vmatprep.subr.mxu0 0.0
  %3212 = vmatpush1.msra.mxu0 %v3170
  %3213 = vmatprep.subr.mxu0 0.0
  %3214 = vmatpush1.msra.mxu0 %v3169
  %3215 = vmatprep.subr.mxu0 0.0
  %3216 = vmatpush1.msra.mxu0 %v3168
  %3217 = vmatprep.subr.mxu0 0.0
  %3218 = vmatpush1.msra.mxu0 %v3167
  %3219 = vmatprep.subr.mxu0 0.0
  %3220 = vmatpush1.msra.mxu0 %v3166
  %3221 = vmatprep.subr.mxu0 0.0
  %3222 = vmatpush2.msra.mxu0 0.0
  %3223 = vmatprep.subr.mxu0 0.0
  %3224 = vmatpush2.msra.mxu0 0.0
  %3225 = vmatprep.subr.mxu0 0.0
  %3226 = vmatpush2.msra.mxu0 0.0
  %3227 = vmatprep.subr.mxu0 0.0
  %3228 = vmatpush2.msra.mxu0 0.0
  %3229 = vmatprep.subr.mxu0 0.0
  %3230 = vmatpush2.msra.mxu0 0.0
  %3231 = vmatprep.subr.mxu0 0.0
  %3232 = vmatpush2.msra.mxu0 0.0
  %3233 = vmatprep.subr.mxu0 0.0
  %3234 = vmatpush2.msra.mxu0 0.0
  %3235 = vmatprep.subr.mxu0 0.0
  %3236 = vmatpush2.msra.mxu0 0.0
  %3237 = vmatprep.subr.mxu0 0.0
  %3238 = vmatpush2.msra.mxu0 0.0
  %3239 = vmatprep.subr.mxu0 0.0
  %3240 = vmatpush2.msra.mxu0 0.0
  %3241 = vmatprep.subr.mxu0 0.0
  %3242 = vmatpush2.msra.mxu0 0.0
  %3243 = vmatprep.subr.mxu0 0.0
  %3244 = vmatpush2.msra.mxu0 0.0
  %3245 = vmatprep.subr.mxu0 0.0
  %3246 = vmatpush2.msra.mxu0 0.0
  %3247 = vmatprep.subr.mxu0 0.0
  %3248 = vmatpush2.msra.mxu0 0.0
  %3249 = vmatprep.subr.mxu0 0.0
  %3250 = vmatpush2.msra.mxu0 0.0
  %3251 = vmatprep.subr.mxu0 0.0
  %3252 = vmatpush2.msra.mxu0 0.0
  %3253 = vmatprep.mubr.f32.mxu0 0.0
  %3254 = vmatmul.mubr.f32.gmra.mxu0 %v3150
  %v3255 = vpop.f32.mrf.mxu0
  %v3256 = vadd.f32 %v3187, %v3255
  %v3257 = vpop.f32.mrf.mxu0
  %3258 = vdwg.mxu0
  %v3259 = vmax.f32 %v3256, 0.0
  %v3260 = vld [vmem:[%s8] sm:$0xff]
  %v3261 = vld [vmem:[%s8 + $0x8] sm:$0xff]
  %v3262 = vld [vmem:[%s8 + $0x10] sm:$0xff]
  %v3263 = vld [vmem:[%s8 + $0x18] sm:$0xff]
  %v3264 = vld [vmem:[%s8 + $0x20] sm:$0xff]
  %v3265 = vld [vmem:[%s8 + $0x28] sm:$0xff]
  %v3266 = vld [vmem:[%s8 + $0x30] sm:$0xff]
  %v3267 = vld [vmem:[%s8 + $0x38] sm:$0xff]
  %v3268 = vld [vmem:[%s8 + $0x40] sm:$0xff]
  %v3269 = vld [vmem:[%s8 + $0x48] sm:$0xff]
  %v3270 = vld [vmem:[%s8 + $0x50] sm:$0xff]
  %v3271 = vld [vmem:[%s8 + $0x58] sm:$0xff]
  %v3272 = vld [vmem:[%s8 + $0x60] sm:$0xff]
  %v3273 = vld [vmem:[%s8 + $0x68] sm:$0xff]
  %v3274 = vld [vmem:[%s8 + $0x70] sm:$0xff]
  %v3275 = vld [vmem:[%s8 + $0x78] sm:$0xff]
  %v3276 = vld [vmem:[%s9] sm:$0x1]
  %v3278 = vlaneseq
  %v3279 = vshrl.u32 %v3278, 7
  %v3280 = vsub.s32 0, %v3279
  %v3281 = vrot.slane %v3276, %v3280
  %3283 = vmatprep.subr.mxu0 0.0
  %3284 = vmatpush1.msra.mxu0 %v3275
  %3285 = vmatprep.subr.mxu0 0.0
  %3286 = vmatpush1.msra.mxu0 %v3274
  %3287 = vmatprep.subr.mxu0 0.0
  %3288 = vmatpush1.msra.mxu0 %v3273
  %3289 = vmatprep.subr.mxu0 0.0
  %3290 = vmatpush1.msra.mxu0 %v3272
  %3291 = vmatprep.subr.mxu0 0.0
  %3292 = vmatpush1.msra.mxu0 %v3271
  %3293 = vmatprep.subr.mxu0 0.0
  %3294 = vmatpush1.msra.mxu0 %v3270
  %3295 = vmatprep.subr.mxu0 0.0
  %3296 = vmatpush1.msra.mxu0 %v3269
  %3297 = vmatprep.subr.mxu0 0.0
  %3298 = vmatpush1.msra.mxu0 %v3268
  %3299 = vmatprep.subr.mxu0 0.0
  %3300 = vmatpush1.msra.mxu0 %v3267
  %3301 = vmatprep.subr.mxu0 0.0
  %3302 = vmatpush1.msra.mxu0 %v3266
  %3303 = vmatprep.subr.mxu0 0.0
  %3304 = vmatpush1.msra.mxu0 %v3265
  %3305 = vmatprep.subr.mxu0 0.0
  %3306 = vmatpush1.msra.mxu0 %v3264
  %3307 = vmatprep.subr.mxu0 0.0
  %3308 = vmatpush1.msra.mxu0 %v3263
  %3309 = vmatprep.subr.mxu0 0.0
  %3310 = vmatpush1.msra.mxu0 %v3262
  %3311 = vmatprep.subr.mxu0 0.0
  %3312 = vmatpush1.msra.mxu0 %v3261
  %3313 = vmatprep.subr.mxu0 0.0
  %3314 = vmatpush1.msra.mxu0 %v3260
  %3315 = vmatprep.subr.mxu0 0.0
  %3316 = vmatpush2.msra.mxu0 0.0
  %3317 = vmatprep.subr.mxu0 0.0
  %3318 = vmatpush2.msra.mxu0 0.0
  %3319 = vmatprep.subr.mxu0 0.0
  %3320 = vmatpush2.msra.mxu0 0.0
  %3321 = vmatprep.subr.mxu0 0.0
  %3322 = vmatpush2.msra.mxu0 0.0
  %3323 = vmatprep.subr.mxu0 0.0
  %3324 = vmatpush2.msra.mxu0 0.0
  %3325 = vmatprep.subr.mxu0 0.0
  %3326 = vmatpush2.msra.mxu0 0.0
  %3327 = vmatprep.subr.mxu0 0.0
  %3328 = vmatpush2.msra.mxu0 0.0
  %3329 = vmatprep.subr.mxu0 0.0
  %3330 = vmatpush2.msra.mxu0 0.0
  %3331 = vmatprep.subr.mxu0 0.0
  %3332 = vmatpush2.msra.mxu0 0.0
  %3333 = vmatprep.subr.mxu0 0.0
  %3334 = vmatpush2.msra.mxu0 0.0
  %3335 = vmatprep.subr.mxu0 0.0
  %3336 = vmatpush2.msra.mxu0 0.0
  %3337 = vmatprep.subr.mxu0 0.0
  %3338 = vmatpush2.msra.mxu0 0.0
  %3339 = vmatprep.subr.mxu0 0.0
  %3340 = vmatpush2.msra.mxu0 0.0
  %3341 = vmatprep.subr.mxu0 0.0
  %3342 = vmatpush2.msra.mxu0 0.0
  %3343 = vmatprep.subr.mxu0 0.0
  %3344 = vmatpush2.msra.mxu0 0.0
  %3345 = vmatprep.subr.mxu0 0.0
  %3346 = vmatpush2.msra.mxu0 0.0
  %3347 = vmatprep.mubr.f32.mxu0 0.0
  %3348 = vmatmul.mubr.f32.gmra.mxu0 %v3259
  %v3349 = vpop.f32.mrf.mxu0
  %v3350 = vadd.f32 %v3281, %v3349
  %v3351 = vpop.f32.mrf.mxu0
  %3352 = vdwg.mxu0
  %vm3353 = vcmask 130048
  %3354 = vst.msk [vmem:[%s10] sm:$0xff] %vm3353, %v3350
  // Predicated region
  $region42: #{fashion_net_forward.1} parent=0 // pred_check
    _
  $region43: #{fashion_net_forward.1} parent=0 // pred_check_branch
    %3356 = sbr.rel (0) target = $region45
  $region44: #{fashion_net_forward.1} parent=0 // pred_region
    _
  $region45: #{fashion_net_forward.1} parent=0 // pred_fallthru
    _
  // Predicated region
  $region46: #{fashion_net_forward.1} parent=0 // pred_check
    _
  $region47: #{fashion_net_forward.1} parent=0 // pred_check_branch
    %3358 = sbr.rel (0) target = $region49
  $region48: #{fashion_net_forward.1} parent=0 // pred_region
    _
  $region49: #{fashion_net_forward.1} parent=0 // pred_fallthru
    _

</llo_original>
